<compile_context>
chip_gen: v5e
topology: v5e:2x2
jax: 0.10.0
libtpu: 0.0.40
codegen_flags: <defaults>
</compile_context>

<pallas_src>
import functools

import jax
import jax.numpy as jnp
from jax import lax
from jax.experimental import pallas as pl
from jax.experimental.pallas import tpu as pltpu

LANE = 128
_STATIC_SEQ_LIMIT = 32      # fully unroll the LSTM time loop up to this length


def _round_up(x, m):
    return (x + m - 1) // m * m


def _gate_pad(hidden):
    # Per-gate lane stride.  hidden < 128: pack the 4 gates densely (4x
    # narrower MXU output per step); otherwise pad each gate to a lane
    # multiple so gate slices stay 128-aligned.
    return hidden if hidden < LANE else _round_up(hidden, LANE)


# ----------------------------------------------------------------------------
# Fused kernel factory: GCN stack (+BN+ReLU) -> multi-layer LSTM -> Linear.
# ----------------------------------------------------------------------------
def _make_fused_kernel(n_gcn, n_rnn, n_steps, hidden, gp, static_seq):
    gate_w = 4 * gp

    def kernel(*refs):
        pos = 0
        a_ref = refs[pos]; pos += 1                    # (N, N)   bf16
        x_ref = refs[pos]; pos += 1                    # (N, Cp)  bf16
        gcn_refs = []
        for _ in range(n_gcn):                         # w bf16, b/gamma/beta f32
            gcn_refs.append(tuple(refs[pos:pos + 4])); pos += 4
        lstm_refs = []
        for _ in range(n_rnn):                         # w_ih/w_hh bf16, b f32
            lstm_refs.append(tuple(refs[pos:pos + 3])); pos += 3
        ow_ref = refs[pos]; pos += 1                   # (H, Pp)  bf16
        ob_ref = refs[pos]; pos += 1                   # (1, Pp)  f32
        o_ref = refs[pos]; pos += 1                    # (N, Pp)  f32 output
        if not static_seq:
            xg_scr = refs[pos]; pos += 1               # (N, 4*gp) f32 scratch
            hseq_scr = refs[pos]; pos += 1             # (N, H)    f32 scratch

        # -------------- GCN stack: h = ReLU(BN(A @ (h @ W) + b)) ------------
        a = a_ref[...]
        h = x_ref[...]
        for (w_ref, b_ref, g_ref, be_ref) in gcn_refs:
            xw = jnp.dot(h, w_ref[...], preferred_element_type=jnp.float32)
            hl = jnp.dot(a, xw.astype(jnp.bfloat16),
                         preferred_element_type=jnp.float32) + b_ref[...]
            # BatchNorm1d over the node dim, training-mode batch statistics,
            # biased variance.  Two-pass (centered) variance for stability.
            mean = jnp.mean(hl, axis=0, keepdims=True)
            ctr = hl - mean
            var = jnp.mean(ctr * ctr, axis=0, keepdims=True)
            hl = ctr * lax.rsqrt(var + 1e-5) * g_ref[...] + be_ref[...]
            h = jnp.maximum(hl, 0.0).astype(jnp.bfloat16)  # ReLU; dropout p=0

        # -------------- multi-layer LSTM (batch = 1, seq = N) ---------------
        # Gate layout is (i, f, o, g) at lane stride `gp`: the three sigmoids
        # run on one contiguous slab, tanh on the last block.
        def cell(gates, h_prev, c_prev, whh_ref):
            gates = gates + jnp.dot(h_prev.astype(jnp.bfloat16), whh_ref[...],
                                    preferred_element_type=jnp.float32)
            sig = jax.nn.sigmoid(gates[:, :3 * gp])
            i_g = sig[:, 0 * gp:0 * gp + hidden]
            f_g = sig[:, 1 * gp:1 * gp + hidden]
            o_g = sig[:, 2 * gp:2 * gp + hidden]
            g_g = jnp.tanh(gates[:, 3 * gp:3 * gp + hidden])
            c_new = f_g * c_prev + i_g * g_g               # cell state in f32
            h_new = o_g * jnp.tanh(c_new)
            return h_new, c_new

        # TODO(synk): pin each layer's W_hh in MXU weight registers across the
        # time loop (pltpu.matmul_push_rhs / matmul_acc_lhs / matmul_pop) and
        # wavefront (layer0, t) with (layer1, t-1) into one 2-row matmul.

        wih0_ref, _, b0_ref = lstm_refs[0]
        if static_seq:
            # Layer-0 input-gate contribution for every timestep in one MXU
            # pass; all per-step state stays in vregs (no masked VMEM stores).
            xg = jnp.dot(h, wih0_ref[...],
                         preferred_element_type=jnp.float32) + b0_ref[...]
            state = [(jnp.zeros((1, hidden), jnp.float32),
                      jnp.zeros((1, hidden), jnp.float32))
                     for _ in range(n_rnn)]
            hs = []
            for t in range(n_steps):
                inp = None
                for layer in range(n_rnn):
                    wih_ref, whh_ref, bl_ref = lstm_refs[layer]
                    if layer == 0:
                        gates = xg[t:t + 1, :]
                    else:
                        gates = (jnp.dot(inp, wih_ref[...],
                                         preferred_element_type=jnp.float32)
                                 + bl_ref[...])
                    h_new, c_new = cell(gates, *state[layer], whh_ref)
                    state[layer] = (h_new, c_new)
                    inp = h_new.astype(jnp.bfloat16)
                hs.append(state[-1][0])
            hseq = jnp.concatenate(hs, axis=0)             # (N, H) f32, vregs
        else:
            # TODO(synk): at large N the GCN activations / xg_scr should be
            # produced with a row-blocked grid (A_hat tiled from HBM) and, on
            # v7x, the row-parallel GCN stage given a "parallel" grid axis.
            xg_scr[...] = (jnp.dot(h, wih0_ref[...],
                                   preferred_element_type=jnp.float32)
                           + b0_ref[...])

            def step(t, carry):
                new_carry = []
                inp = None
                for layer in range(n_rnn):
                    h_prev, c_prev = carry[layer]
                    wih_ref, whh_ref, bl_ref = lstm_refs[layer]
                    if layer == 0:
                        gates = xg_scr[pl.ds(t, 1), :]
                    else:
                        gates = (jnp.dot(inp, wih_ref[...],
                                         preferred_element_type=jnp.float32)
                                 + bl_ref[...])
                    h_new, c_new = cell(gates, h_prev, c_prev, whh_ref)
                    new_carry.append((h_new, c_new))
                    inp = h_new.astype(jnp.bfloat16)
                hseq_scr[pl.ds(t, 1), :] = new_carry[-1][0]
                return tuple(new_carry)

            init = tuple((jnp.zeros((1, hidden), jnp.float32),
                          jnp.zeros((1, hidden), jnp.float32))
                         for _ in range(n_rnn))
            lax.fori_loop(0, n_steps, step, init, unroll=8)
            hseq = hseq_scr[...]

        # -------------- output linear: one lane-dense block store -----------
        o_ref[...] = (jnp.dot(hseq.astype(jnp.bfloat16), ow_ref[...],
                              preferred_element_type=jnp.float32)
                      + ob_ref[...])

    return kernel


def _vmem_limit_bytes():
    # Re-derive the VMEM budget per chip generation (v7x has only 64 MiB).
    try:
        cap = int(pltpu.get_tpu_info().vmem_capacity_bytes)
        return max(16 * 1024 * 1024, min(3 * cap // 4, 100 * 1024 * 1024))
    except Exception:
        return 32 * 1024 * 1024     # safe on every generation


def gcn_lstm_fused_call(a_hat, x_p, gcn_params, lstm_params, out_w, out_b):
    n = a_hat.shape[0]
    hidden = out_w.shape[0]
    pp = out_w.shape[1]
    gate_w = lstm_params[0]["w_ih"].shape[1]
    gp = gate_w // 4
    n_gcn = len(gcn_params)
    n_rnn = len(lstm_params)
    static_seq = n <= _STATIC_SEQ_LIMIT

    inputs = [a_hat, x_p]
    for p in gcn_params:
        inputs += [p["w"], p["b"], p["gamma"], p["beta"]]
    for p in lstm_params:
        inputs += [p["w_ih"], p["w_hh"], p["b"]]
    inputs += [out_w, out_b]

    scratch = []
    if not static_seq:
        scratch = [pltpu.VMEM((n, gate_w), jnp.float32),   # layer-0 gates
                   pltpu.VMEM((n, hidden), jnp.float32)]   # top-layer outputs

    # Advisory cost estimate for XLA's scheduler around the custom call.
    flops = 0
    cin = x_p.shape[1]
    for _ in range(n_gcn):
        flops += 2 * n * cin * hidden + 2 * n * n * hidden
        cin = hidden
    flops += 2 * n * hidden * gate_w                        # layer-0 precompute
    flops += n * (2 * n_rnn - 1) * 2 * hidden * gate_w      # per-step matmuls
    flops += 2 * n * hidden * pp
    transcendentals = n * n_rnn * (3 * gp + 2 * hidden)
    bytes_accessed = (sum(int(v.size) * v.dtype.itemsize for v in inputs)
                      + n * pp * 4)

    kernel = _make_fused_kernel(n_gcn, n_rnn, n, hidden, gp, static_seq)
    return pl.pallas_call(
        kernel,
        out_shape=jax.ShapeDtypeStruct((n, pp), jnp.float32),
        scratch_shapes=scratch,
        compiler_params=pltpu.CompilerParams(
            vmem_limit_bytes=_vmem_limit_bytes()),
        cost_estimate=pl.CostEstimate(flops=int(flops),
                                      transcendentals=int(transcendentals),
                                      bytes_accessed=int(bytes_accessed)),
    )(*inputs)


# ----------------------------------------------------------------------------
# Parameter construction (kernel layout) + adjacency normalization.
# ----------------------------------------------------------------------------
def uniform(key, shape, fan_in):
    k = 1.0 / jnp.sqrt(jnp.asarray(fan_in, jnp.float32))
    return jax.random.uniform(key, shape, jnp.float32, -k, k)


def init_params(key, in_channels, hidden, num_gcn_layers, num_rnn_layers,
                num_predictions):
    cp = _round_up(in_channels, LANE)       # pad only the raw input-feature dim
    pp = _round_up(num_predictions, LANE)   # lane-dense final store
    gp = _gate_pad(hidden)
    gate_w = 4 * gp
    # Module builds 1 + (num_gcn_layers - 2) GCN conv layers.
    n_gcn = 1 + max(num_gcn_layers - 2, 0)
    params = {"gcn": [], "lstm": []}
    for li in range(n_gcn):
        cin = in_channels if li == 0 else hidden
        cin_p = cp if li == 0 else hidden
        key, kw, kb = jax.random.split(key, 3)
        w = jnp.zeros((cin_p, hidden), jnp.float32)
        w = w.at[:cin, :].set(uniform(kw, (cin, hidden), cin))
        b = uniform(kb, (1, hidden), cin)
        params["gcn"].append(dict(w=w.astype(jnp.bfloat16), b=b,
                                  gamma=jnp.ones((1, hidden), jnp.float32),
                                  beta=jnp.zeros((1, hidden), jnp.float32)))
    for _ in range(num_rnn_layers):
        key, k1, k2, k3, k4 = jax.random.split(key, 5)
        # PyTorch gate order is (i, f, g, o); stored here pre-transposed
        # ([in, 4H]) and re-ordered to (i, f, o, g) blocks at lane stride gp.
        wih = uniform(k1, (hidden, 4 * hidden), hidden)
        whh = uniform(k2, (hidden, 4 * hidden), hidden)
        bias = (uniform(k3, (1, 4 * hidden), hidden)
                + uniform(k4, (1, 4 * hidden), hidden))     # b_ih + b_hh
        wih_p = jnp.zeros((hidden, gate_w), jnp.float32)
        whh_p = jnp.zeros((hidden, gate_w), jnp.float32)
        b_p = jnp.zeros((1, gate_w), jnp.float32)
        for dst, src in enumerate((0, 1, 3, 2)):             # i, f, o, g
            wih_p = wih_p.at[:, dst * gp:dst * gp + hidden].set(
                wih[:, src * hidden:(src + 1) * hidden])
            whh_p = whh_p.at[:, dst * gp:dst * gp + hidden].set(
                whh[:, src * hidden:(src + 1) * hidden])
            b_p = b_p.at[:, dst * gp:dst * gp + hidden].set(
                bias[:, src * hidden:(src + 1) * hidden])
        params["lstm"].append(dict(w_ih=wih_p.astype(jnp.bfloat16),
                                   w_hh=whh_p.astype(jnp.bfloat16),
                                   b=b_p))
    key, kw, kb = jax.random.split(key, 3)
    ow = jnp.zeros((hidden, pp), jnp.float32)
    ow = ow.at[:, :num_predictions].set(
        uniform(kw, (hidden, num_predictions), hidden))
    ob = jnp.zeros((1, pp), jnp.float32)
    ob = ob.at[:, :num_predictions].set(
        uniform(kb, (1, num_predictions), hidden))
    params["out_w"] = ow.astype(jnp.bfloat16)
    params["out_b"] = ob
    return params


def normalized_adjacency(edge_index, edge_weight, num_nodes):
    """Dense D^{-1/2} (A + I) D^{-1/2}; A[dst, src] = w (GCN aggregation)."""
    src, dst = edge_index[0], edge_index[1]
    a = jnp.zeros((num_nodes, num_nodes), jnp.float32)
    a = a.at[dst, src].add(edge_weight)
    a = a + jnp.eye(num_nodes, dtype=jnp.float32)      # self loops (weight 1)
    deg = jnp.sum(a, axis=1)
    d_inv_sqrt = jnp.where(deg > 0, lax.rsqrt(deg), 0.0)
    return a * d_inv_sqrt[:, None] * d_inv_sqrt[None, :]


@functools.partial(jax.jit, static_argnums=(4,))
def gcn_lstm_forward(params, x, edge_index, edge_weight, num_predictions):
    n, c = x.shape
    cp = params["gcn"][0]["w"].shape[0]
    a_hat = normalized_adjacency(edge_index, edge_weight,
                                 n).astype(jnp.bfloat16)
    x_p = jnp.zeros((n, cp), jnp.bfloat16).at[:, :c].set(
        x.astype(jnp.bfloat16))
    out = gcn_lstm_fused_call(a_hat, x_p, params["gcn"], params["lstm"],
                              params["out_w"], params["out_b"])
    return jnp.squeeze(out[:, :num_predictions])       # mirrors final .squeeze()


if __name__ == "__main__":
    # Small deterministic problem
    N = 16                 # number of nodes == LSTM sequence length (batch=1)
    IN_CHANNELS = 4
    HIDDEN = 32
    NUM_GCN_LAYERS = 3     # -> 2 GCN conv layers in the module
    NUM_RNN_LAYERS = 2
    NUM_PREDICTIONS = 1
    E = 40                 # number of edges

    key = jax.random.PRNGKey(0)
    key, kx, ksrc, kdst, kw = jax.random.split(key, 5)

    x = jax.random.normal(kx, (N, IN_CHANNELS), jnp.float32)
    src = jax.random.randint(ksrc, (E,), 0, N)
    dst = jax.random.randint(kdst, (E,), 0, N)
    edge_index = jnp.stack([src, dst], axis=0)            # [2, E]
    edge_weight = jax.random.uniform(kw, (E,), jnp.float32, 0.1, 1.0)

    params = init_params(key, IN_CHANNELS, HIDDEN, NUM_GCN_LAYERS,
                         NUM_RNN_LAYERS, NUM_PREDICTIONS)

    out = gcn_lstm_forward(params, x, edge_index, edge_weight,
                           NUM_PREDICTIONS)
    out = jax.block_until_ready(out)
    assert out.shape == (N,), out.shape
    assert bool(jnp.all(jnp.isfinite(out)))
    print("KERNEL_OK")
</pallas_src>

<mosaic_0001>
module attributes {stable_mosaic.version = 11 : i64} {
  func.func @kernel(%arg0: memref<16x16xbf16, #tpu.memory_space<vmem>>, %arg1: memref<16x128xbf16, #tpu.memory_space<vmem>>, %arg2: memref<128x32xbf16, #tpu.memory_space<vmem>>, %arg3: memref<1x32xf32, #tpu.memory_space<vmem>>, %arg4: memref<1x32xf32, #tpu.memory_space<vmem>>, %arg5: memref<1x32xf32, #tpu.memory_space<vmem>>, %arg6: memref<32x32xbf16, #tpu.memory_space<vmem>>, %arg7: memref<1x32xf32, #tpu.memory_space<vmem>>, %arg8: memref<1x32xf32, #tpu.memory_space<vmem>>, %arg9: memref<1x32xf32, #tpu.memory_space<vmem>>, %arg10: memref<32x128xbf16, #tpu.memory_space<vmem>>, %arg11: memref<32x128xbf16, #tpu.memory_space<vmem>>, %arg12: memref<1x128xf32, #tpu.memory_space<vmem>>, %arg13: memref<32x128xbf16, #tpu.memory_space<vmem>>, %arg14: memref<32x128xbf16, #tpu.memory_space<vmem>>, %arg15: memref<1x128xf32, #tpu.memory_space<vmem>>, %arg16: memref<32x128xbf16, #tpu.memory_space<vmem>>, %arg17: memref<1x128xf32, #tpu.memory_space<vmem>>, %arg18: memref<16x128xf32, #tpu.memory_space<vmem>>) attributes {dimension_semantics = [], scalar_prefetch = 0 : i64, scratch_operands = 0 : i64, tpu.core_type = #tpu.core_type<tc>} {
    %c0 = arith.constant 0 : index
    %c0_0 = arith.constant 0 : index
    %0 = vector.load %arg0[%c0, %c0_0] : memref<16x16xbf16, #tpu.memory_space<vmem>>, vector<16x16xbf16>
    %c0_1 = arith.constant 0 : index
    %c0_2 = arith.constant 0 : index
    %1 = vector.load %arg1[%c0_1, %c0_2] : memref<16x128xbf16, #tpu.memory_space<vmem>>, vector<16x128xbf16>
    %c0_3 = arith.constant 0 : index
    %c0_4 = arith.constant 0 : index
    %2 = vector.load %arg2[%c0_3, %c0_4] : memref<128x32xbf16, #tpu.memory_space<vmem>>, vector<128x32xbf16>
    %cst = arith.constant dense<0.000000e+00> : vector<16x32xf32>
    %3 = tpu.matmul %1, %2, %cst {dimension_numbers = #tpu.dot_dimension_numbers<[1], [0], [0], [1], [0, 0, 1, 1], [], []>} : vector<16x128xbf16>, vector<128x32xbf16>, vector<16x32xf32> -> vector<16x32xf32>
    %4 = arith.truncf %3 : vector<16x32xf32> to vector<16x32xbf16>
    %cst_5 = arith.constant dense<0.000000e+00> : vector<16x32xf32>
    %5 = tpu.matmul %0, %4, %cst_5 {dimension_numbers = #tpu.dot_dimension_numbers<[1], [0], [0], [1], [0, 0, 1, 1], [], []>} : vector<16x16xbf16>, vector<16x32xbf16>, vector<16x32xf32> -> vector<16x32xf32>
    %c0_6 = arith.constant 0 : index
    %c0_7 = arith.constant 0 : index
    %6 = vector.load %arg3[%c0_6, %c0_7] : memref<1x32xf32, #tpu.memory_space<vmem>>, vector<1x32xf32>
    %7 = vector.broadcast %6 : vector<1x32xf32> to vector<16x32xf32>
    %8 = arith.addf %5, %7 : vector<16x32xf32>
    %cst_8 = arith.constant dense<0.000000e+00> : vector<32xf32>
    %9 = vector.multi_reduction <add>, %8, %cst_8 [0] : vector<16x32xf32> to vector<32xf32>
    %10 = vector.shape_cast %9 : vector<32xf32> to vector<1x32xf32>
    %cst_9 = arith.constant 1.600000e+01 : f32
    %11 = vector.broadcast %cst_9 : f32 to vector<1x32xf32>
    %12 = arith.divf %10, %11 : vector<1x32xf32>
    %13 = vector.broadcast %12 : vector<1x32xf32> to vector<16x32xf32>
    %14 = arith.subf %8, %13 : vector<16x32xf32>
    %15 = arith.mulf %14, %14 : vector<16x32xf32>
    %cst_10 = arith.constant dense<0.000000e+00> : vector<32xf32>
    %16 = vector.multi_reduction <add>, %15, %cst_10 [0] : vector<16x32xf32> to vector<32xf32>
    %17 = vector.shape_cast %16 : vector<32xf32> to vector<1x32xf32>
    %cst_11 = arith.constant 1.600000e+01 : f32
    %18 = vector.broadcast %cst_11 : f32 to vector<1x32xf32>
    %19 = arith.divf %17, %18 : vector<1x32xf32>
    %cst_12 = arith.constant 9.99999974E-6 : f32
    %20 = vector.broadcast %cst_12 : f32 to vector<1x32xf32>
    %21 = arith.addf %19, %20 : vector<1x32xf32>
    %22 = math.rsqrt %21 : vector<1x32xf32>
    %23 = vector.broadcast %22 : vector<1x32xf32> to vector<16x32xf32>
    %24 = arith.mulf %14, %23 : vector<16x32xf32>
    %c0_13 = arith.constant 0 : index
    %c0_14 = arith.constant 0 : index
    %25 = vector.load %arg4[%c0_13, %c0_14] : memref<1x32xf32, #tpu.memory_space<vmem>>, vector<1x32xf32>
    %26 = vector.broadcast %25 : vector<1x32xf32> to vector<16x32xf32>
    %27 = arith.mulf %24, %26 : vector<16x32xf32>
    %c0_15 = arith.constant 0 : index
    %c0_16 = arith.constant 0 : index
    %28 = vector.load %arg5[%c0_15, %c0_16] : memref<1x32xf32, #tpu.memory_space<vmem>>, vector<1x32xf32>
    %29 = vector.broadcast %28 : vector<1x32xf32> to vector<16x32xf32>
    %30 = arith.addf %27, %29 : vector<16x32xf32>
    %cst_17 = arith.constant 0.000000e+00 : f32
    %31 = vector.broadcast %cst_17 : f32 to vector<16x32xf32>
    %32 = arith.maximumf %30, %31 : vector<16x32xf32>
    %33 = arith.truncf %32 : vector<16x32xf32> to vector<16x32xbf16>
    %c0_18 = arith.constant 0 : index
    %c0_19 = arith.constant 0 : index
    %34 = vector.load %arg6[%c0_18, %c0_19] : memref<32x32xbf16, #tpu.memory_space<vmem>>, vector<32x32xbf16>
    %cst_20 = arith.constant dense<0.000000e+00> : vector<16x32xf32>
    %35 = tpu.matmul %33, %34, %cst_20 {dimension_numbers = #tpu.dot_dimension_numbers<[1], [0], [0], [1], [0, 0, 1, 1], [], []>} : vector<16x32xbf16>, vector<32x32xbf16>, vector<16x32xf32> -> vector<16x32xf32>
    %36 = arith.truncf %35 : vector<16x32xf32> to vector<16x32xbf16>
    %cst_21 = arith.constant dense<0.000000e+00> : vector<16x32xf32>
    %37 = tpu.matmul %0, %36, %cst_21 {dimension_numbers = #tpu.dot_dimension_numbers<[1], [0], [0], [1], [0, 0, 1, 1], [], []>} : vector<16x16xbf16>, vector<16x32xbf16>, vector<16x32xf32> -> vector<16x32xf32>
    %c0_22 = arith.constant 0 : index
    %c0_23 = arith.constant 0 : index
    %38 = vector.load %arg7[%c0_22, %c0_23] : memref<1x32xf32, #tpu.memory_space<vmem>>, vector<1x32xf32>
    %39 = vector.broadcast %38 : vector<1x32xf32> to vector<16x32xf32>
    %40 = arith.addf %37, %39 : vector<16x32xf32>
    %cst_24 = arith.constant dense<0.000000e+00> : vector<32xf32>
    %41 = vector.multi_reduction <add>, %40, %cst_24 [0] : vector<16x32xf32> to vector<32xf32>
    %42 = vector.shape_cast %41 : vector<32xf32> to vector<1x32xf32>
    %cst_25 = arith.constant 1.600000e+01 : f32
    %43 = vector.broadcast %cst_25 : f32 to vector<1x32xf32>
    %44 = arith.divf %42, %43 : vector<1x32xf32>
    %45 = vector.broadcast %44 : vector<1x32xf32> to vector<16x32xf32>
    %46 = arith.subf %40, %45 : vector<16x32xf32>
    %47 = arith.mulf %46, %46 : vector<16x32xf32>
    %cst_26 = arith.constant dense<0.000000e+00> : vector<32xf32>
    %48 = vector.multi_reduction <add>, %47, %cst_26 [0] : vector<16x32xf32> to vector<32xf32>
    %49 = vector.shape_cast %48 : vector<32xf32> to vector<1x32xf32>
    %cst_27 = arith.constant 1.600000e+01 : f32
    %50 = vector.broadcast %cst_27 : f32 to vector<1x32xf32>
    %51 = arith.divf %49, %50 : vector<1x32xf32>
    %cst_28 = arith.constant 9.99999974E-6 : f32
    %52 = vector.broadcast %cst_28 : f32 to vector<1x32xf32>
    %53 = arith.addf %51, %52 : vector<1x32xf32>
    %54 = math.rsqrt %53 : vector<1x32xf32>
    %55 = vector.broadcast %54 : vector<1x32xf32> to vector<16x32xf32>
    %56 = arith.mulf %46, %55 : vector<16x32xf32>
    %c0_29 = arith.constant 0 : index
    %c0_30 = arith.constant 0 : index
    %57 = vector.load %arg8[%c0_29, %c0_30] : memref<1x32xf32, #tpu.memory_space<vmem>>, vector<1x32xf32>
    %58 = vector.broadcast %57 : vector<1x32xf32> to vector<16x32xf32>
    %59 = arith.mulf %56, %58 : vector<16x32xf32>
    %c0_31 = arith.constant 0 : index
    %c0_32 = arith.constant 0 : index
    %60 = vector.load %arg9[%c0_31, %c0_32] : memref<1x32xf32, #tpu.memory_space<vmem>>, vector<1x32xf32>
    %61 = vector.broadcast %60 : vector<1x32xf32> to vector<16x32xf32>
    %62 = arith.addf %59, %61 : vector<16x32xf32>
    %cst_33 = arith.constant 0.000000e+00 : f32
    %63 = vector.broadcast %cst_33 : f32 to vector<16x32xf32>
    %64 = arith.maximumf %62, %63 : vector<16x32xf32>
    %65 = arith.truncf %64 : vector<16x32xf32> to vector<16x32xbf16>
    %c0_34 = arith.constant 0 : index
    %c0_35 = arith.constant 0 : index
    %66 = vector.load %arg10[%c0_34, %c0_35] : memref<32x128xbf16, #tpu.memory_space<vmem>>, vector<32x128xbf16>
    %cst_36 = arith.constant dense<0.000000e+00> : vector<16x128xf32>
    %67 = tpu.matmul %65, %66, %cst_36 {dimension_numbers = #tpu.dot_dimension_numbers<[1], [0], [0], [1], [0, 0, 1, 1], [], []>} : vector<16x32xbf16>, vector<32x128xbf16>, vector<16x128xf32> -> vector<16x128xf32>
    %c0_37 = arith.constant 0 : index
    %c0_38 = arith.constant 0 : index
    %68 = vector.load %arg12[%c0_37, %c0_38] : memref<1x128xf32, #tpu.memory_space<vmem>>, vector<1x128xf32>
    %69 = vector.broadcast %68 : vector<1x128xf32> to vector<16x128xf32>
    %70 = arith.addf %67, %69 : vector<16x128xf32>
    %cst_39 = arith.constant 0.000000e+00 : f32
    %71 = vector.broadcast %cst_39 : f32 to vector<1x32xf32>
    %cst_40 = arith.constant 0.000000e+00 : f32
    %72 = vector.broadcast %cst_40 : f32 to vector<1x32xf32>
    %cst_41 = arith.constant 0.000000e+00 : f32
    %73 = vector.broadcast %cst_41 : f32 to vector<1x32xf32>
    %cst_42 = arith.constant 0.000000e+00 : f32
    %74 = vector.broadcast %cst_42 : f32 to vector<1x32xf32>
    %75 = vector.extract_strided_slice %70 {offsets = [0, 0], sizes = [1, 128], strides = [1, 1]} : vector<16x128xf32> to vector<1x128xf32>
    %76 = arith.truncf %71 : vector<1x32xf32> to vector<1x32xbf16>
    %c0_43 = arith.constant 0 : index
    %c0_44 = arith.constant 0 : index
    %77 = vector.load %arg11[%c0_43, %c0_44] : memref<32x128xbf16, #tpu.memory_space<vmem>>, vector<32x128xbf16>
    %cst_45 = arith.constant dense<0.000000e+00> : vector<1x128xf32>
    %78 = tpu.matmul %76, %77, %cst_45 {dimension_numbers = #tpu.dot_dimension_numbers<[1], [0], [0], [1], [0, 0, 1, 1], [], []>} : vector<1x32xbf16>, vector<32x128xbf16>, vector<1x128xf32> -> vector<1x128xf32>
    %79 = arith.addf %75, %78 : vector<1x128xf32>
    %80 = vector.extract_strided_slice %79 {offsets = [0, 0], sizes = [1, 96], strides = [1, 1]} : vector<1x128xf32> to vector<1x96xf32>
    %81 = arith.negf %80 : vector<1x96xf32>
    %82 = math.exp %81 : vector<1x96xf32>
    %cst_46 = arith.constant 1.000000e+00 : f32
    %83 = vector.broadcast %cst_46 : f32 to vector<1x96xf32>
    %84 = arith.addf %83, %82 : vector<1x96xf32>
    %85 = arith.divf %83, %84 : vector<1x96xf32>
    %86 = vector.extract_strided_slice %85 {offsets = [0, 0], sizes = [1, 32], strides = [1, 1]} : vector<1x96xf32> to vector<1x32xf32>
    %87 = vector.extract_strided_slice %85 {offsets = [0, 32], sizes = [1, 32], strides = [1, 1]} : vector<1x96xf32> to vector<1x32xf32>
    %88 = vector.extract_strided_slice %85 {offsets = [0, 64], sizes = [1, 32], strides = [1, 1]} : vector<1x96xf32> to vector<1x32xf32>
    %89 = vector.extract_strided_slice %79 {offsets = [0, 96], sizes = [1, 32], strides = [1, 1]} : vector<1x128xf32> to vector<1x32xf32>
    %90 = math.tanh %89 : vector<1x32xf32>
    %91 = arith.mulf %87, %72 : vector<1x32xf32>
    %92 = arith.mulf %86, %90 : vector<1x32xf32>
    %93 = arith.addf %91, %92 : vector<1x32xf32>
    %94 = math.tanh %93 : vector<1x32xf32>
    %95 = arith.mulf %88, %94 : vector<1x32xf32>
    %96 = arith.truncf %95 : vector<1x32xf32> to vector<1x32xbf16>
    %c0_47 = arith.constant 0 : index
    %c0_48 = arith.constant 0 : index
    %97 = vector.load %arg13[%c0_47, %c0_48] : memref<32x128xbf16, #tpu.memory_space<vmem>>, vector<32x128xbf16>
    %cst_49 = arith.constant dense<0.000000e+00> : vector<1x128xf32>
    %98 = tpu.matmul %96, %97, %cst_49 {dimension_numbers = #tpu.dot_dimension_numbers<[1], [0], [0], [1], [0, 0, 1, 1], [], []>} : vector<1x32xbf16>, vector<32x128xbf16>, vector<1x128xf32> -> vector<1x128xf32>
    %c0_50 = arith.constant 0 : index
    %c0_51 = arith.constant 0 : index
    %99 = vector.load %arg15[%c0_50, %c0_51] : memref<1x128xf32, #tpu.memory_space<vmem>>, vector<1x128xf32>
    %100 = arith.addf %98, %99 : vector<1x128xf32>
    %101 = arith.truncf %73 : vector<1x32xf32> to vector<1x32xbf16>
    %c0_52 = arith.constant 0 : index
    %c0_53 = arith.constant 0 : index
    %102 = vector.load %arg14[%c0_52, %c0_53] : memref<32x128xbf16, #tpu.memory_space<vmem>>, vector<32x128xbf16>
    %cst_54 = arith.constant dense<0.000000e+00> : vector<1x128xf32>
    %103 = tpu.matmul %101, %102, %cst_54 {dimension_numbers = #tpu.dot_dimension_numbers<[1], [0], [0], [1], [0, 0, 1, 1], [], []>} : vector<1x32xbf16>, vector<32x128xbf16>, vector<1x128xf32> -> vector<1x128xf32>
    %104 = arith.addf %100, %103 : vector<1x128xf32>
    %105 = vector.extract_strided_slice %104 {offsets = [0, 0], sizes = [1, 96], strides = [1, 1]} : vector<1x128xf32> to vector<1x96xf32>
    %106 = arith.negf %105 : vector<1x96xf32>
    %107 = math.exp %106 : vector<1x96xf32>
    %cst_55 = arith.constant 1.000000e+00 : f32
    %108 = vector.broadcast %cst_55 : f32 to vector<1x96xf32>
    %109 = arith.addf %108, %107 : vector<1x96xf32>
    %110 = arith.divf %108, %109 : vector<1x96xf32>
    %111 = vector.extract_strided_slice %110 {offsets = [0, 0], sizes = [1, 32], strides = [1, 1]} : vector<1x96xf32> to vector<1x32xf32>
    %112 = vector.extract_strided_slice %110 {offsets = [0, 32], sizes = [1, 32], strides = [1, 1]} : vector<1x96xf32> to vector<1x32xf32>
    %113 = vector.extract_strided_slice %110 {offsets = [0, 64], sizes = [1, 32], strides = [1, 1]} : vector<1x96xf32> to vector<1x32xf32>
    %114 = vector.extract_strided_slice %104 {offsets = [0, 96], sizes = [1, 32], strides = [1, 1]} : vector<1x128xf32> to vector<1x32xf32>
    %115 = math.tanh %114 : vector<1x32xf32>
    %116 = arith.mulf %112, %74 : vector<1x32xf32>
    %117 = arith.mulf %111, %115 : vector<1x32xf32>
    %118 = arith.addf %116, %117 : vector<1x32xf32>
    %119 = math.tanh %118 : vector<1x32xf32>
    %120 = arith.mulf %113, %119 : vector<1x32xf32>
    %121 = vector.extract_strided_slice %70 {offsets = [1, 0], sizes = [1, 128], strides = [1, 1]} : vector<16x128xf32> to vector<1x128xf32>
    %122 = arith.truncf %95 : vector<1x32xf32> to vector<1x32xbf16>
    %c0_56 = arith.constant 0 : index
    %c0_57 = arith.constant 0 : index
    %123 = vector.load %arg11[%c0_56, %c0_57] : memref<32x128xbf16, #tpu.memory_space<vmem>>, vector<32x128xbf16>
    %cst_58 = arith.constant dense<0.000000e+00> : vector<1x128xf32>
    %124 = tpu.matmul %122, %123, %cst_58 {dimension_numbers = #tpu.dot_dimension_numbers<[1], [0], [0], [1], [0, 0, 1, 1], [], []>} : vector<1x32xbf16>, vector<32x128xbf16>, vector<1x128xf32> -> vector<1x128xf32>
    %125 = arith.addf %121, %124 : vector<1x128xf32>
    %126 = vector.extract_strided_slice %125 {offsets = [0, 0], sizes = [1, 96], strides = [1, 1]} : vector<1x128xf32> to vector<1x96xf32>
    %127 = arith.negf %126 : vector<1x96xf32>
    %128 = math.exp %127 : vector<1x96xf32>
    %cst_59 = arith.constant 1.000000e+00 : f32
    %129 = vector.broadcast %cst_59 : f32 to vector<1x96xf32>
    %130 = arith.addf %129, %128 : vector<1x96xf32>
    %131 = arith.divf %129, %130 : vector<1x96xf32>
    %132 = vector.extract_strided_slice %131 {offsets = [0, 0], sizes = [1, 32], strides = [1, 1]} : vector<1x96xf32> to vector<1x32xf32>
    %133 = vector.extract_strided_slice %131 {offsets = [0, 32], sizes = [1, 32], strides = [1, 1]} : vector<1x96xf32> to vector<1x32xf32>
    %134 = vector.extract_strided_slice %131 {offsets = [0, 64], sizes = [1, 32], strides = [1, 1]} : vector<1x96xf32> to vector<1x32xf32>
    %135 = vector.extract_strided_slice %125 {offsets = [0, 96], sizes = [1, 32], strides = [1, 1]} : vector<1x128xf32> to vector<1x32xf32>
    %136 = math.tanh %135 : vector<1x32xf32>
    %137 = arith.mulf %133, %93 : vector<1x32xf32>
    %138 = arith.mulf %132, %136 : vector<1x32xf32>
    %139 = arith.addf %137, %138 : vector<1x32xf32>
    %140 = math.tanh %139 : vector<1x32xf32>
    %141 = arith.mulf %134, %140 : vector<1x32xf32>
    %142 = arith.truncf %141 : vector<1x32xf32> to vector<1x32xbf16>
    %c0_60 = arith.constant 0 : index
    %c0_61 = arith.constant 0 : index
    %143 = vector.load %arg13[%c0_60, %c0_61] : memref<32x128xbf16, #tpu.memory_space<vmem>>, vector<32x128xbf16>
    %cst_62 = arith.constant dense<0.000000e+00> : vector<1x128xf32>
    %144 = tpu.matmul %142, %143, %cst_62 {dimension_numbers = #tpu.dot_dimension_numbers<[1], [0], [0], [1], [0, 0, 1, 1], [], []>} : vector<1x32xbf16>, vector<32x128xbf16>, vector<1x128xf32> -> vector<1x128xf32>
    %c0_63 = arith.constant 0 : index
    %c0_64 = arith.constant 0 : index
    %145 = vector.load %arg15[%c0_63, %c0_64] : memref<1x128xf32, #tpu.memory_space<vmem>>, vector<1x128xf32>
    %146 = arith.addf %144, %145 : vector<1x128xf32>
    %147 = arith.truncf %120 : vector<1x32xf32> to vector<1x32xbf16>
    %c0_65 = arith.constant 0 : index
    %c0_66 = arith.constant 0 : index
    %148 = vector.load %arg14[%c0_65, %c0_66] : memref<32x128xbf16, #tpu.memory_space<vmem>>, vector<32x128xbf16>
    %cst_67 = arith.constant dense<0.000000e+00> : vector<1x128xf32>
    %149 = tpu.matmul %147, %148, %cst_67 {dimension_numbers = #tpu.dot_dimension_numbers<[1], [0], [0], [1], [0, 0, 1, 1], [], []>} : vector<1x32xbf16>, vector<32x128xbf16>, vector<1x128xf32> -> vector<1x128xf32>
    %150 = arith.addf %146, %149 : vector<1x128xf32>
    %151 = vector.extract_strided_slice %150 {offsets = [0, 0], sizes = [1, 96], strides = [1, 1]} : vector<1x128xf32> to vector<1x96xf32>
    %152 = arith.negf %151 : vector<1x96xf32>
    %153 = math.exp %152 : vector<1x96xf32>
    %cst_68 = arith.constant 1.000000e+00 : f32
    %154 = vector.broadcast %cst_68 : f32 to vector<1x96xf32>
    %155 = arith.addf %154, %153 : vector<1x96xf32>
    %156 = arith.divf %154, %155 : vector<1x96xf32>
    %157 = vector.extract_strided_slice %156 {offsets = [0, 0], sizes = [1, 32], strides = [1, 1]} : vector<1x96xf32> to vector<1x32xf32>
    %158 = vector.extract_strided_slice %156 {offsets = [0, 32], sizes = [1, 32], strides = [1, 1]} : vector<1x96xf32> to vector<1x32xf32>
    %159 = vector.extract_strided_slice %156 {offsets = [0, 64], sizes = [1, 32], strides = [1, 1]} : vector<1x96xf32> to vector<1x32xf32>
    %160 = vector.extract_strided_slice %150 {offsets = [0, 96], sizes = [1, 32], strides = [1, 1]} : vector<1x128xf32> to vector<1x32xf32>
    %161 = math.tanh %160 : vector<1x32xf32>
    %162 = arith.mulf %158, %118 : vector<1x32xf32>
    %163 = arith.mulf %157, %161 : vector<1x32xf32>
    %164 = arith.addf %162, %163 : vector<1x32xf32>
    %165 = math.tanh %164 : vector<1x32xf32>
    %166 = arith.mulf %159, %165 : vector<1x32xf32>
    %167 = vector.extract_strided_slice %70 {offsets = [2, 0], sizes = [1, 128], strides = [1, 1]} : vector<16x128xf32> to vector<1x128xf32>
    %168 = arith.truncf %141 : vector<1x32xf32> to vector<1x32xbf16>
    %c0_69 = arith.constant 0 : index
    %c0_70 = arith.constant 0 : index
    %169 = vector.load %arg11[%c0_69, %c0_70] : memref<32x128xbf16, #tpu.memory_space<vmem>>, vector<32x128xbf16>
    %cst_71 = arith.constant dense<0.000000e+00> : vector<1x128xf32>
    %170 = tpu.matmul %168, %169, %cst_71 {dimension_numbers = #tpu.dot_dimension_numbers<[1], [0], [0], [1], [0, 0, 1, 1], [], []>} : vector<1x32xbf16>, vector<32x128xbf16>, vector<1x128xf32> -> vector<1x128xf32>
    %171 = arith.addf %167, %170 : vector<1x128xf32>
    %172 = vector.extract_strided_slice %171 {offsets = [0, 0], sizes = [1, 96], strides = [1, 1]} : vector<1x128xf32> to vector<1x96xf32>
    %173 = arith.negf %172 : vector<1x96xf32>
    %174 = math.exp %173 : vector<1x96xf32>
    %cst_72 = arith.constant 1.000000e+00 : f32
    %175 = vector.broadcast %cst_72 : f32 to vector<1x96xf32>
    %176 = arith.addf %175, %174 : vector<1x96xf32>
    %177 = arith.divf %175, %176 : vector<1x96xf32>
    %178 = vector.extract_strided_slice %177 {offsets = [0, 0], sizes = [1, 32], strides = [1, 1]} : vector<1x96xf32> to vector<1x32xf32>
    %179 = vector.extract_strided_slice %177 {offsets = [0, 32], sizes = [1, 32], strides = [1, 1]} : vector<1x96xf32> to vector<1x32xf32>
    %180 = vector.extract_strided_slice %177 {offsets = [0, 64], sizes = [1, 32], strides = [1, 1]} : vector<1x96xf32> to vector<1x32xf32>
    %181 = vector.extract_strided_slice %171 {offsets = [0, 96], sizes = [1, 32], strides = [1, 1]} : vector<1x128xf32> to vector<1x32xf32>
    %182 = math.tanh %181 : vector<1x32xf32>
    %183 = arith.mulf %179, %139 : vector<1x32xf32>
    %184 = arith.mulf %178, %182 : vector<1x32xf32>
    %185 = arith.addf %183, %184 : vector<1x32xf32>
    %186 = math.tanh %185 : vector<1x32xf32>
    %187 = arith.mulf %180, %186 : vector<1x32xf32>
    %188 = arith.truncf %187 : vector<1x32xf32> to vector<1x32xbf16>
    %c0_73 = arith.constant 0 : index
    %c0_74 = arith.constant 0 : index
    %189 = vector.load %arg13[%c0_73, %c0_74] : memref<32x128xbf16, #tpu.memory_space<vmem>>, vector<32x128xbf16>
    %cst_75 = arith.constant dense<0.000000e+00> : vector<1x128xf32>
    %190 = tpu.matmul %188, %189, %cst_75 {dimension_numbers = #tpu.dot_dimension_numbers<[1], [0], [0], [1], [0, 0, 1, 1], [], []>} : vector<1x32xbf16>, vector<32x128xbf16>, vector<1x128xf32> -> vector<1x128xf32>
    %c0_76 = arith.constant 0 : index
    %c0_77 = arith.constant 0 : index
    %191 = vector.load %arg15[%c0_76, %c0_77] : memref<1x128xf32, #tpu.memory_space<vmem>>, vector<1x128xf32>
    %192 = arith.addf %190, %191 : vector<1x128xf32>
    %193 = arith.truncf %166 : vector<1x32xf32> to vector<1x32xbf16>
    %c0_78 = arith.constant 0 : index
    %c0_79 = arith.constant 0 : index
    %194 = vector.load %arg14[%c0_78, %c0_79] : memref<32x128xbf16, #tpu.memory_space<vmem>>, vector<32x128xbf16>
    %cst_80 = arith.constant dense<0.000000e+00> : vector<1x128xf32>
    %195 = tpu.matmul %193, %194, %cst_80 {dimension_numbers = #tpu.dot_dimension_numbers<[1], [0], [0], [1], [0, 0, 1, 1], [], []>} : vector<1x32xbf16>, vector<32x128xbf16>, vector<1x128xf32> -> vector<1x128xf32>
    %196 = arith.addf %192, %195 : vector<1x128xf32>
    %197 = vector.extract_strided_slice %196 {offsets = [0, 0], sizes = [1, 96], strides = [1, 1]} : vector<1x128xf32> to vector<1x96xf32>
    %198 = arith.negf %197 : vector<1x96xf32>
    %199 = math.exp %198 : vector<1x96xf32>
    %cst_81 = arith.constant 1.000000e+00 : f32
    %200 = vector.broadcast %cst_81 : f32 to vector<1x96xf32>
    %201 = arith.addf %200, %199 : vector<1x96xf32>
    %202 = arith.divf %200, %201 : vector<1x96xf32>
    %203 = vector.extract_strided_slice %202 {offsets = [0, 0], sizes = [1, 32], strides = [1, 1]} : vector<1x96xf32> to vector<1x32xf32>
    %204 = vector.extract_strided_slice %202 {offsets = [0, 32], sizes = [1, 32], strides = [1, 1]} : vector<1x96xf32> to vector<1x32xf32>
    %205 = vector.extract_strided_slice %202 {offsets = [0, 64], sizes = [1, 32], strides = [1, 1]} : vector<1x96xf32> to vector<1x32xf32>
    %206 = vector.extract_strided_slice %196 {offsets = [0, 96], sizes = [1, 32], strides = [1, 1]} : vector<1x128xf32> to vector<1x32xf32>
    %207 = math.tanh %206 : vector<1x32xf32>
    %208 = arith.mulf %204, %164 : vector<1x32xf32>
    %209 = arith.mulf %203, %207 : vector<1x32xf32>
    %210 = arith.addf %208, %209 : vector<1x32xf32>
    %211 = math.tanh %210 : vector<1x32xf32>
    %212 = arith.mulf %205, %211 : vector<1x32xf32>
    %213 = vector.extract_strided_slice %70 {offsets = [3, 0], sizes = [1, 128], strides = [1, 1]} : vector<16x128xf32> to vector<1x128xf32>
    %214 = arith.truncf %187 : vector<1x32xf32> to vector<1x32xbf16>
    %c0_82 = arith.constant 0 : index
    %c0_83 = arith.constant 0 : index
    %215 = vector.load %arg11[%c0_82, %c0_83] : memref<32x128xbf16, #tpu.memory_space<vmem>>, vector<32x128xbf16>
    %cst_84 = arith.constant dense<0.000000e+00> : vector<1x128xf32>
    %216 = tpu.matmul %214, %215, %cst_84 {dimension_numbers = #tpu.dot_dimension_numbers<[1], [0], [0], [1], [0, 0, 1, 1], [], []>} : vector<1x32xbf16>, vector<32x128xbf16>, vector<1x128xf32> -> vector<1x128xf32>
    %217 = arith.addf %213, %216 : vector<1x128xf32>
    %218 = vector.extract_strided_slice %217 {offsets = [0, 0], sizes = [1, 96], strides = [1, 1]} : vector<1x128xf32> to vector<1x96xf32>
    %219 = arith.negf %218 : vector<1x96xf32>
    %220 = math.exp %219 : vector<1x96xf32>
    %cst_85 = arith.constant 1.000000e+00 : f32
    %221 = vector.broadcast %cst_85 : f32 to vector<1x96xf32>
    %222 = arith.addf %221, %220 : vector<1x96xf32>
    %223 = arith.divf %221, %222 : vector<1x96xf32>
    %224 = vector.extract_strided_slice %223 {offsets = [0, 0], sizes = [1, 32], strides = [1, 1]} : vector<1x96xf32> to vector<1x32xf32>
    %225 = vector.extract_strided_slice %223 {offsets = [0, 32], sizes = [1, 32], strides = [1, 1]} : vector<1x96xf32> to vector<1x32xf32>
    %226 = vector.extract_strided_slice %223 {offsets = [0, 64], sizes = [1, 32], strides = [1, 1]} : vector<1x96xf32> to vector<1x32xf32>
    %227 = vector.extract_strided_slice %217 {offsets = [0, 96], sizes = [1, 32], strides = [1, 1]} : vector<1x128xf32> to vector<1x32xf32>
    %228 = math.tanh %227 : vector<1x32xf32>
    %229 = arith.mulf %225, %185 : vector<1x32xf32>
    %230 = arith.mulf %224, %228 : vector<1x32xf32>
    %231 = arith.addf %229, %230 : vector<1x32xf32>
    %232 = math.tanh %231 : vector<1x32xf32>
    %233 = arith.mulf %226, %232 : vector<1x32xf32>
    %234 = arith.truncf %233 : vector<1x32xf32> to vector<1x32xbf16>
    %c0_86 = arith.constant 0 : index
    %c0_87 = arith.constant 0 : index
    %235 = vector.load %arg13[%c0_86, %c0_87] : memref<32x128xbf16, #tpu.memory_space<vmem>>, vector<32x128xbf16>
    %cst_88 = arith.constant dense<0.000000e+00> : vector<1x128xf32>
    %236 = tpu.matmul %234, %235, %cst_88 {dimension_numbers = #tpu.dot_dimension_numbers<[1], [0], [0], [1], [0, 0, 1, 1], [], []>} : vector<1x32xbf16>, vector<32x128xbf16>, vector<1x128xf32> -> vector<1x128xf32>
    %c0_89 = arith.constant 0 : index
    %c0_90 = arith.constant 0 : index
    %237 = vector.load %arg15[%c0_89, %c0_90] : memref<1x128xf32, #tpu.memory_space<vmem>>, vector<1x128xf32>
    %238 = arith.addf %236, %237 : vector<1x128xf32>
    %239 = arith.truncf %212 : vector<1x32xf32> to vector<1x32xbf16>
    %c0_91 = arith.constant 0 : index
    %c0_92 = arith.constant 0 : index
    %240 = vector.load %arg14[%c0_91, %c0_92] : memref<32x128xbf16, #tpu.memory_space<vmem>>, vector<32x128xbf16>
    %cst_93 = arith.constant dense<0.000000e+00> : vector<1x128xf32>
    %241 = tpu.matmul %239, %240, %cst_93 {dimension_numbers = #tpu.dot_dimension_numbers<[1], [0], [0], [1], [0, 0, 1, 1], [], []>} : vector<1x32xbf16>, vector<32x128xbf16>, vector<1x128xf32> -> vector<1x128xf32>
    %242 = arith.addf %238, %241 : vector<1x128xf32>
    %243 = vector.extract_strided_slice %242 {offsets = [0, 0], sizes = [1, 96], strides = [1, 1]} : vector<1x128xf32> to vector<1x96xf32>
    %244 = arith.negf %243 : vector<1x96xf32>
    %245 = math.exp %244 : vector<1x96xf32>
    %cst_94 = arith.constant 1.000000e+00 : f32
    %246 = vector.broadcast %cst_94 : f32 to vector<1x96xf32>
    %247 = arith.addf %246, %245 : vector<1x96xf32>
    %248 = arith.divf %246, %247 : vector<1x96xf32>
    %249 = vector.extract_strided_slice %248 {offsets = [0, 0], sizes = [1, 32], strides = [1, 1]} : vector<1x96xf32> to vector<1x32xf32>
    %250 = vector.extract_strided_slice %248 {offsets = [0, 32], sizes = [1, 32], strides = [1, 1]} : vector<1x96xf32> to vector<1x32xf32>
    %251 = vector.extract_strided_slice %248 {offsets = [0, 64], sizes = [1, 32], strides = [1, 1]} : vector<1x96xf32> to vector<1x32xf32>
    %252 = vector.extract_strided_slice %242 {offsets = [0, 96], sizes = [1, 32], strides = [1, 1]} : vector<1x128xf32> to vector<1x32xf32>
    %253 = math.tanh %252 : vector<1x32xf32>
    %254 = arith.mulf %250, %210 : vector<1x32xf32>
    %255 = arith.mulf %249, %253 : vector<1x32xf32>
    %256 = arith.addf %254, %255 : vector<1x32xf32>
    %257 = math.tanh %256 : vector<1x32xf32>
    %258 = arith.mulf %251, %257 : vector<1x32xf32>
    %259 = vector.extract_strided_slice %70 {offsets = [4, 0], sizes = [1, 128], strides = [1, 1]} : vector<16x128xf32> to vector<1x128xf32>
    %260 = arith.truncf %233 : vector<1x32xf32> to vector<1x32xbf16>
    %c0_95 = arith.constant 0 : index
    %c0_96 = arith.constant 0 : index
    %261 = vector.load %arg11[%c0_95, %c0_96] : memref<32x128xbf16, #tpu.memory_space<vmem>>, vector<32x128xbf16>
    %cst_97 = arith.constant dense<0.000000e+00> : vector<1x128xf32>
    %262 = tpu.matmul %260, %261, %cst_97 {dimension_numbers = #tpu.dot_dimension_numbers<[1], [0], [0], [1], [0, 0, 1, 1], [], []>} : vector<1x32xbf16>, vector<32x128xbf16>, vector<1x128xf32> -> vector<1x128xf32>
    %263 = arith.addf %259, %262 : vector<1x128xf32>
    %264 = vector.extract_strided_slice %263 {offsets = [0, 0], sizes = [1, 96], strides = [1, 1]} : vector<1x128xf32> to vector<1x96xf32>
    %265 = arith.negf %264 : vector<1x96xf32>
    %266 = math.exp %265 : vector<1x96xf32>
    %cst_98 = arith.constant 1.000000e+00 : f32
    %267 = vector.broadcast %cst_98 : f32 to vector<1x96xf32>
    %268 = arith.addf %267, %266 : vector<1x96xf32>
    %269 = arith.divf %267, %268 : vector<1x96xf32>
    %270 = vector.extract_strided_slice %269 {offsets = [0, 0], sizes = [1, 32], strides = [1, 1]} : vector<1x96xf32> to vector<1x32xf32>
    %271 = vector.extract_strided_slice %269 {offsets = [0, 32], sizes = [1, 32], strides = [1, 1]} : vector<1x96xf32> to vector<1x32xf32>
    %272 = vector.extract_strided_slice %269 {offsets = [0, 64], sizes = [1, 32], strides = [1, 1]} : vector<1x96xf32> to vector<1x32xf32>
    %273 = vector.extract_strided_slice %263 {offsets = [0, 96], sizes = [1, 32], strides = [1, 1]} : vector<1x128xf32> to vector<1x32xf32>
    %274 = math.tanh %273 : vector<1x32xf32>
    %275 = arith.mulf %271, %231 : vector<1x32xf32>
    %276 = arith.mulf %270, %274 : vector<1x32xf32>
    %277 = arith.addf %275, %276 : vector<1x32xf32>
    %278 = math.tanh %277 : vector<1x32xf32>
    %279 = arith.mulf %272, %278 : vector<1x32xf32>
    %280 = arith.truncf %279 : vector<1x32xf32> to vector<1x32xbf16>
    %c0_99 = arith.constant 0 : index
    %c0_100 = arith.constant 0 : index
    %281 = vector.load %arg13[%c0_99, %c0_100] : memref<32x128xbf16, #tpu.memory_space<vmem>>, vector<32x128xbf16>
    %cst_101 = arith.constant dense<0.000000e+00> : vector<1x128xf32>
    %282 = tpu.matmul %280, %281, %cst_101 {dimension_numbers = #tpu.dot_dimension_numbers<[1], [0], [0], [1], [0, 0, 1, 1], [], []>} : vector<1x32xbf16>, vector<32x128xbf16>, vector<1x128xf32> -> vector<1x128xf32>
    %c0_102 = arith.constant 0 : index
    %c0_103 = arith.constant 0 : index
    %283 = vector.load %arg15[%c0_102, %c0_103] : memref<1x128xf32, #tpu.memory_space<vmem>>, vector<1x128xf32>
    %284 = arith.addf %282, %283 : vector<1x128xf32>
    %285 = arith.truncf %258 : vector<1x32xf32> to vector<1x32xbf16>
    %c0_104 = arith.constant 0 : index
    %c0_105 = arith.constant 0 : index
    %286 = vector.load %arg14[%c0_104, %c0_105] : memref<32x128xbf16, #tpu.memory_space<vmem>>, vector<32x128xbf16>
    %cst_106 = arith.constant dense<0.000000e+00> : vector<1x128xf32>
    %287 = tpu.matmul %285, %286, %cst_106 {dimension_numbers = #tpu.dot_dimension_numbers<[1], [0], [0], [1], [0, 0, 1, 1], [], []>} : vector<1x32xbf16>, vector<32x128xbf16>, vector<1x128xf32> -> vector<1x128xf32>
    %288 = arith.addf %284, %287 : vector<1x128xf32>
    %289 = vector.extract_strided_slice %288 {offsets = [0, 0], sizes = [1, 96], strides = [1, 1]} : vector<1x128xf32> to vector<1x96xf32>
    %290 = arith.negf %289 : vector<1x96xf32>
    %291 = math.exp %290 : vector<1x96xf32>
    %cst_107 = arith.constant 1.000000e+00 : f32
    %292 = vector.broadcast %cst_107 : f32 to vector<1x96xf32>
    %293 = arith.addf %292, %291 : vector<1x96xf32>
    %294 = arith.divf %292, %293 : vector<1x96xf32>
    %295 = vector.extract_strided_slice %294 {offsets = [0, 0], sizes = [1, 32], strides = [1, 1]} : vector<1x96xf32> to vector<1x32xf32>
    %296 = vector.extract_strided_slice %294 {offsets = [0, 32], sizes = [1, 32], strides = [1, 1]} : vector<1x96xf32> to vector<1x32xf32>
    %297 = vector.extract_strided_slice %294 {offsets = [0, 64], sizes = [1, 32], strides = [1, 1]} : vector<1x96xf32> to vector<1x32xf32>
    %298 = vector.extract_strided_slice %288 {offsets = [0, 96], sizes = [1, 32], strides = [1, 1]} : vector<1x128xf32> to vector<1x32xf32>
    %299 = math.tanh %298 : vector<1x32xf32>
    %300 = arith.mulf %296, %256 : vector<1x32xf32>
    %301 = arith.mulf %295, %299 : vector<1x32xf32>
    %302 = arith.addf %300, %301 : vector<1x32xf32>
    %303 = math.tanh %302 : vector<1x32xf32>
    %304 = arith.mulf %297, %303 : vector<1x32xf32>
    %305 = vector.extract_strided_slice %70 {offsets = [5, 0], sizes = [1, 128], strides = [1, 1]} : vector<16x128xf32> to vector<1x128xf32>
    %306 = arith.truncf %279 : vector<1x32xf32> to vector<1x32xbf16>
    %c0_108 = arith.constant 0 : index
    %c0_109 = arith.constant 0 : index
    %307 = vector.load %arg11[%c0_108, %c0_109] : memref<32x128xbf16, #tpu.memory_space<vmem>>, vector<32x128xbf16>
    %cst_110 = arith.constant dense<0.000000e+00> : vector<1x128xf32>
    %308 = tpu.matmul %306, %307, %cst_110 {dimension_numbers = #tpu.dot_dimension_numbers<[1], [0], [0], [1], [0, 0, 1, 1], [], []>} : vector<1x32xbf16>, vector<32x128xbf16>, vector<1x128xf32> -> vector<1x128xf32>
    %309 = arith.addf %305, %308 : vector<1x128xf32>
    %310 = vector.extract_strided_slice %309 {offsets = [0, 0], sizes = [1, 96], strides = [1, 1]} : vector<1x128xf32> to vector<1x96xf32>
    %311 = arith.negf %310 : vector<1x96xf32>
    %312 = math.exp %311 : vector<1x96xf32>
    %cst_111 = arith.constant 1.000000e+00 : f32
    %313 = vector.broadcast %cst_111 : f32 to vector<1x96xf32>
    %314 = arith.addf %313, %312 : vector<1x96xf32>
    %315 = arith.divf %313, %314 : vector<1x96xf32>
    %316 = vector.extract_strided_slice %315 {offsets = [0, 0], sizes = [1, 32], strides = [1, 1]} : vector<1x96xf32> to vector<1x32xf32>
    %317 = vector.extract_strided_slice %315 {offsets = [0, 32], sizes = [1, 32], strides = [1, 1]} : vector<1x96xf32> to vector<1x32xf32>
    %318 = vector.extract_strided_slice %315 {offsets = [0, 64], sizes = [1, 32], strides = [1, 1]} : vector<1x96xf32> to vector<1x32xf32>
    %319 = vector.extract_strided_slice %309 {offsets = [0, 96], sizes = [1, 32], strides = [1, 1]} : vector<1x128xf32> to vector<1x32xf32>
    %320 = math.tanh %319 : vector<1x32xf32>
    %321 = arith.mulf %317, %277 : vector<1x32xf32>
    %322 = arith.mulf %316, %320 : vector<1x32xf32>
    %323 = arith.addf %321, %322 : vector<1x32xf32>
    %324 = math.tanh %323 : vector<1x32xf32>
    %325 = arith.mulf %318, %324 : vector<1x32xf32>
    %326 = arith.truncf %325 : vector<1x32xf32> to vector<1x32xbf16>
    %c0_112 = arith.constant 0 : index
    %c0_113 = arith.constant 0 : index
    %327 = vector.load %arg13[%c0_112, %c0_113] : memref<32x128xbf16, #tpu.memory_space<vmem>>, vector<32x128xbf16>
    %cst_114 = arith.constant dense<0.000000e+00> : vector<1x128xf32>
    %328 = tpu.matmul %326, %327, %cst_114 {dimension_numbers = #tpu.dot_dimension_numbers<[1], [0], [0], [1], [0, 0, 1, 1], [], []>} : vector<1x32xbf16>, vector<32x128xbf16>, vector<1x128xf32> -> vector<1x128xf32>
    %c0_115 = arith.constant 0 : index
    %c0_116 = arith.constant 0 : index
    %329 = vector.load %arg15[%c0_115, %c0_116] : memref<1x128xf32, #tpu.memory_space<vmem>>, vector<1x128xf32>
    %330 = arith.addf %328, %329 : vector<1x128xf32>
    %331 = arith.truncf %304 : vector<1x32xf32> to vector<1x32xbf16>
    %c0_117 = arith.constant 0 : index
    %c0_118 = arith.constant 0 : index
    %332 = vector.load %arg14[%c0_117, %c0_118] : memref<32x128xbf16, #tpu.memory_space<vmem>>, vector<32x128xbf16>
    %cst_119 = arith.constant dense<0.000000e+00> : vector<1x128xf32>
    %333 = tpu.matmul %331, %332, %cst_119 {dimension_numbers = #tpu.dot_dimension_numbers<[1], [0], [0], [1], [0, 0, 1, 1], [], []>} : vector<1x32xbf16>, vector<32x128xbf16>, vector<1x128xf32> -> vector<1x128xf32>
    %334 = arith.addf %330, %333 : vector<1x128xf32>
    %335 = vector.extract_strided_slice %334 {offsets = [0, 0], sizes = [1, 96], strides = [1, 1]} : vector<1x128xf32> to vector<1x96xf32>
    %336 = arith.negf %335 : vector<1x96xf32>
    %337 = math.exp %336 : vector<1x96xf32>
    %cst_120 = arith.constant 1.000000e+00 : f32
    %338 = vector.broadcast %cst_120 : f32 to vector<1x96xf32>
    %339 = arith.addf %338, %337 : vector<1x96xf32>
    %340 = arith.divf %338, %339 : vector<1x96xf32>
    %341 = vector.extract_strided_slice %340 {offsets = [0, 0], sizes = [1, 32], strides = [1, 1]} : vector<1x96xf32> to vector<1x32xf32>
    %342 = vector.extract_strided_slice %340 {offsets = [0, 32], sizes = [1, 32], strides = [1, 1]} : vector<1x96xf32> to vector<1x32xf32>
    %343 = vector.extract_strided_slice %340 {offsets = [0, 64], sizes = [1, 32], strides = [1, 1]} : vector<1x96xf32> to vector<1x32xf32>
    %344 = vector.extract_strided_slice %334 {offsets = [0, 96], sizes = [1, 32], strides = [1, 1]} : vector<1x128xf32> to vector<1x32xf32>
    %345 = math.tanh %344 : vector<1x32xf32>
    %346 = arith.mulf %342, %302 : vector<1x32xf32>
    %347 = arith.mulf %341, %345 : vector<1x32xf32>
    %348 = arith.addf %346, %347 : vector<1x32xf32>
    %349 = math.tanh %348 : vector<1x32xf32>
    %350 = arith.mulf %343, %349 : vector<1x32xf32>
    %351 = vector.extract_strided_slice %70 {offsets = [6, 0], sizes = [1, 128], strides = [1, 1]} : vector<16x128xf32> to vector<1x128xf32>
    %352 = arith.truncf %325 : vector<1x32xf32> to vector<1x32xbf16>
    %c0_121 = arith.constant 0 : index
    %c0_122 = arith.constant 0 : index
    %353 = vector.load %arg11[%c0_121, %c0_122] : memref<32x128xbf16, #tpu.memory_space<vmem>>, vector<32x128xbf16>
    %cst_123 = arith.constant dense<0.000000e+00> : vector<1x128xf32>
    %354 = tpu.matmul %352, %353, %cst_123 {dimension_numbers = #tpu.dot_dimension_numbers<[1], [0], [0], [1], [0, 0, 1, 1], [], []>} : vector<1x32xbf16>, vector<32x128xbf16>, vector<1x128xf32> -> vector<1x128xf32>
    %355 = arith.addf %351, %354 : vector<1x128xf32>
    %356 = vector.extract_strided_slice %355 {offsets = [0, 0], sizes = [1, 96], strides = [1, 1]} : vector<1x128xf32> to vector<1x96xf32>
    %357 = arith.negf %356 : vector<1x96xf32>
    %358 = math.exp %357 : vector<1x96xf32>
    %cst_124 = arith.constant 1.000000e+00 : f32
    %359 = vector.broadcast %cst_124 : f32 to vector<1x96xf32>
    %360 = arith.addf %359, %358 : vector<1x96xf32>
    %361 = arith.divf %359, %360 : vector<1x96xf32>
    %362 = vector.extract_strided_slice %361 {offsets = [0, 0], sizes = [1, 32], strides = [1, 1]} : vector<1x96xf32> to vector<1x32xf32>
    %363 = vector.extract_strided_slice %361 {offsets = [0, 32], sizes = [1, 32], strides = [1, 1]} : vector<1x96xf32> to vector<1x32xf32>
    %364 = vector.extract_strided_slice %361 {offsets = [0, 64], sizes = [1, 32], strides = [1, 1]} : vector<1x96xf32> to vector<1x32xf32>
    %365 = vector.extract_strided_slice %355 {offsets = [0, 96], sizes = [1, 32], strides = [1, 1]} : vector<1x128xf32> to vector<1x32xf32>
    %366 = math.tanh %365 : vector<1x32xf32>
    %367 = arith.mulf %363, %323 : vector<1x32xf32>
    %368 = arith.mulf %362, %366 : vector<1x32xf32>
    %369 = arith.addf %367, %368 : vector<1x32xf32>
    %370 = math.tanh %369 : vector<1x32xf32>
    %371 = arith.mulf %364, %370 : vector<1x32xf32>
    %372 = arith.truncf %371 : vector<1x32xf32> to vector<1x32xbf16>
    %c0_125 = arith.constant 0 : index
    %c0_126 = arith.constant 0 : index
    %373 = vector.load %arg13[%c0_125, %c0_126] : memref<32x128xbf16, #tpu.memory_space<vmem>>, vector<32x128xbf16>
    %cst_127 = arith.constant dense<0.000000e+00> : vector<1x128xf32>
    %374 = tpu.matmul %372, %373, %cst_127 {dimension_numbers = #tpu.dot_dimension_numbers<[1], [0], [0], [1], [0, 0, 1, 1], [], []>} : vector<1x32xbf16>, vector<32x128xbf16>, vector<1x128xf32> -> vector<1x128xf32>
    %c0_128 = arith.constant 0 : index
    %c0_129 = arith.constant 0 : index
    %375 = vector.load %arg15[%c0_128, %c0_129] : memref<1x128xf32, #tpu.memory_space<vmem>>, vector<1x128xf32>
    %376 = arith.addf %374, %375 : vector<1x128xf32>
    %377 = arith.truncf %350 : vector<1x32xf32> to vector<1x32xbf16>
    %c0_130 = arith.constant 0 : index
    %c0_131 = arith.constant 0 : index
    %378 = vector.load %arg14[%c0_130, %c0_131] : memref<32x128xbf16, #tpu.memory_space<vmem>>, vector<32x128xbf16>
    %cst_132 = arith.constant dense<0.000000e+00> : vector<1x128xf32>
    %379 = tpu.matmul %377, %378, %cst_132 {dimension_numbers = #tpu.dot_dimension_numbers<[1], [0], [0], [1], [0, 0, 1, 1], [], []>} : vector<1x32xbf16>, vector<32x128xbf16>, vector<1x128xf32> -> vector<1x128xf32>
    %380 = arith.addf %376, %379 : vector<1x128xf32>
    %381 = vector.extract_strided_slice %380 {offsets = [0, 0], sizes = [1, 96], strides = [1, 1]} : vector<1x128xf32> to vector<1x96xf32>
    %382 = arith.negf %381 : vector<1x96xf32>
    %383 = math.exp %382 : vector<1x96xf32>
    %cst_133 = arith.constant 1.000000e+00 : f32
    %384 = vector.broadcast %cst_133 : f32 to vector<1x96xf32>
    %385 = arith.addf %384, %383 : vector<1x96xf32>
    %386 = arith.divf %384, %385 : vector<1x96xf32>
    %387 = vector.extract_strided_slice %386 {offsets = [0, 0], sizes = [1, 32], strides = [1, 1]} : vector<1x96xf32> to vector<1x32xf32>
    %388 = vector.extract_strided_slice %386 {offsets = [0, 32], sizes = [1, 32], strides = [1, 1]} : vector<1x96xf32> to vector<1x32xf32>
    %389 = vector.extract_strided_slice %386 {offsets = [0, 64], sizes = [1, 32], strides = [1, 1]} : vector<1x96xf32> to vector<1x32xf32>
    %390 = vector.extract_strided_slice %380 {offsets = [0, 96], sizes = [1, 32], strides = [1, 1]} : vector<1x128xf32> to vector<1x32xf32>
    %391 = math.tanh %390 : vector<1x32xf32>
    %392 = arith.mulf %388, %348 : vector<1x32xf32>
    %393 = arith.mulf %387, %391 : vector<1x32xf32>
    %394 = arith.addf %392, %393 : vector<1x32xf32>
    %395 = math.tanh %394 : vector<1x32xf32>
    %396 = arith.mulf %389, %395 : vector<1x32xf32>
    %397 = vector.extract_strided_slice %70 {offsets = [7, 0], sizes = [1, 128], strides = [1, 1]} : vector<16x128xf32> to vector<1x128xf32>
    %398 = arith.truncf %371 : vector<1x32xf32> to vector<1x32xbf16>
    %c0_134 = arith.constant 0 : index
    %c0_135 = arith.constant 0 : index
    %399 = vector.load %arg11[%c0_134, %c0_135] : memref<32x128xbf16, #tpu.memory_space<vmem>>, vector<32x128xbf16>
    %cst_136 = arith.constant dense<0.000000e+00> : vector<1x128xf32>
    %400 = tpu.matmul %398, %399, %cst_136 {dimension_numbers = #tpu.dot_dimension_numbers<[1], [0], [0], [1], [0, 0, 1, 1], [], []>} : vector<1x32xbf16>, vector<32x128xbf16>, vector<1x128xf32> -> vector<1x128xf32>
    %401 = arith.addf %397, %400 : vector<1x128xf32>
    %402 = vector.extract_strided_slice %401 {offsets = [0, 0], sizes = [1, 96], strides = [1, 1]} : vector<1x128xf32> to vector<1x96xf32>
    %403 = arith.negf %402 : vector<1x96xf32>
    %404 = math.exp %403 : vector<1x96xf32>
    %cst_137 = arith.constant 1.000000e+00 : f32
    %405 = vector.broadcast %cst_137 : f32 to vector<1x96xf32>
    %406 = arith.addf %405, %404 : vector<1x96xf32>
    %407 = arith.divf %405, %406 : vector<1x96xf32>
    %408 = vector.extract_strided_slice %407 {offsets = [0, 0], sizes = [1, 32], strides = [1, 1]} : vector<1x96xf32> to vector<1x32xf32>
    %409 = vector.extract_strided_slice %407 {offsets = [0, 32], sizes = [1, 32], strides = [1, 1]} : vector<1x96xf32> to vector<1x32xf32>
    %410 = vector.extract_strided_slice %407 {offsets = [0, 64], sizes = [1, 32], strides = [1, 1]} : vector<1x96xf32> to vector<1x32xf32>
    %411 = vector.extract_strided_slice %401 {offsets = [0, 96], sizes = [1, 32], strides = [1, 1]} : vector<1x128xf32> to vector<1x32xf32>
    %412 = math.tanh %411 : vector<1x32xf32>
    %413 = arith.mulf %409, %369 : vector<1x32xf32>
    %414 = arith.mulf %408, %412 : vector<1x32xf32>
    %415 = arith.addf %413, %414 : vector<1x32xf32>
    %416 = math.tanh %415 : vector<1x32xf32>
    %417 = arith.mulf %410, %416 : vector<1x32xf32>
    %418 = arith.truncf %417 : vector<1x32xf32> to vector<1x32xbf16>
    %c0_138 = arith.constant 0 : index
    %c0_139 = arith.constant 0 : index
    %419 = vector.load %arg13[%c0_138, %c0_139] : memref<32x128xbf16, #tpu.memory_space<vmem>>, vector<32x128xbf16>
    %cst_140 = arith.constant dense<0.000000e+00> : vector<1x128xf32>
    %420 = tpu.matmul %418, %419, %cst_140 {dimension_numbers = #tpu.dot_dimension_numbers<[1], [0], [0], [1], [0, 0, 1, 1], [], []>} : vector<1x32xbf16>, vector<32x128xbf16>, vector<1x128xf32> -> vector<1x128xf32>
    %c0_141 = arith.constant 0 : index
    %c0_142 = arith.constant 0 : index
    %421 = vector.load %arg15[%c0_141, %c0_142] : memref<1x128xf32, #tpu.memory_space<vmem>>, vector<1x128xf32>
    %422 = arith.addf %420, %421 : vector<1x128xf32>
    %423 = arith.truncf %396 : vector<1x32xf32> to vector<1x32xbf16>
    %c0_143 = arith.constant 0 : index
    %c0_144 = arith.constant 0 : index
    %424 = vector.load %arg14[%c0_143, %c0_144] : memref<32x128xbf16, #tpu.memory_space<vmem>>, vector<32x128xbf16>
    %cst_145 = arith.constant dense<0.000000e+00> : vector<1x128xf32>
    %425 = tpu.matmul %423, %424, %cst_145 {dimension_numbers = #tpu.dot_dimension_numbers<[1], [0], [0], [1], [0, 0, 1, 1], [], []>} : vector<1x32xbf16>, vector<32x128xbf16>, vector<1x128xf32> -> vector<1x128xf32>
    %426 = arith.addf %422, %425 : vector<1x128xf32>
    %427 = vector.extract_strided_slice %426 {offsets = [0, 0], sizes = [1, 96], strides = [1, 1]} : vector<1x128xf32> to vector<1x96xf32>
    %428 = arith.negf %427 : vector<1x96xf32>
    %429 = math.exp %428 : vector<1x96xf32>
    %cst_146 = arith.constant 1.000000e+00 : f32
    %430 = vector.broadcast %cst_146 : f32 to vector<1x96xf32>
    %431 = arith.addf %430, %429 : vector<1x96xf32>
    %432 = arith.divf %430, %431 : vector<1x96xf32>
    %433 = vector.extract_strided_slice %432 {offsets = [0, 0], sizes = [1, 32], strides = [1, 1]} : vector<1x96xf32> to vector<1x32xf32>
    %434 = vector.extract_strided_slice %432 {offsets = [0, 32], sizes = [1, 32], strides = [1, 1]} : vector<1x96xf32> to vector<1x32xf32>
    %435 = vector.extract_strided_slice %432 {offsets = [0, 64], sizes = [1, 32], strides = [1, 1]} : vector<1x96xf32> to vector<1x32xf32>
    %436 = vector.extract_strided_slice %426 {offsets = [0, 96], sizes = [1, 32], strides = [1, 1]} : vector<1x128xf32> to vector<1x32xf32>
    %437 = math.tanh %436 : vector<1x32xf32>
    %438 = arith.mulf %434, %394 : vector<1x32xf32>
    %439 = arith.mulf %433, %437 : vector<1x32xf32>
    %440 = arith.addf %438, %439 : vector<1x32xf32>
    %441 = math.tanh %440 : vector<1x32xf32>
    %442 = arith.mulf %435, %441 : vector<1x32xf32>
    %443 = vector.extract_strided_slice %70 {offsets = [8, 0], sizes = [1, 128], strides = [1, 1]} : vector<16x128xf32> to vector<1x128xf32>
    %444 = arith.truncf %417 : vector<1x32xf32> to vector<1x32xbf16>
    %c0_147 = arith.constant 0 : index
    %c0_148 = arith.constant 0 : index
    %445 = vector.load %arg11[%c0_147, %c0_148] : memref<32x128xbf16, #tpu.memory_space<vmem>>, vector<32x128xbf16>
    %cst_149 = arith.constant dense<0.000000e+00> : vector<1x128xf32>
    %446 = tpu.matmul %444, %445, %cst_149 {dimension_numbers = #tpu.dot_dimension_numbers<[1], [0], [0], [1], [0, 0, 1, 1], [], []>} : vector<1x32xbf16>, vector<32x128xbf16>, vector<1x128xf32> -> vector<1x128xf32>
    %447 = arith.addf %443, %446 : vector<1x128xf32>
    %448 = vector.extract_strided_slice %447 {offsets = [0, 0], sizes = [1, 96], strides = [1, 1]} : vector<1x128xf32> to vector<1x96xf32>
    %449 = arith.negf %448 : vector<1x96xf32>
    %450 = math.exp %449 : vector<1x96xf32>
    %cst_150 = arith.constant 1.000000e+00 : f32
    %451 = vector.broadcast %cst_150 : f32 to vector<1x96xf32>
    %452 = arith.addf %451, %450 : vector<1x96xf32>
    %453 = arith.divf %451, %452 : vector<1x96xf32>
    %454 = vector.extract_strided_slice %453 {offsets = [0, 0], sizes = [1, 32], strides = [1, 1]} : vector<1x96xf32> to vector<1x32xf32>
    %455 = vector.extract_strided_slice %453 {offsets = [0, 32], sizes = [1, 32], strides = [1, 1]} : vector<1x96xf32> to vector<1x32xf32>
    %456 = vector.extract_strided_slice %453 {offsets = [0, 64], sizes = [1, 32], strides = [1, 1]} : vector<1x96xf32> to vector<1x32xf32>
    %457 = vector.extract_strided_slice %447 {offsets = [0, 96], sizes = [1, 32], strides = [1, 1]} : vector<1x128xf32> to vector<1x32xf32>
    %458 = math.tanh %457 : vector<1x32xf32>
    %459 = arith.mulf %455, %415 : vector<1x32xf32>
    %460 = arith.mulf %454, %458 : vector<1x32xf32>
    %461 = arith.addf %459, %460 : vector<1x32xf32>
    %462 = math.tanh %461 : vector<1x32xf32>
    %463 = arith.mulf %456, %462 : vector<1x32xf32>
    %464 = arith.truncf %463 : vector<1x32xf32> to vector<1x32xbf16>
    %c0_151 = arith.constant 0 : index
    %c0_152 = arith.constant 0 : index
    %465 = vector.load %arg13[%c0_151, %c0_152] : memref<32x128xbf16, #tpu.memory_space<vmem>>, vector<32x128xbf16>
    %cst_153 = arith.constant dense<0.000000e+00> : vector<1x128xf32>
    %466 = tpu.matmul %464, %465, %cst_153 {dimension_numbers = #tpu.dot_dimension_numbers<[1], [0], [0], [1], [0, 0, 1, 1], [], []>} : vector<1x32xbf16>, vector<32x128xbf16>, vector<1x128xf32> -> vector<1x128xf32>
    %c0_154 = arith.constant 0 : index
    %c0_155 = arith.constant 0 : index
    %467 = vector.load %arg15[%c0_154, %c0_155] : memref<1x128xf32, #tpu.memory_space<vmem>>, vector<1x128xf32>
    %468 = arith.addf %466, %467 : vector<1x128xf32>
    %469 = arith.truncf %442 : vector<1x32xf32> to vector<1x32xbf16>
    %c0_156 = arith.constant 0 : index
    %c0_157 = arith.constant 0 : index
    %470 = vector.load %arg14[%c0_156, %c0_157] : memref<32x128xbf16, #tpu.memory_space<vmem>>, vector<32x128xbf16>
    %cst_158 = arith.constant dense<0.000000e+00> : vector<1x128xf32>
    %471 = tpu.matmul %469, %470, %cst_158 {dimension_numbers = #tpu.dot_dimension_numbers<[1], [0], [0], [1], [0, 0, 1, 1], [], []>} : vector<1x32xbf16>, vector<32x128xbf16>, vector<1x128xf32> -> vector<1x128xf32>
    %472 = arith.addf %468, %471 : vector<1x128xf32>
    %473 = vector.extract_strided_slice %472 {offsets = [0, 0], sizes = [1, 96], strides = [1, 1]} : vector<1x128xf32> to vector<1x96xf32>
    %474 = arith.negf %473 : vector<1x96xf32>
    %475 = math.exp %474 : vector<1x96xf32>
    %cst_159 = arith.constant 1.000000e+00 : f32
    %476 = vector.broadcast %cst_159 : f32 to vector<1x96xf32>
    %477 = arith.addf %476, %475 : vector<1x96xf32>
    %478 = arith.divf %476, %477 : vector<1x96xf32>
    %479 = vector.extract_strided_slice %478 {offsets = [0, 0], sizes = [1, 32], strides = [1, 1]} : vector<1x96xf32> to vector<1x32xf32>
    %480 = vector.extract_strided_slice %478 {offsets = [0, 32], sizes = [1, 32], strides = [1, 1]} : vector<1x96xf32> to vector<1x32xf32>
    %481 = vector.extract_strided_slice %478 {offsets = [0, 64], sizes = [1, 32], strides = [1, 1]} : vector<1x96xf32> to vector<1x32xf32>
    %482 = vector.extract_strided_slice %472 {offsets = [0, 96], sizes = [1, 32], strides = [1, 1]} : vector<1x128xf32> to vector<1x32xf32>
    %483 = math.tanh %482 : vector<1x32xf32>
    %484 = arith.mulf %480, %440 : vector<1x32xf32>
    %485 = arith.mulf %479, %483 : vector<1x32xf32>
    %486 = arith.addf %484, %485 : vector<1x32xf32>
    %487 = math.tanh %486 : vector<1x32xf32>
    %488 = arith.mulf %481, %487 : vector<1x32xf32>
    %489 = vector.extract_strided_slice %70 {offsets = [9, 0], sizes = [1, 128], strides = [1, 1]} : vector<16x128xf32> to vector<1x128xf32>
    %490 = arith.truncf %463 : vector<1x32xf32> to vector<1x32xbf16>
    %c0_160 = arith.constant 0 : index
    %c0_161 = arith.constant 0 : index
    %491 = vector.load %arg11[%c0_160, %c0_161] : memref<32x128xbf16, #tpu.memory_space<vmem>>, vector<32x128xbf16>
    %cst_162 = arith.constant dense<0.000000e+00> : vector<1x128xf32>
    %492 = tpu.matmul %490, %491, %cst_162 {dimension_numbers = #tpu.dot_dimension_numbers<[1], [0], [0], [1], [0, 0, 1, 1], [], []>} : vector<1x32xbf16>, vector<32x128xbf16>, vector<1x128xf32> -> vector<1x128xf32>
    %493 = arith.addf %489, %492 : vector<1x128xf32>
    %494 = vector.extract_strided_slice %493 {offsets = [0, 0], sizes = [1, 96], strides = [1, 1]} : vector<1x128xf32> to vector<1x96xf32>
    %495 = arith.negf %494 : vector<1x96xf32>
    %496 = math.exp %495 : vector<1x96xf32>
    %cst_163 = arith.constant 1.000000e+00 : f32
    %497 = vector.broadcast %cst_163 : f32 to vector<1x96xf32>
    %498 = arith.addf %497, %496 : vector<1x96xf32>
    %499 = arith.divf %497, %498 : vector<1x96xf32>
    %500 = vector.extract_strided_slice %499 {offsets = [0, 0], sizes = [1, 32], strides = [1, 1]} : vector<1x96xf32> to vector<1x32xf32>
    %501 = vector.extract_strided_slice %499 {offsets = [0, 32], sizes = [1, 32], strides = [1, 1]} : vector<1x96xf32> to vector<1x32xf32>
    %502 = vector.extract_strided_slice %499 {offsets = [0, 64], sizes = [1, 32], strides = [1, 1]} : vector<1x96xf32> to vector<1x32xf32>
    %503 = vector.extract_strided_slice %493 {offsets = [0, 96], sizes = [1, 32], strides = [1, 1]} : vector<1x128xf32> to vector<1x32xf32>
    %504 = math.tanh %503 : vector<1x32xf32>
    %505 = arith.mulf %501, %461 : vector<1x32xf32>
    %506 = arith.mulf %500, %504 : vector<1x32xf32>
    %507 = arith.addf %505, %506 : vector<1x32xf32>
    %508 = math.tanh %507 : vector<1x32xf32>
    %509 = arith.mulf %502, %508 : vector<1x32xf32>
    %510 = arith.truncf %509 : vector<1x32xf32> to vector<1x32xbf16>
    %c0_164 = arith.constant 0 : index
    %c0_165 = arith.constant 0 : index
    %511 = vector.load %arg13[%c0_164, %c0_165] : memref<32x128xbf16, #tpu.memory_space<vmem>>, vector<32x128xbf16>
    %cst_166 = arith.constant dense<0.000000e+00> : vector<1x128xf32>
    %512 = tpu.matmul %510, %511, %cst_166 {dimension_numbers = #tpu.dot_dimension_numbers<[1], [0], [0], [1], [0, 0, 1, 1], [], []>} : vector<1x32xbf16>, vector<32x128xbf16>, vector<1x128xf32> -> vector<1x128xf32>
    %c0_167 = arith.constant 0 : index
    %c0_168 = arith.constant 0 : index
    %513 = vector.load %arg15[%c0_167, %c0_168] : memref<1x128xf32, #tpu.memory_space<vmem>>, vector<1x128xf32>
    %514 = arith.addf %512, %513 : vector<1x128xf32>
    %515 = arith.truncf %488 : vector<1x32xf32> to vector<1x32xbf16>
    %c0_169 = arith.constant 0 : index
    %c0_170 = arith.constant 0 : index
    %516 = vector.load %arg14[%c0_169, %c0_170] : memref<32x128xbf16, #tpu.memory_space<vmem>>, vector<32x128xbf16>
    %cst_171 = arith.constant dense<0.000000e+00> : vector<1x128xf32>
    %517 = tpu.matmul %515, %516, %cst_171 {dimension_numbers = #tpu.dot_dimension_numbers<[1], [0], [0], [1], [0, 0, 1, 1], [], []>} : vector<1x32xbf16>, vector<32x128xbf16>, vector<1x128xf32> -> vector<1x128xf32>
    %518 = arith.addf %514, %517 : vector<1x128xf32>
    %519 = vector.extract_strided_slice %518 {offsets = [0, 0], sizes = [1, 96], strides = [1, 1]} : vector<1x128xf32> to vector<1x96xf32>
    %520 = arith.negf %519 : vector<1x96xf32>
    %521 = math.exp %520 : vector<1x96xf32>
    %cst_172 = arith.constant 1.000000e+00 : f32
    %522 = vector.broadcast %cst_172 : f32 to vector<1x96xf32>
    %523 = arith.addf %522, %521 : vector<1x96xf32>
    %524 = arith.divf %522, %523 : vector<1x96xf32>
    %525 = vector.extract_strided_slice %524 {offsets = [0, 0], sizes = [1, 32], strides = [1, 1]} : vector<1x96xf32> to vector<1x32xf32>
    %526 = vector.extract_strided_slice %524 {offsets = [0, 32], sizes = [1, 32], strides = [1, 1]} : vector<1x96xf32> to vector<1x32xf32>
    %527 = vector.extract_strided_slice %524 {offsets = [0, 64], sizes = [1, 32], strides = [1, 1]} : vector<1x96xf32> to vector<1x32xf32>
    %528 = vector.extract_strided_slice %518 {offsets = [0, 96], sizes = [1, 32], strides = [1, 1]} : vector<1x128xf32> to vector<1x32xf32>
    %529 = math.tanh %528 : vector<1x32xf32>
    %530 = arith.mulf %526, %486 : vector<1x32xf32>
    %531 = arith.mulf %525, %529 : vector<1x32xf32>
    %532 = arith.addf %530, %531 : vector<1x32xf32>
    %533 = math.tanh %532 : vector<1x32xf32>
    %534 = arith.mulf %527, %533 : vector<1x32xf32>
    %535 = vector.extract_strided_slice %70 {offsets = [10, 0], sizes = [1, 128], strides = [1, 1]} : vector<16x128xf32> to vector<1x128xf32>
    %536 = arith.truncf %509 : vector<1x32xf32> to vector<1x32xbf16>
    %c0_173 = arith.constant 0 : index
    %c0_174 = arith.constant 0 : index
    %537 = vector.load %arg11[%c0_173, %c0_174] : memref<32x128xbf16, #tpu.memory_space<vmem>>, vector<32x128xbf16>
    %cst_175 = arith.constant dense<0.000000e+00> : vector<1x128xf32>
    %538 = tpu.matmul %536, %537, %cst_175 {dimension_numbers = #tpu.dot_dimension_numbers<[1], [0], [0], [1], [0, 0, 1, 1], [], []>} : vector<1x32xbf16>, vector<32x128xbf16>, vector<1x128xf32> -> vector<1x128xf32>
    %539 = arith.addf %535, %538 : vector<1x128xf32>
    %540 = vector.extract_strided_slice %539 {offsets = [0, 0], sizes = [1, 96], strides = [1, 1]} : vector<1x128xf32> to vector<1x96xf32>
    %541 = arith.negf %540 : vector<1x96xf32>
    %542 = math.exp %541 : vector<1x96xf32>
    %cst_176 = arith.constant 1.000000e+00 : f32
    %543 = vector.broadcast %cst_176 : f32 to vector<1x96xf32>
    %544 = arith.addf %543, %542 : vector<1x96xf32>
    %545 = arith.divf %543, %544 : vector<1x96xf32>
    %546 = vector.extract_strided_slice %545 {offsets = [0, 0], sizes = [1, 32], strides = [1, 1]} : vector<1x96xf32> to vector<1x32xf32>
    %547 = vector.extract_strided_slice %545 {offsets = [0, 32], sizes = [1, 32], strides = [1, 1]} : vector<1x96xf32> to vector<1x32xf32>
    %548 = vector.extract_strided_slice %545 {offsets = [0, 64], sizes = [1, 32], strides = [1, 1]} : vector<1x96xf32> to vector<1x32xf32>
    %549 = vector.extract_strided_slice %539 {offsets = [0, 96], sizes = [1, 32], strides = [1, 1]} : vector<1x128xf32> to vector<1x32xf32>
    %550 = math.tanh %549 : vector<1x32xf32>
    %551 = arith.mulf %547, %507 : vector<1x32xf32>
    %552 = arith.mulf %546, %550 : vector<1x32xf32>
    %553 = arith.addf %551, %552 : vector<1x32xf32>
    %554 = math.tanh %553 : vector<1x32xf32>
    %555 = arith.mulf %548, %554 : vector<1x32xf32>
    %556 = arith.truncf %555 : vector<1x32xf32> to vector<1x32xbf16>
    %c0_177 = arith.constant 0 : index
    %c0_178 = arith.constant 0 : index
    %557 = vector.load %arg13[%c0_177, %c0_178] : memref<32x128xbf16, #tpu.memory_space<vmem>>, vector<32x128xbf16>
    %cst_179 = arith.constant dense<0.000000e+00> : vector<1x128xf32>
    %558 = tpu.matmul %556, %557, %cst_179 {dimension_numbers = #tpu.dot_dimension_numbers<[1], [0], [0], [1], [0, 0, 1, 1], [], []>} : vector<1x32xbf16>, vector<32x128xbf16>, vector<1x128xf32> -> vector<1x128xf32>
    %c0_180 = arith.constant 0 : index
    %c0_181 = arith.constant 0 : index
    %559 = vector.load %arg15[%c0_180, %c0_181] : memref<1x128xf32, #tpu.memory_space<vmem>>, vector<1x128xf32>
    %560 = arith.addf %558, %559 : vector<1x128xf32>
    %561 = arith.truncf %534 : vector<1x32xf32> to vector<1x32xbf16>
    %c0_182 = arith.constant 0 : index
    %c0_183 = arith.constant 0 : index
    %562 = vector.load %arg14[%c0_182, %c0_183] : memref<32x128xbf16, #tpu.memory_space<vmem>>, vector<32x128xbf16>
    %cst_184 = arith.constant dense<0.000000e+00> : vector<1x128xf32>
    %563 = tpu.matmul %561, %562, %cst_184 {dimension_numbers = #tpu.dot_dimension_numbers<[1], [0], [0], [1], [0, 0, 1, 1], [], []>} : vector<1x32xbf16>, vector<32x128xbf16>, vector<1x128xf32> -> vector<1x128xf32>
    %564 = arith.addf %560, %563 : vector<1x128xf32>
    %565 = vector.extract_strided_slice %564 {offsets = [0, 0], sizes = [1, 96], strides = [1, 1]} : vector<1x128xf32> to vector<1x96xf32>
    %566 = arith.negf %565 : vector<1x96xf32>
    %567 = math.exp %566 : vector<1x96xf32>
    %cst_185 = arith.constant 1.000000e+00 : f32
    %568 = vector.broadcast %cst_185 : f32 to vector<1x96xf32>
    %569 = arith.addf %568, %567 : vector<1x96xf32>
    %570 = arith.divf %568, %569 : vector<1x96xf32>
    %571 = vector.extract_strided_slice %570 {offsets = [0, 0], sizes = [1, 32], strides = [1, 1]} : vector<1x96xf32> to vector<1x32xf32>
    %572 = vector.extract_strided_slice %570 {offsets = [0, 32], sizes = [1, 32], strides = [1, 1]} : vector<1x96xf32> to vector<1x32xf32>
    %573 = vector.extract_strided_slice %570 {offsets = [0, 64], sizes = [1, 32], strides = [1, 1]} : vector<1x96xf32> to vector<1x32xf32>
    %574 = vector.extract_strided_slice %564 {offsets = [0, 96], sizes = [1, 32], strides = [1, 1]} : vector<1x128xf32> to vector<1x32xf32>
    %575 = math.tanh %574 : vector<1x32xf32>
    %576 = arith.mulf %572, %532 : vector<1x32xf32>
    %577 = arith.mulf %571, %575 : vector<1x32xf32>
    %578 = arith.addf %576, %577 : vector<1x32xf32>
    %579 = math.tanh %578 : vector<1x32xf32>
    %580 = arith.mulf %573, %579 : vector<1x32xf32>
    %581 = vector.extract_strided_slice %70 {offsets = [11, 0], sizes = [1, 128], strides = [1, 1]} : vector<16x128xf32> to vector<1x128xf32>
    %582 = arith.truncf %555 : vector<1x32xf32> to vector<1x32xbf16>
    %c0_186 = arith.constant 0 : index
    %c0_187 = arith.constant 0 : index
    %583 = vector.load %arg11[%c0_186, %c0_187] : memref<32x128xbf16, #tpu.memory_space<vmem>>, vector<32x128xbf16>
    %cst_188 = arith.constant dense<0.000000e+00> : vector<1x128xf32>
    %584 = tpu.matmul %582, %583, %cst_188 {dimension_numbers = #tpu.dot_dimension_numbers<[1], [0], [0], [1], [0, 0, 1, 1], [], []>} : vector<1x32xbf16>, vector<32x128xbf16>, vector<1x128xf32> -> vector<1x128xf32>
    %585 = arith.addf %581, %584 : vector<1x128xf32>
    %586 = vector.extract_strided_slice %585 {offsets = [0, 0], sizes = [1, 96], strides = [1, 1]} : vector<1x128xf32> to vector<1x96xf32>
    %587 = arith.negf %586 : vector<1x96xf32>
    %588 = math.exp %587 : vector<1x96xf32>
    %cst_189 = arith.constant 1.000000e+00 : f32
    %589 = vector.broadcast %cst_189 : f32 to vector<1x96xf32>
    %590 = arith.addf %589, %588 : vector<1x96xf32>
    %591 = arith.divf %589, %590 : vector<1x96xf32>
    %592 = vector.extract_strided_slice %591 {offsets = [0, 0], sizes = [1, 32], strides = [1, 1]} : vector<1x96xf32> to vector<1x32xf32>
    %593 = vector.extract_strided_slice %591 {offsets = [0, 32], sizes = [1, 32], strides = [1, 1]} : vector<1x96xf32> to vector<1x32xf32>
    %594 = vector.extract_strided_slice %591 {offsets = [0, 64], sizes = [1, 32], strides = [1, 1]} : vector<1x96xf32> to vector<1x32xf32>
    %595 = vector.extract_strided_slice %585 {offsets = [0, 96], sizes = [1, 32], strides = [1, 1]} : vector<1x128xf32> to vector<1x32xf32>
    %596 = math.tanh %595 : vector<1x32xf32>
    %597 = arith.mulf %593, %553 : vector<1x32xf32>
    %598 = arith.mulf %592, %596 : vector<1x32xf32>
    %599 = arith.addf %597, %598 : vector<1x32xf32>
    %600 = math.tanh %599 : vector<1x32xf32>
    %601 = arith.mulf %594, %600 : vector<1x32xf32>
    %602 = arith.truncf %601 : vector<1x32xf32> to vector<1x32xbf16>
    %c0_190 = arith.constant 0 : index
    %c0_191 = arith.constant 0 : index
    %603 = vector.load %arg13[%c0_190, %c0_191] : memref<32x128xbf16, #tpu.memory_space<vmem>>, vector<32x128xbf16>
    %cst_192 = arith.constant dense<0.000000e+00> : vector<1x128xf32>
    %604 = tpu.matmul %602, %603, %cst_192 {dimension_numbers = #tpu.dot_dimension_numbers<[1], [0], [0], [1], [0, 0, 1, 1], [], []>} : vector<1x32xbf16>, vector<32x128xbf16>, vector<1x128xf32> -> vector<1x128xf32>
    %c0_193 = arith.constant 0 : index
    %c0_194 = arith.constant 0 : index
    %605 = vector.load %arg15[%c0_193, %c0_194] : memref<1x128xf32, #tpu.memory_space<vmem>>, vector<1x128xf32>
    %606 = arith.addf %604, %605 : vector<1x128xf32>
    %607 = arith.truncf %580 : vector<1x32xf32> to vector<1x32xbf16>
    %c0_195 = arith.constant 0 : index
    %c0_196 = arith.constant 0 : index
    %608 = vector.load %arg14[%c0_195, %c0_196] : memref<32x128xbf16, #tpu.memory_space<vmem>>, vector<32x128xbf16>
    %cst_197 = arith.constant dense<0.000000e+00> : vector<1x128xf32>
    %609 = tpu.matmul %607, %608, %cst_197 {dimension_numbers = #tpu.dot_dimension_numbers<[1], [0], [0], [1], [0, 0, 1, 1], [], []>} : vector<1x32xbf16>, vector<32x128xbf16>, vector<1x128xf32> -> vector<1x128xf32>
    %610 = arith.addf %606, %609 : vector<1x128xf32>
    %611 = vector.extract_strided_slice %610 {offsets = [0, 0], sizes = [1, 96], strides = [1, 1]} : vector<1x128xf32> to vector<1x96xf32>
    %612 = arith.negf %611 : vector<1x96xf32>
    %613 = math.exp %612 : vector<1x96xf32>
    %cst_198 = arith.constant 1.000000e+00 : f32
    %614 = vector.broadcast %cst_198 : f32 to vector<1x96xf32>
    %615 = arith.addf %614, %613 : vector<1x96xf32>
    %616 = arith.divf %614, %615 : vector<1x96xf32>
    %617 = vector.extract_strided_slice %616 {offsets = [0, 0], sizes = [1, 32], strides = [1, 1]} : vector<1x96xf32> to vector<1x32xf32>
    %618 = vector.extract_strided_slice %616 {offsets = [0, 32], sizes = [1, 32], strides = [1, 1]} : vector<1x96xf32> to vector<1x32xf32>
    %619 = vector.extract_strided_slice %616 {offsets = [0, 64], sizes = [1, 32], strides = [1, 1]} : vector<1x96xf32> to vector<1x32xf32>
    %620 = vector.extract_strided_slice %610 {offsets = [0, 96], sizes = [1, 32], strides = [1, 1]} : vector<1x128xf32> to vector<1x32xf32>
    %621 = math.tanh %620 : vector<1x32xf32>
    %622 = arith.mulf %618, %578 : vector<1x32xf32>
    %623 = arith.mulf %617, %621 : vector<1x32xf32>
    %624 = arith.addf %622, %623 : vector<1x32xf32>
    %625 = math.tanh %624 : vector<1x32xf32>
    %626 = arith.mulf %619, %625 : vector<1x32xf32>
    %627 = vector.extract_strided_slice %70 {offsets = [12, 0], sizes = [1, 128], strides = [1, 1]} : vector<16x128xf32> to vector<1x128xf32>
    %628 = arith.truncf %601 : vector<1x32xf32> to vector<1x32xbf16>
    %c0_199 = arith.constant 0 : index
    %c0_200 = arith.constant 0 : index
    %629 = vector.load %arg11[%c0_199, %c0_200] : memref<32x128xbf16, #tpu.memory_space<vmem>>, vector<32x128xbf16>
    %cst_201 = arith.constant dense<0.000000e+00> : vector<1x128xf32>
    %630 = tpu.matmul %628, %629, %cst_201 {dimension_numbers = #tpu.dot_dimension_numbers<[1], [0], [0], [1], [0, 0, 1, 1], [], []>} : vector<1x32xbf16>, vector<32x128xbf16>, vector<1x128xf32> -> vector<1x128xf32>
    %631 = arith.addf %627, %630 : vector<1x128xf32>
    %632 = vector.extract_strided_slice %631 {offsets = [0, 0], sizes = [1, 96], strides = [1, 1]} : vector<1x128xf32> to vector<1x96xf32>
    %633 = arith.negf %632 : vector<1x96xf32>
    %634 = math.exp %633 : vector<1x96xf32>
    %cst_202 = arith.constant 1.000000e+00 : f32
    %635 = vector.broadcast %cst_202 : f32 to vector<1x96xf32>
    %636 = arith.addf %635, %634 : vector<1x96xf32>
    %637 = arith.divf %635, %636 : vector<1x96xf32>
    %638 = vector.extract_strided_slice %637 {offsets = [0, 0], sizes = [1, 32], strides = [1, 1]} : vector<1x96xf32> to vector<1x32xf32>
    %639 = vector.extract_strided_slice %637 {offsets = [0, 32], sizes = [1, 32], strides = [1, 1]} : vector<1x96xf32> to vector<1x32xf32>
    %640 = vector.extract_strided_slice %637 {offsets = [0, 64], sizes = [1, 32], strides = [1, 1]} : vector<1x96xf32> to vector<1x32xf32>
    %641 = vector.extract_strided_slice %631 {offsets = [0, 96], sizes = [1, 32], strides = [1, 1]} : vector<1x128xf32> to vector<1x32xf32>
    %642 = math.tanh %641 : vector<1x32xf32>
    %643 = arith.mulf %639, %599 : vector<1x32xf32>
    %644 = arith.mulf %638, %642 : vector<1x32xf32>
    %645 = arith.addf %643, %644 : vector<1x32xf32>
    %646 = math.tanh %645 : vector<1x32xf32>
    %647 = arith.mulf %640, %646 : vector<1x32xf32>
    %648 = arith.truncf %647 : vector<1x32xf32> to vector<1x32xbf16>
    %c0_203 = arith.constant 0 : index
    %c0_204 = arith.constant 0 : index
    %649 = vector.load %arg13[%c0_203, %c0_204] : memref<32x128xbf16, #tpu.memory_space<vmem>>, vector<32x128xbf16>
    %cst_205 = arith.constant dense<0.000000e+00> : vector<1x128xf32>
    %650 = tpu.matmul %648, %649, %cst_205 {dimension_numbers = #tpu.dot_dimension_numbers<[1], [0], [0], [1], [0, 0, 1, 1], [], []>} : vector<1x32xbf16>, vector<32x128xbf16>, vector<1x128xf32> -> vector<1x128xf32>
    %c0_206 = arith.constant 0 : index
    %c0_207 = arith.constant 0 : index
    %651 = vector.load %arg15[%c0_206, %c0_207] : memref<1x128xf32, #tpu.memory_space<vmem>>, vector<1x128xf32>
    %652 = arith.addf %650, %651 : vector<1x128xf32>
    %653 = arith.truncf %626 : vector<1x32xf32> to vector<1x32xbf16>
    %c0_208 = arith.constant 0 : index
    %c0_209 = arith.constant 0 : index
    %654 = vector.load %arg14[%c0_208, %c0_209] : memref<32x128xbf16, #tpu.memory_space<vmem>>, vector<32x128xbf16>
    %cst_210 = arith.constant dense<0.000000e+00> : vector<1x128xf32>
    %655 = tpu.matmul %653, %654, %cst_210 {dimension_numbers = #tpu.dot_dimension_numbers<[1], [0], [0], [1], [0, 0, 1, 1], [], []>} : vector<1x32xbf16>, vector<32x128xbf16>, vector<1x128xf32> -> vector<1x128xf32>
    %656 = arith.addf %652, %655 : vector<1x128xf32>
    %657 = vector.extract_strided_slice %656 {offsets = [0, 0], sizes = [1, 96], strides = [1, 1]} : vector<1x128xf32> to vector<1x96xf32>
    %658 = arith.negf %657 : vector<1x96xf32>
    %659 = math.exp %658 : vector<1x96xf32>
    %cst_211 = arith.constant 1.000000e+00 : f32
    %660 = vector.broadcast %cst_211 : f32 to vector<1x96xf32>
    %661 = arith.addf %660, %659 : vector<1x96xf32>
    %662 = arith.divf %660, %661 : vector<1x96xf32>
    %663 = vector.extract_strided_slice %662 {offsets = [0, 0], sizes = [1, 32], strides = [1, 1]} : vector<1x96xf32> to vector<1x32xf32>
    %664 = vector.extract_strided_slice %662 {offsets = [0, 32], sizes = [1, 32], strides = [1, 1]} : vector<1x96xf32> to vector<1x32xf32>
    %665 = vector.extract_strided_slice %662 {offsets = [0, 64], sizes = [1, 32], strides = [1, 1]} : vector<1x96xf32> to vector<1x32xf32>
    %666 = vector.extract_strided_slice %656 {offsets = [0, 96], sizes = [1, 32], strides = [1, 1]} : vector<1x128xf32> to vector<1x32xf32>
    %667 = math.tanh %666 : vector<1x32xf32>
    %668 = arith.mulf %664, %624 : vector<1x32xf32>
    %669 = arith.mulf %663, %667 : vector<1x32xf32>
    %670 = arith.addf %668, %669 : vector<1x32xf32>
    %671 = math.tanh %670 : vector<1x32xf32>
    %672 = arith.mulf %665, %671 : vector<1x32xf32>
    %673 = vector.extract_strided_slice %70 {offsets = [13, 0], sizes = [1, 128], strides = [1, 1]} : vector<16x128xf32> to vector<1x128xf32>
    %674 = arith.truncf %647 : vector<1x32xf32> to vector<1x32xbf16>
    %c0_212 = arith.constant 0 : index
    %c0_213 = arith.constant 0 : index
    %675 = vector.load %arg11[%c0_212, %c0_213] : memref<32x128xbf16, #tpu.memory_space<vmem>>, vector<32x128xbf16>
    %cst_214 = arith.constant dense<0.000000e+00> : vector<1x128xf32>
    %676 = tpu.matmul %674, %675, %cst_214 {dimension_numbers = #tpu.dot_dimension_numbers<[1], [0], [0], [1], [0, 0, 1, 1], [], []>} : vector<1x32xbf16>, vector<32x128xbf16>, vector<1x128xf32> -> vector<1x128xf32>
    %677 = arith.addf %673, %676 : vector<1x128xf32>
    %678 = vector.extract_strided_slice %677 {offsets = [0, 0], sizes = [1, 96], strides = [1, 1]} : vector<1x128xf32> to vector<1x96xf32>
    %679 = arith.negf %678 : vector<1x96xf32>
    %680 = math.exp %679 : vector<1x96xf32>
    %cst_215 = arith.constant 1.000000e+00 : f32
    %681 = vector.broadcast %cst_215 : f32 to vector<1x96xf32>
    %682 = arith.addf %681, %680 : vector<1x96xf32>
    %683 = arith.divf %681, %682 : vector<1x96xf32>
    %684 = vector.extract_strided_slice %683 {offsets = [0, 0], sizes = [1, 32], strides = [1, 1]} : vector<1x96xf32> to vector<1x32xf32>
    %685 = vector.extract_strided_slice %683 {offsets = [0, 32], sizes = [1, 32], strides = [1, 1]} : vector<1x96xf32> to vector<1x32xf32>
    %686 = vector.extract_strided_slice %683 {offsets = [0, 64], sizes = [1, 32], strides = [1, 1]} : vector<1x96xf32> to vector<1x32xf32>
    %687 = vector.extract_strided_slice %677 {offsets = [0, 96], sizes = [1, 32], strides = [1, 1]} : vector<1x128xf32> to vector<1x32xf32>
    %688 = math.tanh %687 : vector<1x32xf32>
    %689 = arith.mulf %685, %645 : vector<1x32xf32>
    %690 = arith.mulf %684, %688 : vector<1x32xf32>
    %691 = arith.addf %689, %690 : vector<1x32xf32>
    %692 = math.tanh %691 : vector<1x32xf32>
    %693 = arith.mulf %686, %692 : vector<1x32xf32>
    %694 = arith.truncf %693 : vector<1x32xf32> to vector<1x32xbf16>
    %c0_216 = arith.constant 0 : index
    %c0_217 = arith.constant 0 : index
    %695 = vector.load %arg13[%c0_216, %c0_217] : memref<32x128xbf16, #tpu.memory_space<vmem>>, vector<32x128xbf16>
    %cst_218 = arith.constant dense<0.000000e+00> : vector<1x128xf32>
    %696 = tpu.matmul %694, %695, %cst_218 {dimension_numbers = #tpu.dot_dimension_numbers<[1], [0], [0], [1], [0, 0, 1, 1], [], []>} : vector<1x32xbf16>, vector<32x128xbf16>, vector<1x128xf32> -> vector<1x128xf32>
    %c0_219 = arith.constant 0 : index
    %c0_220 = arith.constant 0 : index
    %697 = vector.load %arg15[%c0_219, %c0_220] : memref<1x128xf32, #tpu.memory_space<vmem>>, vector<1x128xf32>
    %698 = arith.addf %696, %697 : vector<1x128xf32>
    %699 = arith.truncf %672 : vector<1x32xf32> to vector<1x32xbf16>
    %c0_221 = arith.constant 0 : index
    %c0_222 = arith.constant 0 : index
    %700 = vector.load %arg14[%c0_221, %c0_222] : memref<32x128xbf16, #tpu.memory_space<vmem>>, vector<32x128xbf16>
    %cst_223 = arith.constant dense<0.000000e+00> : vector<1x128xf32>
    %701 = tpu.matmul %699, %700, %cst_223 {dimension_numbers = #tpu.dot_dimension_numbers<[1], [0], [0], [1], [0, 0, 1, 1], [], []>} : vector<1x32xbf16>, vector<32x128xbf16>, vector<1x128xf32> -> vector<1x128xf32>
    %702 = arith.addf %698, %701 : vector<1x128xf32>
    %703 = vector.extract_strided_slice %702 {offsets = [0, 0], sizes = [1, 96], strides = [1, 1]} : vector<1x128xf32> to vector<1x96xf32>
    %704 = arith.negf %703 : vector<1x96xf32>
    %705 = math.exp %704 : vector<1x96xf32>
    %cst_224 = arith.constant 1.000000e+00 : f32
    %706 = vector.broadcast %cst_224 : f32 to vector<1x96xf32>
    %707 = arith.addf %706, %705 : vector<1x96xf32>
    %708 = arith.divf %706, %707 : vector<1x96xf32>
    %709 = vector.extract_strided_slice %708 {offsets = [0, 0], sizes = [1, 32], strides = [1, 1]} : vector<1x96xf32> to vector<1x32xf32>
    %710 = vector.extract_strided_slice %708 {offsets = [0, 32], sizes = [1, 32], strides = [1, 1]} : vector<1x96xf32> to vector<1x32xf32>
    %711 = vector.extract_strided_slice %708 {offsets = [0, 64], sizes = [1, 32], strides = [1, 1]} : vector<1x96xf32> to vector<1x32xf32>
    %712 = vector.extract_strided_slice %702 {offsets = [0, 96], sizes = [1, 32], strides = [1, 1]} : vector<1x128xf32> to vector<1x32xf32>
    %713 = math.tanh %712 : vector<1x32xf32>
    %714 = arith.mulf %710, %670 : vector<1x32xf32>
    %715 = arith.mulf %709, %713 : vector<1x32xf32>
    %716 = arith.addf %714, %715 : vector<1x32xf32>
    %717 = math.tanh %716 : vector<1x32xf32>
    %718 = arith.mulf %711, %717 : vector<1x32xf32>
    %719 = vector.extract_strided_slice %70 {offsets = [14, 0], sizes = [1, 128], strides = [1, 1]} : vector<16x128xf32> to vector<1x128xf32>
    %720 = arith.truncf %693 : vector<1x32xf32> to vector<1x32xbf16>
    %c0_225 = arith.constant 0 : index
    %c0_226 = arith.constant 0 : index
    %721 = vector.load %arg11[%c0_225, %c0_226] : memref<32x128xbf16, #tpu.memory_space<vmem>>, vector<32x128xbf16>
    %cst_227 = arith.constant dense<0.000000e+00> : vector<1x128xf32>
    %722 = tpu.matmul %720, %721, %cst_227 {dimension_numbers = #tpu.dot_dimension_numbers<[1], [0], [0], [1], [0, 0, 1, 1], [], []>} : vector<1x32xbf16>, vector<32x128xbf16>, vector<1x128xf32> -> vector<1x128xf32>
    %723 = arith.addf %719, %722 : vector<1x128xf32>
    %724 = vector.extract_strided_slice %723 {offsets = [0, 0], sizes = [1, 96], strides = [1, 1]} : vector<1x128xf32> to vector<1x96xf32>
    %725 = arith.negf %724 : vector<1x96xf32>
    %726 = math.exp %725 : vector<1x96xf32>
    %cst_228 = arith.constant 1.000000e+00 : f32
    %727 = vector.broadcast %cst_228 : f32 to vector<1x96xf32>
    %728 = arith.addf %727, %726 : vector<1x96xf32>
    %729 = arith.divf %727, %728 : vector<1x96xf32>
    %730 = vector.extract_strided_slice %729 {offsets = [0, 0], sizes = [1, 32], strides = [1, 1]} : vector<1x96xf32> to vector<1x32xf32>
    %731 = vector.extract_strided_slice %729 {offsets = [0, 32], sizes = [1, 32], strides = [1, 1]} : vector<1x96xf32> to vector<1x32xf32>
    %732 = vector.extract_strided_slice %729 {offsets = [0, 64], sizes = [1, 32], strides = [1, 1]} : vector<1x96xf32> to vector<1x32xf32>
    %733 = vector.extract_strided_slice %723 {offsets = [0, 96], sizes = [1, 32], strides = [1, 1]} : vector<1x128xf32> to vector<1x32xf32>
    %734 = math.tanh %733 : vector<1x32xf32>
    %735 = arith.mulf %731, %691 : vector<1x32xf32>
    %736 = arith.mulf %730, %734 : vector<1x32xf32>
    %737 = arith.addf %735, %736 : vector<1x32xf32>
    %738 = math.tanh %737 : vector<1x32xf32>
    %739 = arith.mulf %732, %738 : vector<1x32xf32>
    %740 = arith.truncf %739 : vector<1x32xf32> to vector<1x32xbf16>
    %c0_229 = arith.constant 0 : index
    %c0_230 = arith.constant 0 : index
    %741 = vector.load %arg13[%c0_229, %c0_230] : memref<32x128xbf16, #tpu.memory_space<vmem>>, vector<32x128xbf16>
    %cst_231 = arith.constant dense<0.000000e+00> : vector<1x128xf32>
    %742 = tpu.matmul %740, %741, %cst_231 {dimension_numbers = #tpu.dot_dimension_numbers<[1], [0], [0], [1], [0, 0, 1, 1], [], []>} : vector<1x32xbf16>, vector<32x128xbf16>, vector<1x128xf32> -> vector<1x128xf32>
    %c0_232 = arith.constant 0 : index
    %c0_233 = arith.constant 0 : index
    %743 = vector.load %arg15[%c0_232, %c0_233] : memref<1x128xf32, #tpu.memory_space<vmem>>, vector<1x128xf32>
    %744 = arith.addf %742, %743 : vector<1x128xf32>
    %745 = arith.truncf %718 : vector<1x32xf32> to vector<1x32xbf16>
    %c0_234 = arith.constant 0 : index
    %c0_235 = arith.constant 0 : index
    %746 = vector.load %arg14[%c0_234, %c0_235] : memref<32x128xbf16, #tpu.memory_space<vmem>>, vector<32x128xbf16>
    %cst_236 = arith.constant dense<0.000000e+00> : vector<1x128xf32>
    %747 = tpu.matmul %745, %746, %cst_236 {dimension_numbers = #tpu.dot_dimension_numbers<[1], [0], [0], [1], [0, 0, 1, 1], [], []>} : vector<1x32xbf16>, vector<32x128xbf16>, vector<1x128xf32> -> vector<1x128xf32>
    %748 = arith.addf %744, %747 : vector<1x128xf32>
    %749 = vector.extract_strided_slice %748 {offsets = [0, 0], sizes = [1, 96], strides = [1, 1]} : vector<1x128xf32> to vector<1x96xf32>
    %750 = arith.negf %749 : vector<1x96xf32>
    %751 = math.exp %750 : vector<1x96xf32>
    %cst_237 = arith.constant 1.000000e+00 : f32
    %752 = vector.broadcast %cst_237 : f32 to vector<1x96xf32>
    %753 = arith.addf %752, %751 : vector<1x96xf32>
    %754 = arith.divf %752, %753 : vector<1x96xf32>
    %755 = vector.extract_strided_slice %754 {offsets = [0, 0], sizes = [1, 32], strides = [1, 1]} : vector<1x96xf32> to vector<1x32xf32>
    %756 = vector.extract_strided_slice %754 {offsets = [0, 32], sizes = [1, 32], strides = [1, 1]} : vector<1x96xf32> to vector<1x32xf32>
    %757 = vector.extract_strided_slice %754 {offsets = [0, 64], sizes = [1, 32], strides = [1, 1]} : vector<1x96xf32> to vector<1x32xf32>
    %758 = vector.extract_strided_slice %748 {offsets = [0, 96], sizes = [1, 32], strides = [1, 1]} : vector<1x128xf32> to vector<1x32xf32>
    %759 = math.tanh %758 : vector<1x32xf32>
    %760 = arith.mulf %756, %716 : vector<1x32xf32>
    %761 = arith.mulf %755, %759 : vector<1x32xf32>
    %762 = arith.addf %760, %761 : vector<1x32xf32>
    %763 = math.tanh %762 : vector<1x32xf32>
    %764 = arith.mulf %757, %763 : vector<1x32xf32>
    %765 = vector.extract_strided_slice %70 {offsets = [15, 0], sizes = [1, 128], strides = [1, 1]} : vector<16x128xf32> to vector<1x128xf32>
    %766 = arith.truncf %739 : vector<1x32xf32> to vector<1x32xbf16>
    %c0_238 = arith.constant 0 : index
    %c0_239 = arith.constant 0 : index
    %767 = vector.load %arg11[%c0_238, %c0_239] : memref<32x128xbf16, #tpu.memory_space<vmem>>, vector<32x128xbf16>
    %cst_240 = arith.constant dense<0.000000e+00> : vector<1x128xf32>
    %768 = tpu.matmul %766, %767, %cst_240 {dimension_numbers = #tpu.dot_dimension_numbers<[1], [0], [0], [1], [0, 0, 1, 1], [], []>} : vector<1x32xbf16>, vector<32x128xbf16>, vector<1x128xf32> -> vector<1x128xf32>
    %769 = arith.addf %765, %768 : vector<1x128xf32>
    %770 = vector.extract_strided_slice %769 {offsets = [0, 0], sizes = [1, 96], strides = [1, 1]} : vector<1x128xf32> to vector<1x96xf32>
    %771 = arith.negf %770 : vector<1x96xf32>
    %772 = math.exp %771 : vector<1x96xf32>
    %cst_241 = arith.constant 1.000000e+00 : f32
    %773 = vector.broadcast %cst_241 : f32 to vector<1x96xf32>
    %774 = arith.addf %773, %772 : vector<1x96xf32>
    %775 = arith.divf %773, %774 : vector<1x96xf32>
    %776 = vector.extract_strided_slice %775 {offsets = [0, 0], sizes = [1, 32], strides = [1, 1]} : vector<1x96xf32> to vector<1x32xf32>
    %777 = vector.extract_strided_slice %775 {offsets = [0, 32], sizes = [1, 32], strides = [1, 1]} : vector<1x96xf32> to vector<1x32xf32>
    %778 = vector.extract_strided_slice %775 {offsets = [0, 64], sizes = [1, 32], strides = [1, 1]} : vector<1x96xf32> to vector<1x32xf32>
    %779 = vector.extract_strided_slice %769 {offsets = [0, 96], sizes = [1, 32], strides = [1, 1]} : vector<1x128xf32> to vector<1x32xf32>
    %780 = math.tanh %779 : vector<1x32xf32>
    %781 = arith.mulf %777, %737 : vector<1x32xf32>
    %782 = arith.mulf %776, %780 : vector<1x32xf32>
    %783 = arith.addf %781, %782 : vector<1x32xf32>
    %784 = math.tanh %783 : vector<1x32xf32>
    %785 = arith.mulf %778, %784 : vector<1x32xf32>
    %786 = arith.truncf %785 : vector<1x32xf32> to vector<1x32xbf16>
    %c0_242 = arith.constant 0 : index
    %c0_243 = arith.constant 0 : index
    %787 = vector.load %arg13[%c0_242, %c0_243] : memref<32x128xbf16, #tpu.memory_space<vmem>>, vector<32x128xbf16>
    %cst_244 = arith.constant dense<0.000000e+00> : vector<1x128xf32>
    %788 = tpu.matmul %786, %787, %cst_244 {dimension_numbers = #tpu.dot_dimension_numbers<[1], [0], [0], [1], [0, 0, 1, 1], [], []>} : vector<1x32xbf16>, vector<32x128xbf16>, vector<1x128xf32> -> vector<1x128xf32>
    %c0_245 = arith.constant 0 : index
    %c0_246 = arith.constant 0 : index
    %789 = vector.load %arg15[%c0_245, %c0_246] : memref<1x128xf32, #tpu.memory_space<vmem>>, vector<1x128xf32>
    %790 = arith.addf %788, %789 : vector<1x128xf32>
    %791 = arith.truncf %764 : vector<1x32xf32> to vector<1x32xbf16>
    %c0_247 = arith.constant 0 : index
    %c0_248 = arith.constant 0 : index
    %792 = vector.load %arg14[%c0_247, %c0_248] : memref<32x128xbf16, #tpu.memory_space<vmem>>, vector<32x128xbf16>
    %cst_249 = arith.constant dense<0.000000e+00> : vector<1x128xf32>
    %793 = tpu.matmul %791, %792, %cst_249 {dimension_numbers = #tpu.dot_dimension_numbers<[1], [0], [0], [1], [0, 0, 1, 1], [], []>} : vector<1x32xbf16>, vector<32x128xbf16>, vector<1x128xf32> -> vector<1x128xf32>
    %794 = arith.addf %790, %793 : vector<1x128xf32>
    %795 = vector.extract_strided_slice %794 {offsets = [0, 0], sizes = [1, 96], strides = [1, 1]} : vector<1x128xf32> to vector<1x96xf32>
    %796 = arith.negf %795 : vector<1x96xf32>
    %797 = math.exp %796 : vector<1x96xf32>
    %cst_250 = arith.constant 1.000000e+00 : f32
    %798 = vector.broadcast %cst_250 : f32 to vector<1x96xf32>
    %799 = arith.addf %798, %797 : vector<1x96xf32>
    %800 = arith.divf %798, %799 : vector<1x96xf32>
    %801 = vector.extract_strided_slice %800 {offsets = [0, 0], sizes = [1, 32], strides = [1, 1]} : vector<1x96xf32> to vector<1x32xf32>
    %802 = vector.extract_strided_slice %800 {offsets = [0, 32], sizes = [1, 32], strides = [1, 1]} : vector<1x96xf32> to vector<1x32xf32>
    %803 = vector.extract_strided_slice %800 {offsets = [0, 64], sizes = [1, 32], strides = [1, 1]} : vector<1x96xf32> to vector<1x32xf32>
    %804 = vector.extract_strided_slice %794 {offsets = [0, 96], sizes = [1, 32], strides = [1, 1]} : vector<1x128xf32> to vector<1x32xf32>
    %805 = math.tanh %804 : vector<1x32xf32>
    %806 = arith.mulf %802, %762 : vector<1x32xf32>
    %807 = arith.mulf %801, %805 : vector<1x32xf32>
    %808 = arith.addf %806, %807 : vector<1x32xf32>
    %809 = math.tanh %808 : vector<1x32xf32>
    %810 = arith.mulf %803, %809 : vector<1x32xf32>
    %811 = tpu.concatenate %120, %166, %212, %258, %304, %350, %396, %442, %488, %534, %580, %626, %672, %718, %764, %810 in 0 : vector<1x32xf32>, vector<1x32xf32>, vector<1x32xf32>, vector<1x32xf32>, vector<1x32xf32>, vector<1x32xf32>, vector<1x32xf32>, vector<1x32xf32>, vector<1x32xf32>, vector<1x32xf32>, vector<1x32xf32>, vector<1x32xf32>, vector<1x32xf32>, vector<1x32xf32>, vector<1x32xf32>, vector<1x32xf32> -> vector<16x32xf32>
    %812 = arith.truncf %811 : vector<16x32xf32> to vector<16x32xbf16>
    %c0_251 = arith.constant 0 : index
    %c0_252 = arith.constant 0 : index
    %813 = vector.load %arg16[%c0_251, %c0_252] : memref<32x128xbf16, #tpu.memory_space<vmem>>, vector<32x128xbf16>
    %cst_253 = arith.constant dense<0.000000e+00> : vector<16x128xf32>
    %814 = tpu.matmul %812, %813, %cst_253 {dimension_numbers = #tpu.dot_dimension_numbers<[1], [0], [0], [1], [0, 0, 1, 1], [], []>} : vector<16x32xbf16>, vector<32x128xbf16>, vector<16x128xf32> -> vector<16x128xf32>
    %c0_254 = arith.constant 0 : index
    %c0_255 = arith.constant 0 : index
    %815 = vector.load %arg17[%c0_254, %c0_255] : memref<1x128xf32, #tpu.memory_space<vmem>>, vector<1x128xf32>
    %816 = vector.broadcast %815 : vector<1x128xf32> to vector<16x128xf32>
    %817 = arith.addf %814, %816 : vector<16x128xf32>
    %c0_256 = arith.constant 0 : index
    %c0_257 = arith.constant 0 : index
    %818 = vector.load %arg18[%c0_256, %c0_257] : memref<16x128xf32, #tpu.memory_space<vmem>>, vector<16x128xf32>
    tpu.vector_store %arg18[%c0_256, %c0_257], %817 {strides = array<i32>} : memref<16x128xf32, #tpu.memory_space<vmem>>, vector<16x128xf32>,
    return
  }
}

</mosaic_0001>

<llo_original>
// kernel: gcn_lstm_forward.1
$region0: #{gcn_lstm_forward.1}
  #allocation0 [shape = 'u32[]', space=smem, size = 0x4, offset = 0x4, fixed_abs, tag = 'smem constant byte address 0x4 - core index']
  #allocation1 [shape = 'u32[72,128]{1,0:T(1,128)}', space=vmem, size = 0x9000, scoped, tag = 'internal scratch']
  %s0 = inlined_call_operand.vmem [shape: bf16[16,16], index: 0, kind: input, shape index: {}]
  %s1 = inlined_call_operand.vmem [shape: bf16[16,128], index: 1, kind: input, shape index: {}]
  %s2 = inlined_call_operand.vmem [shape: bf16[128,32], index: 2, kind: input, shape index: {}]
  %s3 = inlined_call_operand.vmem [shape: f32[1,32], index: 3, kind: input, shape index: {}]
  %s4 = inlined_call_operand.vmem [shape: f32[1,32], index: 4, kind: input, shape index: {}]
  %s5 = inlined_call_operand.vmem [shape: f32[1,32], index: 5, kind: input, shape index: {}]
  %s6 = inlined_call_operand.vmem [shape: bf16[32,32], index: 6, kind: input, shape index: {}]
  %s7 = inlined_call_operand.vmem [shape: f32[1,32], index: 7, kind: input, shape index: {}]
  %s8 = inlined_call_operand.vmem [shape: f32[1,32], index: 8, kind: input, shape index: {}]
  %s9 = inlined_call_operand.vmem [shape: f32[1,32], index: 9, kind: input, shape index: {}]
  %s10 = inlined_call_operand.vmem [shape: bf16[32,128], index: 10, kind: input, shape index: {}]
  %s11 = inlined_call_operand.vmem [shape: bf16[32,128], index: 11, kind: input, shape index: {}]
  %s12 = inlined_call_operand.vmem [shape: f32[1,128], index: 12, kind: input, shape index: {}]
  %s13 = inlined_call_operand.vmem [shape: bf16[32,128], index: 13, kind: input, shape index: {}]
  %s14 = inlined_call_operand.vmem [shape: bf16[32,128], index: 14, kind: input, shape index: {}]
  %s15 = inlined_call_operand.vmem [shape: f32[1,128], index: 15, kind: input, shape index: {}]
  %s16 = inlined_call_operand.vmem [shape: bf16[32,128], index: 16, kind: input, shape index: {}]
  %s17 = inlined_call_operand.vmem [shape: f32[1,128], index: 17, kind: input, shape index: {}]
  %s18 = inlined_call_operand.vmem [shape: f32[16,128], index: 18, kind: output, shape index: {}]
  %s19 = sld [smem:[#allocation0]]
  $region82: #{gcn_lstm_forward.1} parent=0
    _
  %s21 = ssub.s32 1, %s19
  %s22 = scalar_select 0, %s21, %s19
  // Predicated region
  $region2: #{gcn_lstm_forward.1} parent=0 // pred_check
    _
  $region3: #{gcn_lstm_forward.1} parent=0 // pred_check_branch
    %24 = sbr.rel (0) target = $region5
  $region4: #{gcn_lstm_forward.1} parent=0 // pred_region
    _
  $region5: #{gcn_lstm_forward.1} parent=0 // pred_fallthru
    _
  // Predicated region
  $region6: #{gcn_lstm_forward.1} parent=0 // pred_check
    _
  $region7: #{gcn_lstm_forward.1} parent=0 // pred_check_branch
    %26 = sbr.rel (0) target = $region9
  $region8: #{gcn_lstm_forward.1} parent=0 // pred_region
    _
  $region9: #{gcn_lstm_forward.1} parent=0 // pred_fallthru
    _
  // Predicated region
  $region10: #{gcn_lstm_forward.1} parent=0 // pred_check
    _
  $region11: #{gcn_lstm_forward.1} parent=0 // pred_check_branch
    %28 = sbr.rel (0) target = $region13
  $region12: #{gcn_lstm_forward.1} parent=0 // pred_region
    _
  $region13: #{gcn_lstm_forward.1} parent=0 // pred_fallthru
    _
  // Predicated region
  $region14: #{gcn_lstm_forward.1} parent=0 // pred_check
    _
  $region15: #{gcn_lstm_forward.1} parent=0 // pred_check_branch
    %30 = sbr.rel (0) target = $region17
  $region16: #{gcn_lstm_forward.1} parent=0 // pred_region
    _
  $region17: #{gcn_lstm_forward.1} parent=0 // pred_fallthru
    _
  // Predicated region
  $region18: #{gcn_lstm_forward.1} parent=0 // pred_check
    _
  $region19: #{gcn_lstm_forward.1} parent=0 // pred_check_branch
    %32 = sbr.rel (0) target = $region21
  $region20: #{gcn_lstm_forward.1} parent=0 // pred_region
    _
  $region21: #{gcn_lstm_forward.1} parent=0 // pred_fallthru
    _
  // Predicated region
  $region22: #{gcn_lstm_forward.1} parent=0 // pred_check
    _
  $region23: #{gcn_lstm_forward.1} parent=0 // pred_check_branch
    %34 = sbr.rel (0) target = $region25
  $region24: #{gcn_lstm_forward.1} parent=0 // pred_region
    _
  $region25: #{gcn_lstm_forward.1} parent=0 // pred_fallthru
    _
  // Predicated region
  $region26: #{gcn_lstm_forward.1} parent=0 // pred_check
    _
  $region27: #{gcn_lstm_forward.1} parent=0 // pred_check_branch
    %36 = sbr.rel (0) target = $region29
  $region28: #{gcn_lstm_forward.1} parent=0 // pred_region
    _
  $region29: #{gcn_lstm_forward.1} parent=0 // pred_fallthru
    _
  // Predicated region
  $region30: #{gcn_lstm_forward.1} parent=0 // pred_check
    _
  $region31: #{gcn_lstm_forward.1} parent=0 // pred_check_branch
    %38 = sbr.rel (0) target = $region33
  $region32: #{gcn_lstm_forward.1} parent=0 // pred_region
    _
  $region33: #{gcn_lstm_forward.1} parent=0 // pred_fallthru
    _
  // Predicated region
  $region34: #{gcn_lstm_forward.1} parent=0 // pred_check
    _
  $region35: #{gcn_lstm_forward.1} parent=0 // pred_check_branch
    %40 = sbr.rel (0) target = $region37
  $region36: #{gcn_lstm_forward.1} parent=0 // pred_region
    _
  $region37: #{gcn_lstm_forward.1} parent=0 // pred_fallthru
    _
  // Predicated region
  $region38: #{gcn_lstm_forward.1} parent=0 // pred_check
    _
  $region39: #{gcn_lstm_forward.1} parent=0 // pred_check_branch
    %42 = sbr.rel (0) target = $region41
  $region40: #{gcn_lstm_forward.1} parent=0 // pred_region
    _
  $region41: #{gcn_lstm_forward.1} parent=0 // pred_fallthru
    _
  // Predicated region
  $region42: #{gcn_lstm_forward.1} parent=0 // pred_check
    _
  $region43: #{gcn_lstm_forward.1} parent=0 // pred_check_branch
    %44 = sbr.rel (0) target = $region45
  $region44: #{gcn_lstm_forward.1} parent=0 // pred_region
    _
  $region45: #{gcn_lstm_forward.1} parent=0 // pred_fallthru
    _
  // Predicated region
  $region46: #{gcn_lstm_forward.1} parent=0 // pred_check
    _
  $region47: #{gcn_lstm_forward.1} parent=0 // pred_check_branch
    %46 = sbr.rel (0) target = $region49
  $region48: #{gcn_lstm_forward.1} parent=0 // pred_region
    _
  $region49: #{gcn_lstm_forward.1} parent=0 // pred_fallthru
    _
  // Predicated region
  $region50: #{gcn_lstm_forward.1} parent=0 // pred_check
    _
  $region51: #{gcn_lstm_forward.1} parent=0 // pred_check_branch
    %48 = sbr.rel (0) target = $region53
  $region52: #{gcn_lstm_forward.1} parent=0 // pred_region
    _
  $region53: #{gcn_lstm_forward.1} parent=0 // pred_fallthru
    _
  // Predicated region
  $region54: #{gcn_lstm_forward.1} parent=0 // pred_check
    _
  $region55: #{gcn_lstm_forward.1} parent=0 // pred_check_branch
    %50 = sbr.rel (0) target = $region57
  $region56: #{gcn_lstm_forward.1} parent=0 // pred_region
    _
  $region57: #{gcn_lstm_forward.1} parent=0 // pred_fallthru
    _
  // Predicated region
  $region58: #{gcn_lstm_forward.1} parent=0 // pred_check
    _
  $region59: #{gcn_lstm_forward.1} parent=0 // pred_check_branch
    %52 = sbr.rel (0) target = $region61
  $region60: #{gcn_lstm_forward.1} parent=0 // pred_region
    _
  $region61: #{gcn_lstm_forward.1} parent=0 // pred_fallthru
    _
  // Predicated region
  $region62: #{gcn_lstm_forward.1} parent=0 // pred_check
    _
  $region63: #{gcn_lstm_forward.1} parent=0 // pred_check_branch
    %54 = sbr.rel (0) target = $region65
  $region64: #{gcn_lstm_forward.1} parent=0 // pred_region
    _
  $region65: #{gcn_lstm_forward.1} parent=0 // pred_fallthru
    _
  // Predicated region
  $region66: #{gcn_lstm_forward.1} parent=0 // pred_check
    _
  $region67: #{gcn_lstm_forward.1} parent=0 // pred_check_branch
    %56 = sbr.rel (0) target = $region69
  $region68: #{gcn_lstm_forward.1} parent=0 // pred_region
    _
  $region69: #{gcn_lstm_forward.1} parent=0 // pred_fallthru
    _
  // Predicated region
  $region70: #{gcn_lstm_forward.1} parent=0 // pred_check
    _
  $region71: #{gcn_lstm_forward.1} parent=0 // pred_check_branch
    %58 = sbr.rel (0) target = $region73
  $region72: #{gcn_lstm_forward.1} parent=0 // pred_region
    _
  $region73: #{gcn_lstm_forward.1} parent=0 // pred_fallthru
    _
  %v60 = vld [vmem:[%s0] sm:$0xf]
  %v61 = vld [vmem:[%s0 + $0x4] sm:$0xf]
  %v62 = vld [vmem:[%s1] sm:$0xf]
  %v63 = vld [vmem:[%s1 + $0x4] sm:$0xf]
  %v64 = vld [vmem:[%s2] sm:$0xf]
  %v65 = vld [vmem:[%s2 + $0x4] sm:$0xf]
  %v66 = vld [vmem:[%s2 + $0x8] sm:$0xf]
  %v67 = vld [vmem:[%s2 + $0xc] sm:$0xf]
  %v68 = vld [vmem:[%s2 + $0x10] sm:$0xf]
  %v69 = vld [vmem:[%s2 + $0x14] sm:$0xf]
  %v70 = vld [vmem:[%s2 + $0x18] sm:$0xf]
  %v71 = vld [vmem:[%s2 + $0x1c] sm:$0xf]
  %v72 = vld [vmem:[%s2 + $0x20] sm:$0xf]
  %v73 = vld [vmem:[%s2 + $0x24] sm:$0xf]
  %v74 = vld [vmem:[%s2 + $0x28] sm:$0xf]
  %v75 = vld [vmem:[%s2 + $0x2c] sm:$0xf]
  %v76 = vld [vmem:[%s2 + $0x30] sm:$0xf]
  %v77 = vld [vmem:[%s2 + $0x34] sm:$0xf]
  %v78 = vld [vmem:[%s2 + $0x38] sm:$0xf]
  %v79 = vld [vmem:[%s2 + $0x3c] sm:$0xf]
  %v82 = vunpack.c.l.b16 %v62
  %v83 = vunpack.c.l.b16 %v63
  %v84 = vpack.c.b16 %v83, %v82
  %v102 = vunpack.c.l.b16 %v64
  %v103 = vunpack.c.l.b16 %v65
  %v104 = vunpack.c.l.b16 %v66
  %v105 = vunpack.c.l.b16 %v67
  %v106 = vunpack.c.l.b16 %v68
  %v107 = vunpack.c.l.b16 %v69
  %v108 = vunpack.c.l.b16 %v70
  %v109 = vunpack.c.l.b16 %v71
  %v110 = vunpack.c.l.b16 %v72
  %v111 = vunpack.c.l.b16 %v73
  %v112 = vunpack.c.l.b16 %v74
  %v113 = vunpack.c.l.b16 %v75
  %v114 = vunpack.c.l.b16 %v76
  %v115 = vunpack.c.l.b16 %v77
  %v116 = vunpack.c.l.b16 %v78
  %v117 = vunpack.c.l.b16 %v79
  %v118 = vpack.c.b16 %v103, %v102
  %v119 = vpack.c.b16 %v105, %v104
  %v120 = vpack.c.b16 %v107, %v106
  %v121 = vpack.c.b16 %v109, %v108
  %v122 = vpack.c.b16 %v111, %v110
  %v123 = vpack.c.b16 %v113, %v112
  %v124 = vpack.c.b16 %v115, %v114
  %v125 = vpack.c.b16 %v117, %v116
  %134 = vmatpush.bf16.msra.mxu0 %v125
  %135 = vmatpush.bf16.msra.mxu0 %v124
  %136 = vmatpush.bf16.msra.mxu0 %v123
  %137 = vmatpush.bf16.msra.mxu0 %v122
  %138 = vmatpush.bf16.msra.mxu0 %v121
  %139 = vmatpush.bf16.msra.mxu0 %v120
  %140 = vmatpush.bf16.msra.mxu0 %v119
  %141 = vmatpush.bf16.msra.mxu0 %v118
  %142 = vmatmul.bf16.gmra.mxu0 %v84
  %v143 = vpop.f32.mrf.mxu0
  %v144 = vadd.f32 0.0, %v143
  %v145 = vpop.f32.mrf.mxu0
  %v146 = vadd.f32 0.0, %v145
  %147 = vdwg.mxu0
  %v148 = vpack.c.bf16 %v146, %v144
  %v149 = vld [vmem:[%s3] sm:$0x1]
  %v151 = vperm.slane %v149, 0
  %v155 = vunpack.c.l.b16 %v60
  %v156 = vunpack.c.l.b16 %v61
  %v157 = vpack.c.b16 %v156, %v155
  %vm158 = vcmask 130048
  %v160 = vsel %vm158, %v157, 0
  %162 = vmatpush.bf16.msra.mxu0 0
  %163 = vmatpush.bf16.msra.mxu0 0
  %164 = vmatpush.bf16.msra.mxu0 0
  %165 = vmatpush.bf16.msra.mxu0 0
  %166 = vmatpush.bf16.msra.mxu0 0
  %167 = vmatpush.bf16.msra.mxu0 0
  %168 = vmatpush.bf16.msra.mxu0 0
  %169 = vmatpush.bf16.msra.mxu0 %v148
  %170 = vmatmul.bf16.gmra.mxu0 %v160
  %v171 = vpop.f32.mrf.mxu0
  %v172 = vadd.f32 %v151, %v171
  %v173 = vpop.f32.mrf.mxu0
  %v174 = vadd.f32 %v151, %v173
  %175 = vdwg.mxu0
  %vm176 = vcmask 261120
  %v177 = vsel %vm176, %v172, 0.0
  %v178 = vsel %vm176, %v174, 0.0
  %v179 = vadd.f32 %v177, %v178
  %v180 = vrot.slane %v179, 4
  %v181 = vadd.f32 %v179, %v180
  %v182 = vrot.slane %v181, 2
  %v183 = vadd.f32 %v181, %v182
  %v184 = vrot.slane %v183, 1
  %v185 = vadd.f32 %v183, %v184
  %v186 = vrcp.pop 16.0
  %v187 = vmul.f32 16.0, %v186
  %v188 = vsub.f32 1.0, %v187
  %v189 = vmul.f32 %v186, %v188
  %v190 = vadd.f32 %v186, %v189
  %vm191 = vweird.f32 %v186
  %v192 = vsel %vm191, %v186, %v190
  %v193 = vmul.f32 %v185, %v192
  %v194 = vsub.f32 %v172, %v193
  %v195 = vsub.f32 %v174, %v193
  %v196 = vmul.f32 %v194, %v194
  %v197 = vmul.f32 %v195, %v195
  %v198 = vsel %vm176, %v196, 0.0
  %v199 = vsel %vm176, %v197, 0.0
  %v200 = vadd.f32 %v198, %v199
  %v201 = vrot.slane %v200, 4
  %v202 = vadd.f32 %v200, %v201
  %v203 = vrot.slane %v202, 2
  %v204 = vadd.f32 %v202, %v203
  %v205 = vrot.slane %v204, 1
  %v206 = vadd.f32 %v204, %v205
  %v207 = vmul.f32 %v206, %v192
  %v208 = vadd.f32 %v207, 1e-05
  %v209 = vrsqrt.pop %v208
  %v210 = vmul.f32 %v209, %v208
  %v211 = vmul.f32 %v210, %v209
  %v212 = vmul.f32 0.5, %v211
  %v213 = vsub.f32 1.5, %v212
  %v214 = vmul.f32 %v209, %v213
  %vm215 = vweird.f32 %v208
  %vm216 = vweird.f32 %v209
  %vm217 = vmor %vm215, %vm216
  %v218 = vsel %vm217, %v209, %v214
  %v219 = vmul.f32 %v194, %v218
  %v220 = vmul.f32 %v195, %v218
  %v221 = vld [vmem:[%s4] sm:$0x1]
  %v223 = vperm.slane %v221, 0
  %v225 = vmul.f32 %v219, %v223
  %v226 = vmul.f32 %v220, %v223
  %v227 = vld [vmem:[%s5] sm:$0x1]
  %v229 = vperm.slane %v227, 0
  %v231 = vadd.f32 %v225, %v229
  %v232 = vadd.f32 %v226, %v229
  %v233 = vmax.f32 %v231, 0.0
  %v234 = vmax.f32 %v232, 0.0
  %v235 = vpack.c.bf16 %v234, %v233
  %v236 = vld [vmem:[%s6] sm:$0xf]
  %v237 = vld [vmem:[%s6 + $0x4] sm:$0xf]
  %v238 = vld [vmem:[%s6 + $0x8] sm:$0xf]
  %v239 = vld [vmem:[%s6 + $0xc] sm:$0xf]
  %v244 = vunpack.c.l.b16 %v236
  %v245 = vunpack.c.l.b16 %v237
  %v246 = vunpack.c.l.b16 %v238
  %v247 = vunpack.c.l.b16 %v239
  %v248 = vpack.c.b16 %v245, %v244
  %v249 = vpack.c.b16 %v247, %v246
  %v253 = vsel %vm176, %v235, 0
  %255 = vmatpush.bf16.msra.mxu0 0
  %256 = vmatpush.bf16.msra.mxu0 0
  %257 = vmatpush.bf16.msra.mxu0 0
  %258 = vmatpush.bf16.msra.mxu0 0
  %259 = vmatpush.bf16.msra.mxu0 0
  %260 = vmatpush.bf16.msra.mxu0 0
  %261 = vmatpush.bf16.msra.mxu0 %v249
  %262 = vmatpush.bf16.msra.mxu0 %v248
  %263 = vmatmul.bf16.gmra.mxu0 %v253
  %v264 = vpop.f32.mrf.mxu0
  %v265 = vadd.f32 0.0, %v264
  %v266 = vpop.f32.mrf.mxu0
  %v267 = vadd.f32 0.0, %v266
  %268 = vdwg.mxu0
  %v269 = vpack.c.bf16 %v267, %v265
  %v270 = vld [vmem:[%s7] sm:$0x1]
  %v272 = vperm.slane %v270, 0
  %274 = vmatpush.bf16.msra.mxu0 0
  %275 = vmatpush.bf16.msra.mxu0 0
  %276 = vmatpush.bf16.msra.mxu0 0
  %277 = vmatpush.bf16.msra.mxu0 0
  %278 = vmatpush.bf16.msra.mxu0 0
  %279 = vmatpush.bf16.msra.mxu0 0
  %280 = vmatpush.bf16.msra.mxu0 0
  %281 = vmatpush.bf16.msra.mxu0 %v269
  %282 = vmatmul.bf16.gmra.mxu0 %v160
  %v283 = vpop.f32.mrf.mxu0
  %v284 = vadd.f32 %v272, %v283
  %v285 = vpop.f32.mrf.mxu0
  %v286 = vadd.f32 %v272, %v285
  %287 = vdwg.mxu0
  %v288 = vsel %vm176, %v284, 0.0
  %v289 = vsel %vm176, %v286, 0.0
  %v290 = vadd.f32 %v288, %v289
  %v291 = vrot.slane %v290, 4
  %v292 = vadd.f32 %v290, %v291
  %v293 = vrot.slane %v292, 2
  %v294 = vadd.f32 %v292, %v293
  %v295 = vrot.slane %v294, 1
  %v296 = vadd.f32 %v294, %v295
  %v297 = vmul.f32 %v296, %v192
  %v298 = vsub.f32 %v284, %v297
  %v299 = vsub.f32 %v286, %v297
  %v300 = vmul.f32 %v298, %v298
  %v301 = vmul.f32 %v299, %v299
  %v302 = vsel %vm176, %v300, 0.0
  %v303 = vsel %vm176, %v301, 0.0
  %v304 = vadd.f32 %v302, %v303
  %v305 = vrot.slane %v304, 4
  %v306 = vadd.f32 %v304, %v305
  %v307 = vrot.slane %v306, 2
  %v308 = vadd.f32 %v306, %v307
  %v309 = vrot.slane %v308, 1
  %v310 = vadd.f32 %v308, %v309
  %v311 = vmul.f32 %v310, %v192
  %v312 = vadd.f32 %v311, 1e-05
  %v313 = vrsqrt.pop %v312
  %v314 = vmul.f32 %v313, %v312
  %v315 = vmul.f32 %v314, %v313
  %v316 = vmul.f32 0.5, %v315
  %v317 = vsub.f32 1.5, %v316
  %v318 = vmul.f32 %v313, %v317
  %vm319 = vweird.f32 %v312
  %vm320 = vweird.f32 %v313
  %vm321 = vmor %vm319, %vm320
  %v322 = vsel %vm321, %v313, %v318
  %v323 = vmul.f32 %v298, %v322
  %v324 = vmul.f32 %v299, %v322
  %v325 = vld [vmem:[%s8] sm:$0x1]
  %v327 = vperm.slane %v325, 0
  %v329 = vmul.f32 %v323, %v327
  %v330 = vmul.f32 %v324, %v327
  %v331 = vld [vmem:[%s9] sm:$0x1]
  %v333 = vperm.slane %v331, 0
  %v335 = vadd.f32 %v329, %v333
  %v336 = vadd.f32 %v330, %v333
  %v337 = vmax.f32 %v335, 0.0
  %v338 = vmax.f32 %v336, 0.0
  %v339 = vpack.c.bf16 %v338, %v337
  %v340 = vld [vmem:[%s10] sm:$0xf]
  %v341 = vld [vmem:[%s10 + $0x4] sm:$0xf]
  %v342 = vld [vmem:[%s10 + $0x8] sm:$0xf]
  %v343 = vld [vmem:[%s10 + $0xc] sm:$0xf]
  %v344 = vld [vmem:[%s12] sm:$0x1]
  %v346 = vperm.slane %v344, 0
  %v352 = vunpack.c.l.b16 %v340
  %v353 = vunpack.c.l.b16 %v341
  %v354 = vunpack.c.l.b16 %v342
  %v355 = vunpack.c.l.b16 %v343
  %v356 = vpack.c.b16 %v353, %v352
  %v357 = vpack.c.b16 %v355, %v354
  %v361 = vsel %vm176, %v339, 0
  %363 = vmatpush.bf16.msra.mxu0 0
  %364 = vmatpush.bf16.msra.mxu0 0
  %365 = vmatpush.bf16.msra.mxu0 0
  %366 = vmatpush.bf16.msra.mxu0 0
  %367 = vmatpush.bf16.msra.mxu0 0
  %368 = vmatpush.bf16.msra.mxu0 0
  %369 = vmatpush.bf16.msra.mxu0 %v357
  %370 = vmatpush.bf16.msra.mxu0 %v356
  %371 = vmatmul.bf16.gmra.mxu0 %v361
  %v372 = vpop.f32.mrf.mxu0
  %v373 = vadd.f32 %v346, %v372
  %v374 = vpop.f32.mrf.mxu0
  %v375 = vadd.f32 %v346, %v374
  %376 = vdwg.mxu0
  %v377 = vld [vmem:[%s11] sm:$0xf]
  %v378 = vld [vmem:[%s11 + $0x4] sm:$0xf]
  %v379 = vld [vmem:[%s11 + $0x8] sm:$0xf]
  %v380 = vld [vmem:[%s11 + $0xc] sm:$0xf]
  %v385 = vunpack.c.l.b16 %v377
  %v386 = vunpack.c.l.b16 %v378
  %v387 = vunpack.c.l.b16 %v379
  %v388 = vunpack.c.l.b16 %v380
  %v389 = vpack.c.b16 %v386, %v385
  %v390 = vpack.c.b16 %v388, %v387
  %v394 = vsel %vm176, 0, 0
  %396 = vmatpush.bf16.msra.mxu0 0
  %397 = vmatpush.bf16.msra.mxu0 0
  %398 = vmatpush.bf16.msra.mxu0 0
  %399 = vmatpush.bf16.msra.mxu0 0
  %400 = vmatpush.bf16.msra.mxu0 0
  %401 = vmatpush.bf16.msra.mxu0 0
  %402 = vmatpush.bf16.msra.mxu0 %v390
  %403 = vmatpush.bf16.msra.mxu0 %v389
  %404 = vmatmul.bf16.gmra.mxu0 %v394
  %v405 = vpop.f32.mrf.mxu0
  %v406 = vadd.f32 0.0, %v405
  %v407 = vpop.f32.mrf.mxu0
  %408 = vdwg.mxu0
  %v409 = vadd.f32 %v373, %v406
  %v410 = vxor.u32 %v409, 2147483648
  %v411 = vmul.f32 %v410, 1.442695
  %v412 = vpow.pop %v411
  %v413 = vadd.f32 %v412, 1.0
  %v414 = vrcp.pop %v413
  %v415 = vmul.f32 %v413, %v414
  %v416 = vsub.f32 1.0, %v415
  %v417 = vmul.f32 %v414, %v416
  %v418 = vadd.f32 %v414, %v417
  %vm419 = vweird.f32 %v413
  %vm420 = vweird.f32 %v414
  %vm421 = vmor %vm419, %vm420
  %v422 = vsel %vm421, %v414, %v418
  %v423 = vand.u32 2147483647, %v413
  %vm424 = vcmp.eq.f32.partialorder %v423, 8.507059e+37
  %v425 = vand.u32 %v413, 2147483648
  %v426 = vor.u32 1.1754944e-38, %v425
  %v427 = vsel %vm424, %v426, %v422
  %v428 = vmul.f32 1.0, %v427
  %v429 = vtanh.pop %v409
  %v430 = vmul.f32 %v428, 0.0
  %432 = vrot.lane.b32.xlu0 %v429, 32
  %v433 = vpop.permute.xlu0 %432
  %v435 = vmul.f32 %v428, %v433
  %437 = vrot.lane.b32.xlu0 %v435, 32
  %v438 = vpop.permute.xlu0 %437
  %v440 = vadd.f32 %v430, %v438
  %v441 = vtanh.pop %v440
  %443 = vrot.lane.b32.xlu0 %v441, 32
  %v444 = vpop.permute.xlu0 %443
  %v446 = vmul.f32 %v428, %v444
  %v447 = vpack.c.bf16 %v446, %v446
  %v448 = vld [vmem:[%s13] sm:$0xf]
  %v449 = vld [vmem:[%s13 + $0x4] sm:$0xf]
  %v450 = vld [vmem:[%s13 + $0x8] sm:$0xf]
  %v451 = vld [vmem:[%s13 + $0xc] sm:$0xf]
  %v452 = vld [vmem:[%s15] sm:$0x1]
  %454 = vrot.lane.b32.xlu0 %v447, 64
  %v455 = vpop.permute.xlu0 %454
  %v460 = vunpack.c.l.b16 %v448
  %v461 = vunpack.c.l.b16 %v449
  %v462 = vunpack.c.l.b16 %v450
  %v463 = vunpack.c.l.b16 %v451
  %v464 = vpack.c.b16 %v461, %v460
  %v465 = vpack.c.b16 %v463, %v462
  %v469 = vsel %vm176, %v455, 0
  %471 = vmatpush.bf16.msra.mxu0 0
  %472 = vmatpush.bf16.msra.mxu0 0
  %473 = vmatpush.bf16.msra.mxu0 0
  %474 = vmatpush.bf16.msra.mxu0 0
  %475 = vmatpush.bf16.msra.mxu0 0
  %476 = vmatpush.bf16.msra.mxu0 0
  %477 = vmatpush.bf16.msra.mxu0 %v465
  %478 = vmatpush.bf16.msra.mxu0 %v464
  %479 = vmatmul.bf16.gmra.mxu0 %v469
  %v480 = vpop.f32.mrf.mxu0
  %v481 = vadd.f32 %v452, %v480
  %v482 = vpop.f32.mrf.mxu0
  %483 = vdwg.mxu0
  %v484 = vld [vmem:[%s14] sm:$0xf]
  %v485 = vld [vmem:[%s14 + $0x4] sm:$0xf]
  %v486 = vld [vmem:[%s14 + $0x8] sm:$0xf]
  %v487 = vld [vmem:[%s14 + $0xc] sm:$0xf]
  %v492 = vunpack.c.l.b16 %v484
  %v493 = vunpack.c.l.b16 %v485
  %v494 = vunpack.c.l.b16 %v486
  %v495 = vunpack.c.l.b16 %v487
  %v496 = vpack.c.b16 %v493, %v492
  %v497 = vpack.c.b16 %v495, %v494
  %500 = vmatpush.bf16.msra.mxu0 0
  %501 = vmatpush.bf16.msra.mxu0 0
  %502 = vmatpush.bf16.msra.mxu0 0
  %503 = vmatpush.bf16.msra.mxu0 0
  %504 = vmatpush.bf16.msra.mxu0 0
  %505 = vmatpush.bf16.msra.mxu0 0
  %506 = vmatpush.bf16.msra.mxu0 %v497
  %507 = vmatpush.bf16.msra.mxu0 %v496
  %508 = vmatmul.bf16.gmra.mxu0 %v394
  %v509 = vpop.f32.mrf.mxu0
  %v510 = vadd.f32 0.0, %v509
  %v511 = vpop.f32.mrf.mxu0
  %512 = vdwg.mxu0
  %v513 = vadd.f32 %v481, %v510
  %v514 = vxor.u32 %v513, 2147483648
  %v515 = vmul.f32 %v514, 1.442695
  %v516 = vpow.pop %v515
  %v517 = vadd.f32 %v516, 1.0
  %v518 = vrcp.pop %v517
  %v519 = vmul.f32 %v517, %v518
  %v520 = vsub.f32 1.0, %v519
  %v521 = vmul.f32 %v518, %v520
  %v522 = vadd.f32 %v518, %v521
  %vm523 = vweird.f32 %v517
  %vm524 = vweird.f32 %v518
  %vm525 = vmor %vm523, %vm524
  %v526 = vsel %vm525, %v518, %v522
  %v527 = vand.u32 2147483647, %v517
  %vm528 = vcmp.eq.f32.partialorder %v527, 8.507059e+37
  %v529 = vand.u32 %v517, 2147483648
  %v530 = vor.u32 1.1754944e-38, %v529
  %v531 = vsel %vm528, %v530, %v526
  %v532 = vmul.f32 1.0, %v531
  %v533 = vtanh.pop %v513
  %v534 = vmul.f32 %v532, 0.0
  %536 = vrot.lane.b32.xlu0 %v533, 32
  %v537 = vpop.permute.xlu0 %536
  %v539 = vmul.f32 %v532, %v537
  %541 = vrot.lane.b32.xlu0 %v539, 32
  %v542 = vpop.permute.xlu0 %541
  %v544 = vadd.f32 %v534, %v542
  %v545 = vtanh.pop %v544
  %547 = vrot.lane.b32.xlu0 %v545, 32
  %v548 = vpop.permute.xlu0 %547
  %v550 = vmul.f32 %v532, %v548
  %551 = vmatpush.bf16.msra.mxu0 0
  %552 = vmatpush.bf16.msra.mxu0 0
  %553 = vmatpush.bf16.msra.mxu0 0
  %554 = vmatpush.bf16.msra.mxu0 0
  %555 = vmatpush.bf16.msra.mxu0 0
  %556 = vmatpush.bf16.msra.mxu0 0
  %557 = vmatpush.bf16.msra.mxu0 %v390
  %558 = vmatpush.bf16.msra.mxu0 %v389
  %559 = vmatmul.bf16.gmra.mxu0 %v469
  %v560 = vpop.f32.mrf.mxu0
  %v561 = vadd.f32 0.0, %v560
  %v562 = vpop.f32.mrf.mxu0
  %563 = vdwg.mxu0
  %v565 = vrot.slane %v561, 7
  %v567 = vadd.f32 %v373, %v565
  %v568 = vxor.u32 %v567, 2147483648
  %v569 = vmul.f32 %v568, 1.442695
  %v570 = vpow.pop %v569
  %v571 = vadd.f32 %v570, 1.0
  %v572 = vrcp.pop %v571
  %v573 = vmul.f32 %v571, %v572
  %v574 = vsub.f32 1.0, %v573
  %v575 = vmul.f32 %v572, %v574
  %v576 = vadd.f32 %v572, %v575
  %vm577 = vweird.f32 %v571
  %vm578 = vweird.f32 %v572
  %vm579 = vmor %vm577, %vm578
  %v580 = vsel %vm579, %v572, %v576
  %v581 = vand.u32 2147483647, %v571
  %vm582 = vcmp.eq.f32.partialorder %v581, 8.507059e+37
  %v583 = vand.u32 %v571, 2147483648
  %v584 = vor.u32 1.1754944e-38, %v583
  %v585 = vsel %vm582, %v584, %v580
  %v586 = vmul.f32 1.0, %v585
  %v587 = vtanh.pop %v567
  %v589 = vrot.slane %v440, 7
  %v591 = vmul.f32 %v586, %v589
  %593 = vrot.lane.b32.xlu0 %v587, 32
  %v594 = vpop.permute.xlu0 %593
  %v596 = vmul.f32 %v586, %v594
  %598 = vrot.lane.b32.xlu0 %v596, 32
  %v599 = vpop.permute.xlu0 %598
  %v601 = vadd.f32 %v591, %v599
  %v602 = vtanh.pop %v601
  %604 = vrot.lane.b32.xlu0 %v602, 32
  %v605 = vpop.permute.xlu0 %604
  %v607 = vmul.f32 %v586, %v605
  %v608 = vpack.c.bf16 %v607, %v607
  %v610 = vshrl.u32 %v608, 16
  %612 = vrot.lane.b32.xlu0 %v610, 64
  %v613 = vpop.permute.xlu0 %612
  %v615 = vsel %vm176, %v613, 0
  %617 = vmatpush.bf16.msra.mxu0 0
  %618 = vmatpush.bf16.msra.mxu0 0
  %619 = vmatpush.bf16.msra.mxu0 0
  %620 = vmatpush.bf16.msra.mxu0 0
  %621 = vmatpush.bf16.msra.mxu0 0
  %622 = vmatpush.bf16.msra.mxu0 0
  %623 = vmatpush.bf16.msra.mxu0 %v465
  %624 = vmatpush.bf16.msra.mxu0 %v464
  %625 = vmatmul.bf16.gmra.mxu0 %v615
  %v626 = vpop.f32.mrf.mxu0
  %v627 = vadd.f32 %v452, %v626
  %v628 = vpop.f32.mrf.mxu0
  %629 = vdwg.mxu0
  %v630 = vpack.c.bf16 %v550, %v550
  %632 = vrot.lane.b32.xlu0 %v630, 64
  %v633 = vpop.permute.xlu0 %632
  %v635 = vsel %vm176, %v633, 0
  %637 = vmatpush.bf16.msra.mxu0 0
  %638 = vmatpush.bf16.msra.mxu0 0
  %639 = vmatpush.bf16.msra.mxu0 0
  %640 = vmatpush.bf16.msra.mxu0 0
  %641 = vmatpush.bf16.msra.mxu0 0
  %642 = vmatpush.bf16.msra.mxu0 0
  %643 = vmatpush.bf16.msra.mxu0 %v497
  %644 = vmatpush.bf16.msra.mxu0 %v496
  %645 = vmatmul.bf16.gmra.mxu0 %v635
  %v646 = vpop.f32.mrf.mxu0
  %v647 = vadd.f32 0.0, %v646
  %v648 = vpop.f32.mrf.mxu0
  %649 = vdwg.mxu0
  %v650 = vadd.f32 %v627, %v647
  %v651 = vxor.u32 %v650, 2147483648
  %v652 = vmul.f32 %v651, 1.442695
  %v653 = vpow.pop %v652
  %v654 = vadd.f32 %v653, 1.0
  %v655 = vrcp.pop %v654
  %v656 = vmul.f32 %v654, %v655
  %v657 = vsub.f32 1.0, %v656
  %v658 = vmul.f32 %v655, %v657
  %v659 = vadd.f32 %v655, %v658
  %vm660 = vweird.f32 %v654
  %vm661 = vweird.f32 %v655
  %vm662 = vmor %vm660, %vm661
  %v663 = vsel %vm662, %v655, %v659
  %v664 = vand.u32 2147483647, %v654
  %vm665 = vcmp.eq.f32.partialorder %v664, 8.507059e+37
  %v666 = vand.u32 %v654, 2147483648
  %v667 = vor.u32 1.1754944e-38, %v666
  %v668 = vsel %vm665, %v667, %v663
  %v669 = vmul.f32 1.0, %v668
  %v670 = vtanh.pop %v650
  %v671 = vmul.f32 %v669, %v544
  %673 = vrot.lane.b32.xlu0 %v670, 32
  %v674 = vpop.permute.xlu0 %673
  %v676 = vmul.f32 %v669, %v674
  %678 = vrot.lane.b32.xlu0 %v676, 32
  %v679 = vpop.permute.xlu0 %678
  %v681 = vadd.f32 %v671, %v679
  %v682 = vtanh.pop %v681
  %684 = vrot.lane.b32.xlu0 %v682, 32
  %v685 = vpop.permute.xlu0 %684
  %v687 = vmul.f32 %v669, %v685
  %688 = vmatpush.bf16.msra.mxu0 0
  %689 = vmatpush.bf16.msra.mxu0 0
  %690 = vmatpush.bf16.msra.mxu0 0
  %691 = vmatpush.bf16.msra.mxu0 0
  %692 = vmatpush.bf16.msra.mxu0 0
  %693 = vmatpush.bf16.msra.mxu0 0
  %694 = vmatpush.bf16.msra.mxu0 %v390
  %695 = vmatpush.bf16.msra.mxu0 %v389
  %696 = vmatmul.bf16.gmra.mxu0 %v615
  %v697 = vpop.f32.mrf.mxu0
  %v698 = vadd.f32 0.0, %v697
  %v699 = vpop.f32.mrf.mxu0
  %700 = vdwg.mxu0
  %v702 = vrot.slane %v698, 6
  %v704 = vadd.f32 %v373, %v702
  %v705 = vxor.u32 %v704, 2147483648
  %v706 = vmul.f32 %v705, 1.442695
  %v707 = vpow.pop %v706
  %v708 = vadd.f32 %v707, 1.0
  %v709 = vrcp.pop %v708
  %v710 = vmul.f32 %v708, %v709
  %v711 = vsub.f32 1.0, %v710
  %v712 = vmul.f32 %v709, %v711
  %v713 = vadd.f32 %v709, %v712
  %vm714 = vweird.f32 %v708
  %vm715 = vweird.f32 %v709
  %vm716 = vmor %vm714, %vm715
  %v717 = vsel %vm716, %v709, %v713
  %v718 = vand.u32 2147483647, %v708
  %vm719 = vcmp.eq.f32.partialorder %v718, 8.507059e+37
  %v720 = vand.u32 %v708, 2147483648
  %v721 = vor.u32 1.1754944e-38, %v720
  %v722 = vsel %vm719, %v721, %v717
  %v723 = vmul.f32 1.0, %v722
  %v724 = vtanh.pop %v704
  %v726 = vrot.slane %v601, 7
  %v728 = vmul.f32 %v723, %v726
  %730 = vrot.lane.b32.xlu0 %v724, 32
  %v731 = vpop.permute.xlu0 %730
  %v733 = vmul.f32 %v723, %v731
  %735 = vrot.lane.b32.xlu0 %v733, 32
  %v736 = vpop.permute.xlu0 %735
  %v738 = vadd.f32 %v728, %v736
  %v739 = vtanh.pop %v738
  %741 = vrot.lane.b32.xlu0 %v739, 32
  %v742 = vpop.permute.xlu0 %741
  %v744 = vmul.f32 %v723, %v742
  %v745 = vpack.c.bf16 %v744, %v744
  %v747 = vrot.slane %v745, 1
  %748 = vrot.lane.b32.xlu0 %v747, 64
  %v749 = vpop.permute.xlu0 %748
  %v751 = vsel %vm176, %v749, 0
  %753 = vmatpush.bf16.msra.mxu0 0
  %754 = vmatpush.bf16.msra.mxu0 0
  %755 = vmatpush.bf16.msra.mxu0 0
  %756 = vmatpush.bf16.msra.mxu0 0
  %757 = vmatpush.bf16.msra.mxu0 0
  %758 = vmatpush.bf16.msra.mxu0 0
  %759 = vmatpush.bf16.msra.mxu0 %v465
  %760 = vmatpush.bf16.msra.mxu0 %v464
  %761 = vmatmul.bf16.gmra.mxu0 %v751
  %v762 = vpop.f32.mrf.mxu0
  %v763 = vadd.f32 %v452, %v762
  %v764 = vpop.f32.mrf.mxu0
  %765 = vdwg.mxu0
  %v766 = vpack.c.bf16 %v687, %v687
  %768 = vrot.lane.b32.xlu0 %v766, 64
  %v769 = vpop.permute.xlu0 %768
  %v771 = vsel %vm176, %v769, 0
  %773 = vmatpush.bf16.msra.mxu0 0
  %774 = vmatpush.bf16.msra.mxu0 0
  %775 = vmatpush.bf16.msra.mxu0 0
  %776 = vmatpush.bf16.msra.mxu0 0
  %777 = vmatpush.bf16.msra.mxu0 0
  %778 = vmatpush.bf16.msra.mxu0 0
  %779 = vmatpush.bf16.msra.mxu0 %v497
  %780 = vmatpush.bf16.msra.mxu0 %v496
  %781 = vmatmul.bf16.gmra.mxu0 %v771
  %v782 = vpop.f32.mrf.mxu0
  %v783 = vadd.f32 0.0, %v782
  %v784 = vpop.f32.mrf.mxu0
  %785 = vdwg.mxu0
  %v786 = vadd.f32 %v763, %v783
  %v787 = vxor.u32 %v786, 2147483648
  %v788 = vmul.f32 %v787, 1.442695
  %v789 = vpow.pop %v788
  %v790 = vadd.f32 %v789, 1.0
  %v791 = vrcp.pop %v790
  %v792 = vmul.f32 %v790, %v791
  %v793 = vsub.f32 1.0, %v792
  %v794 = vmul.f32 %v791, %v793
  %v795 = vadd.f32 %v791, %v794
  %vm796 = vweird.f32 %v790
  %vm797 = vweird.f32 %v791
  %vm798 = vmor %vm796, %vm797
  %v799 = vsel %vm798, %v791, %v795
  %v800 = vand.u32 2147483647, %v790
  %vm801 = vcmp.eq.f32.partialorder %v800, 8.507059e+37
  %v802 = vand.u32 %v790, 2147483648
  %v803 = vor.u32 1.1754944e-38, %v802
  %v804 = vsel %vm801, %v803, %v799
  %v805 = vmul.f32 1.0, %v804
  %v806 = vtanh.pop %v786
  %v807 = vmul.f32 %v805, %v681
  %809 = vrot.lane.b32.xlu0 %v806, 32
  %v810 = vpop.permute.xlu0 %809
  %v812 = vmul.f32 %v805, %v810
  %814 = vrot.lane.b32.xlu0 %v812, 32
  %v815 = vpop.permute.xlu0 %814
  %v817 = vadd.f32 %v807, %v815
  %v818 = vtanh.pop %v817
  %820 = vrot.lane.b32.xlu0 %v818, 32
  %v821 = vpop.permute.xlu0 %820
  %v823 = vmul.f32 %v805, %v821
  %824 = vmatpush.bf16.msra.mxu0 0
  %825 = vmatpush.bf16.msra.mxu0 0
  %826 = vmatpush.bf16.msra.mxu0 0
  %827 = vmatpush.bf16.msra.mxu0 0
  %828 = vmatpush.bf16.msra.mxu0 0
  %829 = vmatpush.bf16.msra.mxu0 0
  %830 = vmatpush.bf16.msra.mxu0 %v390
  %831 = vmatpush.bf16.msra.mxu0 %v389
  %832 = vmatmul.bf16.gmra.mxu0 %v751
  %v833 = vpop.f32.mrf.mxu0
  %v834 = vadd.f32 0.0, %v833
  %v835 = vpop.f32.mrf.mxu0
  %836 = vdwg.mxu0
  %v838 = vrot.slane %v834, 5
  %v840 = vadd.f32 %v373, %v838
  %v841 = vxor.u32 %v840, 2147483648
  %v842 = vmul.f32 %v841, 1.442695
  %v843 = vpow.pop %v842
  %v844 = vadd.f32 %v843, 1.0
  %v845 = vrcp.pop %v844
  %v846 = vmul.f32 %v844, %v845
  %v847 = vsub.f32 1.0, %v846
  %v848 = vmul.f32 %v845, %v847
  %v849 = vadd.f32 %v845, %v848
  %vm850 = vweird.f32 %v844
  %vm851 = vweird.f32 %v845
  %vm852 = vmor %vm850, %vm851
  %v853 = vsel %vm852, %v845, %v849
  %v854 = vand.u32 2147483647, %v844
  %vm855 = vcmp.eq.f32.partialorder %v854, 8.507059e+37
  %v856 = vand.u32 %v844, 2147483648
  %v857 = vor.u32 1.1754944e-38, %v856
  %v858 = vsel %vm855, %v857, %v853
  %v859 = vmul.f32 1.0, %v858
  %v860 = vtanh.pop %v840
  %v862 = vrot.slane %v738, 7
  %v864 = vmul.f32 %v859, %v862
  %866 = vrot.lane.b32.xlu0 %v860, 32
  %v867 = vpop.permute.xlu0 %866
  %v869 = vmul.f32 %v859, %v867
  %871 = vrot.lane.b32.xlu0 %v869, 32
  %v872 = vpop.permute.xlu0 %871
  %v874 = vadd.f32 %v864, %v872
  %v875 = vtanh.pop %v874
  %877 = vrot.lane.b32.xlu0 %v875, 32
  %v878 = vpop.permute.xlu0 %877
  %v880 = vmul.f32 %v859, %v878
  %v881 = vpack.c.bf16 %v880, %v880
  %v883 = vshrl.u32 %v881, 16
  %v885 = vrot.slane %v883, 1
  %886 = vrot.lane.b32.xlu0 %v885, 64
  %v887 = vpop.permute.xlu0 %886
  %v889 = vsel %vm176, %v887, 0
  %891 = vmatpush.bf16.msra.mxu0 0
  %892 = vmatpush.bf16.msra.mxu0 0
  %893 = vmatpush.bf16.msra.mxu0 0
  %894 = vmatpush.bf16.msra.mxu0 0
  %895 = vmatpush.bf16.msra.mxu0 0
  %896 = vmatpush.bf16.msra.mxu0 0
  %897 = vmatpush.bf16.msra.mxu0 %v465
  %898 = vmatpush.bf16.msra.mxu0 %v464
  %899 = vmatmul.bf16.gmra.mxu0 %v889
  %v900 = vpop.f32.mrf.mxu0
  %v901 = vadd.f32 %v452, %v900
  %v902 = vpop.f32.mrf.mxu0
  %903 = vdwg.mxu0
  %v904 = vpack.c.bf16 %v823, %v823
  %906 = vrot.lane.b32.xlu0 %v904, 64
  %v907 = vpop.permute.xlu0 %906
  %v909 = vsel %vm176, %v907, 0
  %911 = vmatpush.bf16.msra.mxu0 0
  %912 = vmatpush.bf16.msra.mxu0 0
  %913 = vmatpush.bf16.msra.mxu0 0
  %914 = vmatpush.bf16.msra.mxu0 0
  %915 = vmatpush.bf16.msra.mxu0 0
  %916 = vmatpush.bf16.msra.mxu0 0
  %917 = vmatpush.bf16.msra.mxu0 %v497
  %918 = vmatpush.bf16.msra.mxu0 %v496
  %919 = vmatmul.bf16.gmra.mxu0 %v909
  %v920 = vpop.f32.mrf.mxu0
  %v921 = vadd.f32 0.0, %v920
  %v922 = vpop.f32.mrf.mxu0
  %923 = vdwg.mxu0
  %v924 = vadd.f32 %v901, %v921
  %v925 = vxor.u32 %v924, 2147483648
  %v926 = vmul.f32 %v925, 1.442695
  %v927 = vpow.pop %v926
  %v928 = vadd.f32 %v927, 1.0
  %v929 = vrcp.pop %v928
  %v930 = vmul.f32 %v928, %v929
  %v931 = vsub.f32 1.0, %v930
  %v932 = vmul.f32 %v929, %v931
  %v933 = vadd.f32 %v929, %v932
  %vm934 = vweird.f32 %v928
  %vm935 = vweird.f32 %v929
  %vm936 = vmor %vm934, %vm935
  %v937 = vsel %vm936, %v929, %v933
  %v938 = vand.u32 2147483647, %v928
  %vm939 = vcmp.eq.f32.partialorder %v938, 8.507059e+37
  %v940 = vand.u32 %v928, 2147483648
  %v941 = vor.u32 1.1754944e-38, %v940
  %v942 = vsel %vm939, %v941, %v937
  %v943 = vmul.f32 1.0, %v942
  %v944 = vtanh.pop %v924
  %v945 = vmul.f32 %v943, %v817
  %947 = vrot.lane.b32.xlu0 %v944, 32
  %v948 = vpop.permute.xlu0 %947
  %v950 = vmul.f32 %v943, %v948
  %952 = vrot.lane.b32.xlu0 %v950, 32
  %v953 = vpop.permute.xlu0 %952
  %v955 = vadd.f32 %v945, %v953
  %v956 = vtanh.pop %v955
  %958 = vrot.lane.b32.xlu0 %v956, 32
  %v959 = vpop.permute.xlu0 %958
  %v961 = vmul.f32 %v943, %v959
  %962 = vmatpush.bf16.msra.mxu0 0
  %963 = vmatpush.bf16.msra.mxu0 0
  %964 = vmatpush.bf16.msra.mxu0 0
  %965 = vmatpush.bf16.msra.mxu0 0
  %966 = vmatpush.bf16.msra.mxu0 0
  %967 = vmatpush.bf16.msra.mxu0 0
  %968 = vmatpush.bf16.msra.mxu0 %v390
  %969 = vmatpush.bf16.msra.mxu0 %v389
  %970 = vmatmul.bf16.gmra.mxu0 %v889
  %v971 = vpop.f32.mrf.mxu0
  %v972 = vadd.f32 0.0, %v971
  %v973 = vpop.f32.mrf.mxu0
  %974 = vdwg.mxu0
  %v976 = vrot.slane %v972, 4
  %v978 = vadd.f32 %v373, %v976
  %v979 = vxor.u32 %v978, 2147483648
  %v980 = vmul.f32 %v979, 1.442695
  %v981 = vpow.pop %v980
  %v982 = vadd.f32 %v981, 1.0
  %v983 = vrcp.pop %v982
  %v984 = vmul.f32 %v982, %v983
  %v985 = vsub.f32 1.0, %v984
  %v986 = vmul.f32 %v983, %v985
  %v987 = vadd.f32 %v983, %v986
  %vm988 = vweird.f32 %v982
  %vm989 = vweird.f32 %v983
  %vm990 = vmor %vm988, %vm989
  %v991 = vsel %vm990, %v983, %v987
  %v992 = vand.u32 2147483647, %v982
  %vm993 = vcmp.eq.f32.partialorder %v992, 8.507059e+37
  %v994 = vand.u32 %v982, 2147483648
  %v995 = vor.u32 1.1754944e-38, %v994
  %v996 = vsel %vm993, %v995, %v991
  %v997 = vmul.f32 1.0, %v996
  %v998 = vtanh.pop %v978
  %v1000 = vrot.slane %v874, 7
  %v1002 = vmul.f32 %v997, %v1000
  %1004 = vrot.lane.b32.xlu0 %v998, 32
  %v1005 = vpop.permute.xlu0 %1004
  %v1007 = vmul.f32 %v997, %v1005
  %1009 = vrot.lane.b32.xlu0 %v1007, 32
  %v1010 = vpop.permute.xlu0 %1009
  %v1012 = vadd.f32 %v1002, %v1010
  %v1013 = vtanh.pop %v1012
  %1015 = vrot.lane.b32.xlu0 %v1013, 32
  %v1016 = vpop.permute.xlu0 %1015
  %v1018 = vmul.f32 %v997, %v1016
  %v1019 = vpack.c.bf16 %v1018, %v1018
  %v1021 = vrot.slane %v1019, 2
  %1022 = vrot.lane.b32.xlu0 %v1021, 64
  %v1023 = vpop.permute.xlu0 %1022
  %v1025 = vsel %vm176, %v1023, 0
  %1027 = vmatpush.bf16.msra.mxu0 0
  %1028 = vmatpush.bf16.msra.mxu0 0
  %1029 = vmatpush.bf16.msra.mxu0 0
  %1030 = vmatpush.bf16.msra.mxu0 0
  %1031 = vmatpush.bf16.msra.mxu0 0
  %1032 = vmatpush.bf16.msra.mxu0 0
  %1033 = vmatpush.bf16.msra.mxu0 %v465
  %1034 = vmatpush.bf16.msra.mxu0 %v464
  %1035 = vmatmul.bf16.gmra.mxu0 %v1025
  %v1036 = vpop.f32.mrf.mxu0
  %v1037 = vadd.f32 %v452, %v1036
  %v1038 = vpop.f32.mrf.mxu0
  %1039 = vdwg.mxu0
  %v1040 = vpack.c.bf16 %v961, %v961
  %1042 = vrot.lane.b32.xlu0 %v1040, 64
  %v1043 = vpop.permute.xlu0 %1042
  %v1045 = vsel %vm176, %v1043, 0
  %1047 = vmatpush.bf16.msra.mxu0 0
  %1048 = vmatpush.bf16.msra.mxu0 0
  %1049 = vmatpush.bf16.msra.mxu0 0
  %1050 = vmatpush.bf16.msra.mxu0 0
  %1051 = vmatpush.bf16.msra.mxu0 0
  %1052 = vmatpush.bf16.msra.mxu0 0
  %1053 = vmatpush.bf16.msra.mxu0 %v497
  %1054 = vmatpush.bf16.msra.mxu0 %v496
  %1055 = vmatmul.bf16.gmra.mxu0 %v1045
  %v1056 = vpop.f32.mrf.mxu0
  %v1057 = vadd.f32 0.0, %v1056
  %v1058 = vpop.f32.mrf.mxu0
  %1059 = vdwg.mxu0
  %v1060 = vadd.f32 %v1037, %v1057
  %v1061 = vxor.u32 %v1060, 2147483648
  %v1062 = vmul.f32 %v1061, 1.442695
  %v1063 = vpow.pop %v1062
  %v1064 = vadd.f32 %v1063, 1.0
  %v1065 = vrcp.pop %v1064
  %v1066 = vmul.f32 %v1064, %v1065
  %v1067 = vsub.f32 1.0, %v1066
  %v1068 = vmul.f32 %v1065, %v1067
  %v1069 = vadd.f32 %v1065, %v1068
  %vm1070 = vweird.f32 %v1064
  %vm1071 = vweird.f32 %v1065
  %vm1072 = vmor %vm1070, %vm1071
  %v1073 = vsel %vm1072, %v1065, %v1069
  %v1074 = vand.u32 2147483647, %v1064
  %vm1075 = vcmp.eq.f32.partialorder %v1074, 8.507059e+37
  %v1076 = vand.u32 %v1064, 2147483648
  %v1077 = vor.u32 1.1754944e-38, %v1076
  %v1078 = vsel %vm1075, %v1077, %v1073
  %v1079 = vmul.f32 1.0, %v1078
  %v1080 = vtanh.pop %v1060
  %v1081 = vmul.f32 %v1079, %v955
  %1083 = vrot.lane.b32.xlu0 %v1080, 32
  %v1084 = vpop.permute.xlu0 %1083
  %v1086 = vmul.f32 %v1079, %v1084
  %1088 = vrot.lane.b32.xlu0 %v1086, 32
  %v1089 = vpop.permute.xlu0 %1088
  %v1091 = vadd.f32 %v1081, %v1089
  %v1092 = vtanh.pop %v1091
  %1094 = vrot.lane.b32.xlu0 %v1092, 32
  %v1095 = vpop.permute.xlu0 %1094
  %v1097 = vmul.f32 %v1079, %v1095
  %1098 = vmatpush.bf16.msra.mxu0 0
  %1099 = vmatpush.bf16.msra.mxu0 0
  %1100 = vmatpush.bf16.msra.mxu0 0
  %1101 = vmatpush.bf16.msra.mxu0 0
  %1102 = vmatpush.bf16.msra.mxu0 0
  %1103 = vmatpush.bf16.msra.mxu0 0
  %1104 = vmatpush.bf16.msra.mxu0 %v390
  %1105 = vmatpush.bf16.msra.mxu0 %v389
  %1106 = vmatmul.bf16.gmra.mxu0 %v1025
  %v1107 = vpop.f32.mrf.mxu0
  %v1108 = vadd.f32 0.0, %v1107
  %v1109 = vpop.f32.mrf.mxu0
  %1110 = vdwg.mxu0
  %v1112 = vrot.slane %v1108, 3
  %v1114 = vadd.f32 %v373, %v1112
  %v1115 = vxor.u32 %v1114, 2147483648
  %v1116 = vmul.f32 %v1115, 1.442695
  %v1117 = vpow.pop %v1116
  %v1118 = vadd.f32 %v1117, 1.0
  %v1119 = vrcp.pop %v1118
  %v1120 = vmul.f32 %v1118, %v1119
  %v1121 = vsub.f32 1.0, %v1120
  %v1122 = vmul.f32 %v1119, %v1121
  %v1123 = vadd.f32 %v1119, %v1122
  %vm1124 = vweird.f32 %v1118
  %vm1125 = vweird.f32 %v1119
  %vm1126 = vmor %vm1124, %vm1125
  %v1127 = vsel %vm1126, %v1119, %v1123
  %v1128 = vand.u32 2147483647, %v1118
  %vm1129 = vcmp.eq.f32.partialorder %v1128, 8.507059e+37
  %v1130 = vand.u32 %v1118, 2147483648
  %v1131 = vor.u32 1.1754944e-38, %v1130
  %v1132 = vsel %vm1129, %v1131, %v1127
  %v1133 = vmul.f32 1.0, %v1132
  %v1134 = vtanh.pop %v1114
  %v1136 = vrot.slane %v1012, 7
  %v1138 = vmul.f32 %v1133, %v1136
  %1140 = vrot.lane.b32.xlu0 %v1134, 32
  %v1141 = vpop.permute.xlu0 %1140
  %v1143 = vmul.f32 %v1133, %v1141
  %1145 = vrot.lane.b32.xlu0 %v1143, 32
  %v1146 = vpop.permute.xlu0 %1145
  %v1148 = vadd.f32 %v1138, %v1146
  %v1149 = vtanh.pop %v1148
  %1151 = vrot.lane.b32.xlu0 %v1149, 32
  %v1152 = vpop.permute.xlu0 %1151
  %v1154 = vmul.f32 %v1133, %v1152
  %v1155 = vpack.c.bf16 %v1154, %v1154
  %v1157 = vshrl.u32 %v1155, 16
  %v1159 = vrot.slane %v1157, 2
  %1160 = vrot.lane.b32.xlu0 %v1159, 64
  %v1161 = vpop.permute.xlu0 %1160
  %v1163 = vsel %vm176, %v1161, 0
  %1165 = vmatpush.bf16.msra.mxu0 0
  %1166 = vmatpush.bf16.msra.mxu0 0
  %1167 = vmatpush.bf16.msra.mxu0 0
  %1168 = vmatpush.bf16.msra.mxu0 0
  %1169 = vmatpush.bf16.msra.mxu0 0
  %1170 = vmatpush.bf16.msra.mxu0 0
  %1171 = vmatpush.bf16.msra.mxu0 %v465
  %1172 = vmatpush.bf16.msra.mxu0 %v464
  %1173 = vmatmul.bf16.gmra.mxu0 %v1163
  %v1174 = vpop.f32.mrf.mxu0
  %v1175 = vadd.f32 %v452, %v1174
  %v1176 = vpop.f32.mrf.mxu0
  %1177 = vdwg.mxu0
  %v1178 = vpack.c.bf16 %v1097, %v1097
  %1180 = vrot.lane.b32.xlu0 %v1178, 64
  %v1181 = vpop.permute.xlu0 %1180
  %v1183 = vsel %vm176, %v1181, 0
  %1185 = vmatpush.bf16.msra.mxu0 0
  %1186 = vmatpush.bf16.msra.mxu0 0
  %1187 = vmatpush.bf16.msra.mxu0 0
  %1188 = vmatpush.bf16.msra.mxu0 0
  %1189 = vmatpush.bf16.msra.mxu0 0
  %1190 = vmatpush.bf16.msra.mxu0 0
  %1191 = vmatpush.bf16.msra.mxu0 %v497
  %1192 = vmatpush.bf16.msra.mxu0 %v496
  %1193 = vmatmul.bf16.gmra.mxu0 %v1183
  %v1194 = vpop.f32.mrf.mxu0
  %v1195 = vadd.f32 0.0, %v1194
  %v1196 = vpop.f32.mrf.mxu0
  %1197 = vdwg.mxu0
  %v1198 = vadd.f32 %v1175, %v1195
  %v1199 = vxor.u32 %v1198, 2147483648
  %v1200 = vmul.f32 %v1199, 1.442695
  %v1201 = vpow.pop %v1200
  %v1202 = vadd.f32 %v1201, 1.0
  %v1203 = vrcp.pop %v1202
  %v1204 = vmul.f32 %v1202, %v1203
  %v1205 = vsub.f32 1.0, %v1204
  %v1206 = vmul.f32 %v1203, %v1205
  %v1207 = vadd.f32 %v1203, %v1206
  %vm1208 = vweird.f32 %v1202
  %vm1209 = vweird.f32 %v1203
  %vm1210 = vmor %vm1208, %vm1209
  %v1211 = vsel %vm1210, %v1203, %v1207
  %v1212 = vand.u32 2147483647, %v1202
  %vm1213 = vcmp.eq.f32.partialorder %v1212, 8.507059e+37
  %v1214 = vand.u32 %v1202, 2147483648
  %v1215 = vor.u32 1.1754944e-38, %v1214
  %v1216 = vsel %vm1213, %v1215, %v1211
  %v1217 = vmul.f32 1.0, %v1216
  %v1218 = vtanh.pop %v1198
  %v1219 = vmul.f32 %v1217, %v1091
  %1221 = vrot.lane.b32.xlu0 %v1218, 32
  %v1222 = vpop.permute.xlu0 %1221
  %v1224 = vmul.f32 %v1217, %v1222
  %1226 = vrot.lane.b32.xlu0 %v1224, 32
  %v1227 = vpop.permute.xlu0 %1226
  %v1229 = vadd.f32 %v1219, %v1227
  %v1230 = vtanh.pop %v1229
  %1232 = vrot.lane.b32.xlu0 %v1230, 32
  %v1233 = vpop.permute.xlu0 %1232
  %v1235 = vmul.f32 %v1217, %v1233
  %1236 = vmatpush.bf16.msra.mxu0 0
  %1237 = vmatpush.bf16.msra.mxu0 0
  %1238 = vmatpush.bf16.msra.mxu0 0
  %1239 = vmatpush.bf16.msra.mxu0 0
  %1240 = vmatpush.bf16.msra.mxu0 0
  %1241 = vmatpush.bf16.msra.mxu0 0
  %1242 = vmatpush.bf16.msra.mxu0 %v390
  %1243 = vmatpush.bf16.msra.mxu0 %v389
  %1244 = vmatmul.bf16.gmra.mxu0 %v1163
  %v1245 = vpop.f32.mrf.mxu0
  %v1246 = vadd.f32 0.0, %v1245
  %v1247 = vpop.f32.mrf.mxu0
  %1248 = vdwg.mxu0
  %v1250 = vrot.slane %v1246, 2
  %v1252 = vadd.f32 %v373, %v1250
  %v1253 = vxor.u32 %v1252, 2147483648
  %v1254 = vmul.f32 %v1253, 1.442695
  %v1255 = vpow.pop %v1254
  %v1256 = vadd.f32 %v1255, 1.0
  %v1257 = vrcp.pop %v1256
  %v1258 = vmul.f32 %v1256, %v1257
  %v1259 = vsub.f32 1.0, %v1258
  %v1260 = vmul.f32 %v1257, %v1259
  %v1261 = vadd.f32 %v1257, %v1260
  %vm1262 = vweird.f32 %v1256
  %vm1263 = vweird.f32 %v1257
  %vm1264 = vmor %vm1262, %vm1263
  %v1265 = vsel %vm1264, %v1257, %v1261
  %v1266 = vand.u32 2147483647, %v1256
  %vm1267 = vcmp.eq.f32.partialorder %v1266, 8.507059e+37
  %v1268 = vand.u32 %v1256, 2147483648
  %v1269 = vor.u32 1.1754944e-38, %v1268
  %v1270 = vsel %vm1267, %v1269, %v1265
  %v1271 = vmul.f32 1.0, %v1270
  %v1272 = vtanh.pop %v1252
  %v1274 = vrot.slane %v1148, 7
  %v1276 = vmul.f32 %v1271, %v1274
  %1278 = vrot.lane.b32.xlu0 %v1272, 32
  %v1279 = vpop.permute.xlu0 %1278
  %v1281 = vmul.f32 %v1271, %v1279
  %1283 = vrot.lane.b32.xlu0 %v1281, 32
  %v1284 = vpop.permute.xlu0 %1283
  %v1286 = vadd.f32 %v1276, %v1284
  %v1287 = vtanh.pop %v1286
  %1289 = vrot.lane.b32.xlu0 %v1287, 32
  %v1290 = vpop.permute.xlu0 %1289
  %v1292 = vmul.f32 %v1271, %v1290
  %v1293 = vpack.c.bf16 %v1292, %v1292
  %v1295 = vrot.slane %v1293, 3
  %1296 = vrot.lane.b32.xlu0 %v1295, 64
  %v1297 = vpop.permute.xlu0 %1296
  %v1299 = vsel %vm176, %v1297, 0
  %1301 = vmatpush.bf16.msra.mxu0 0
  %1302 = vmatpush.bf16.msra.mxu0 0
  %1303 = vmatpush.bf16.msra.mxu0 0
  %1304 = vmatpush.bf16.msra.mxu0 0
  %1305 = vmatpush.bf16.msra.mxu0 0
  %1306 = vmatpush.bf16.msra.mxu0 0
  %1307 = vmatpush.bf16.msra.mxu0 %v465
  %1308 = vmatpush.bf16.msra.mxu0 %v464
  %1309 = vmatmul.bf16.gmra.mxu0 %v1299
  %v1310 = vpop.f32.mrf.mxu0
  %v1311 = vadd.f32 %v452, %v1310
  %v1312 = vpop.f32.mrf.mxu0
  %1313 = vdwg.mxu0
  %v1314 = vpack.c.bf16 %v1235, %v1235
  %1316 = vrot.lane.b32.xlu0 %v1314, 64
  %v1317 = vpop.permute.xlu0 %1316
  %v1319 = vsel %vm176, %v1317, 0
  %1321 = vmatpush.bf16.msra.mxu0 0
  %1322 = vmatpush.bf16.msra.mxu0 0
  %1323 = vmatpush.bf16.msra.mxu0 0
  %1324 = vmatpush.bf16.msra.mxu0 0
  %1325 = vmatpush.bf16.msra.mxu0 0
  %1326 = vmatpush.bf16.msra.mxu0 0
  %1327 = vmatpush.bf16.msra.mxu0 %v497
  %1328 = vmatpush.bf16.msra.mxu0 %v496
  %1329 = vmatmul.bf16.gmra.mxu0 %v1319
  %v1330 = vpop.f32.mrf.mxu0
  %v1331 = vadd.f32 0.0, %v1330
  %v1332 = vpop.f32.mrf.mxu0
  %1333 = vdwg.mxu0
  %v1334 = vadd.f32 %v1311, %v1331
  %v1335 = vxor.u32 %v1334, 2147483648
  %v1336 = vmul.f32 %v1335, 1.442695
  %v1337 = vpow.pop %v1336
  %v1338 = vadd.f32 %v1337, 1.0
  %v1339 = vrcp.pop %v1338
  %v1340 = vmul.f32 %v1338, %v1339
  %v1341 = vsub.f32 1.0, %v1340
  %v1342 = vmul.f32 %v1339, %v1341
  %v1343 = vadd.f32 %v1339, %v1342
  %vm1344 = vweird.f32 %v1338
  %vm1345 = vweird.f32 %v1339
  %vm1346 = vmor %vm1344, %vm1345
  %v1347 = vsel %vm1346, %v1339, %v1343
  %v1348 = vand.u32 2147483647, %v1338
  %vm1349 = vcmp.eq.f32.partialorder %v1348, 8.507059e+37
  %v1350 = vand.u32 %v1338, 2147483648
  %v1351 = vor.u32 1.1754944e-38, %v1350
  %v1352 = vsel %vm1349, %v1351, %v1347
  %v1353 = vmul.f32 1.0, %v1352
  %v1354 = vtanh.pop %v1334
  %v1355 = vmul.f32 %v1353, %v1229
  %1357 = vrot.lane.b32.xlu0 %v1354, 32
  %v1358 = vpop.permute.xlu0 %1357
  %v1360 = vmul.f32 %v1353, %v1358
  %1362 = vrot.lane.b32.xlu0 %v1360, 32
  %v1363 = vpop.permute.xlu0 %1362
  %v1365 = vadd.f32 %v1355, %v1363
  %v1366 = vtanh.pop %v1365
  %1368 = vrot.lane.b32.xlu0 %v1366, 32
  %v1369 = vpop.permute.xlu0 %1368
  %v1371 = vmul.f32 %v1353, %v1369
  %1372 = vmatpush.bf16.msra.mxu0 0
  %1373 = vmatpush.bf16.msra.mxu0 0
  %1374 = vmatpush.bf16.msra.mxu0 0
  %1375 = vmatpush.bf16.msra.mxu0 0
  %1376 = vmatpush.bf16.msra.mxu0 0
  %1377 = vmatpush.bf16.msra.mxu0 0
  %1378 = vmatpush.bf16.msra.mxu0 %v390
  %1379 = vmatpush.bf16.msra.mxu0 %v389
  %1380 = vmatmul.bf16.gmra.mxu0 %v1299
  %v1381 = vpop.f32.mrf.mxu0
  %v1382 = vadd.f32 0.0, %v1381
  %v1383 = vpop.f32.mrf.mxu0
  %1384 = vdwg.mxu0
  %v1386 = vrot.slane %v1382, 1
  %v1388 = vadd.f32 %v373, %v1386
  %v1389 = vxor.u32 %v1388, 2147483648
  %v1390 = vmul.f32 %v1389, 1.442695
  %v1391 = vpow.pop %v1390
  %v1392 = vadd.f32 %v1391, 1.0
  %v1393 = vrcp.pop %v1392
  %v1394 = vmul.f32 %v1392, %v1393
  %v1395 = vsub.f32 1.0, %v1394
  %v1396 = vmul.f32 %v1393, %v1395
  %v1397 = vadd.f32 %v1393, %v1396
  %vm1398 = vweird.f32 %v1392
  %vm1399 = vweird.f32 %v1393
  %vm1400 = vmor %vm1398, %vm1399
  %v1401 = vsel %vm1400, %v1393, %v1397
  %v1402 = vand.u32 2147483647, %v1392
  %vm1403 = vcmp.eq.f32.partialorder %v1402, 8.507059e+37
  %v1404 = vand.u32 %v1392, 2147483648
  %v1405 = vor.u32 1.1754944e-38, %v1404
  %v1406 = vsel %vm1403, %v1405, %v1401
  %v1407 = vmul.f32 1.0, %v1406
  %v1408 = vtanh.pop %v1388
  %v1410 = vrot.slane %v1286, 7
  %v1412 = vmul.f32 %v1407, %v1410
  %1414 = vrot.lane.b32.xlu0 %v1408, 32
  %v1415 = vpop.permute.xlu0 %1414
  %v1417 = vmul.f32 %v1407, %v1415
  %1419 = vrot.lane.b32.xlu0 %v1417, 32
  %v1420 = vpop.permute.xlu0 %1419
  %v1422 = vadd.f32 %v1412, %v1420
  %v1423 = vtanh.pop %v1422
  %1425 = vrot.lane.b32.xlu0 %v1423, 32
  %v1426 = vpop.permute.xlu0 %1425
  %v1428 = vmul.f32 %v1407, %v1426
  %v1429 = vpack.c.bf16 %v1428, %v1428
  %v1431 = vshrl.u32 %v1429, 16
  %v1433 = vrot.slane %v1431, 3
  %1434 = vrot.lane.b32.xlu0 %v1433, 64
  %v1435 = vpop.permute.xlu0 %1434
  %v1437 = vsel %vm176, %v1435, 0
  %1439 = vmatpush.bf16.msra.mxu0 0
  %1440 = vmatpush.bf16.msra.mxu0 0
  %1441 = vmatpush.bf16.msra.mxu0 0
  %1442 = vmatpush.bf16.msra.mxu0 0
  %1443 = vmatpush.bf16.msra.mxu0 0
  %1444 = vmatpush.bf16.msra.mxu0 0
  %1445 = vmatpush.bf16.msra.mxu0 %v465
  %1446 = vmatpush.bf16.msra.mxu0 %v464
  %1447 = vmatmul.bf16.gmra.mxu0 %v1437
  %v1448 = vpop.f32.mrf.mxu0
  %v1449 = vadd.f32 %v452, %v1448
  %v1450 = vpop.f32.mrf.mxu0
  %1451 = vdwg.mxu0
  %v1452 = vpack.c.bf16 %v1371, %v1371
  %1454 = vrot.lane.b32.xlu0 %v1452, 64
  %v1455 = vpop.permute.xlu0 %1454
  %v1457 = vsel %vm176, %v1455, 0
  %1459 = vmatpush.bf16.msra.mxu0 0
  %1460 = vmatpush.bf16.msra.mxu0 0
  %1461 = vmatpush.bf16.msra.mxu0 0
  %1462 = vmatpush.bf16.msra.mxu0 0
  %1463 = vmatpush.bf16.msra.mxu0 0
  %1464 = vmatpush.bf16.msra.mxu0 0
  %1465 = vmatpush.bf16.msra.mxu0 %v497
  %1466 = vmatpush.bf16.msra.mxu0 %v496
  %1467 = vmatmul.bf16.gmra.mxu0 %v1457
  %v1468 = vpop.f32.mrf.mxu0
  %v1469 = vadd.f32 0.0, %v1468
  %v1470 = vpop.f32.mrf.mxu0
  %1471 = vdwg.mxu0
  %v1472 = vadd.f32 %v1449, %v1469
  %v1473 = vxor.u32 %v1472, 2147483648
  %v1474 = vmul.f32 %v1473, 1.442695
  %v1475 = vpow.pop %v1474
  %v1476 = vadd.f32 %v1475, 1.0
  %v1477 = vrcp.pop %v1476
  %v1478 = vmul.f32 %v1476, %v1477
  %v1479 = vsub.f32 1.0, %v1478
  %v1480 = vmul.f32 %v1477, %v1479
  %v1481 = vadd.f32 %v1477, %v1480
  %vm1482 = vweird.f32 %v1476
  %vm1483 = vweird.f32 %v1477
  %vm1484 = vmor %vm1482, %vm1483
  %v1485 = vsel %vm1484, %v1477, %v1481
  %v1486 = vand.u32 2147483647, %v1476
  %vm1487 = vcmp.eq.f32.partialorder %v1486, 8.507059e+37
  %v1488 = vand.u32 %v1476, 2147483648
  %v1489 = vor.u32 1.1754944e-38, %v1488
  %v1490 = vsel %vm1487, %v1489, %v1485
  %v1491 = vmul.f32 1.0, %v1490
  %v1492 = vtanh.pop %v1472
  %v1493 = vmul.f32 %v1491, %v1365
  %1495 = vrot.lane.b32.xlu0 %v1492, 32
  %v1496 = vpop.permute.xlu0 %1495
  %v1498 = vmul.f32 %v1491, %v1496
  %1500 = vrot.lane.b32.xlu0 %v1498, 32
  %v1501 = vpop.permute.xlu0 %1500
  %v1503 = vadd.f32 %v1493, %v1501
  %v1504 = vtanh.pop %v1503
  %1506 = vrot.lane.b32.xlu0 %v1504, 32
  %v1507 = vpop.permute.xlu0 %1506
  %v1509 = vmul.f32 %v1491, %v1507
  %1510 = vmatpush.bf16.msra.mxu0 0
  %1511 = vmatpush.bf16.msra.mxu0 0
  %1512 = vmatpush.bf16.msra.mxu0 0
  %1513 = vmatpush.bf16.msra.mxu0 0
  %1514 = vmatpush.bf16.msra.mxu0 0
  %1515 = vmatpush.bf16.msra.mxu0 0
  %1516 = vmatpush.bf16.msra.mxu0 %v390
  %1517 = vmatpush.bf16.msra.mxu0 %v389
  %1518 = vmatmul.bf16.gmra.mxu0 %v1437
  %v1519 = vpop.f32.mrf.mxu0
  %v1520 = vadd.f32 0.0, %v1519
  %v1521 = vpop.f32.mrf.mxu0
  %1522 = vdwg.mxu0
  %v1523 = vadd.f32 %v375, %v1520
  %v1524 = vxor.u32 %v1523, 2147483648
  %v1525 = vmul.f32 %v1524, 1.442695
  %v1526 = vpow.pop %v1525
  %v1527 = vadd.f32 %v1526, 1.0
  %v1528 = vrcp.pop %v1527
  %v1529 = vmul.f32 %v1527, %v1528
  %v1530 = vsub.f32 1.0, %v1529
  %v1531 = vmul.f32 %v1528, %v1530
  %v1532 = vadd.f32 %v1528, %v1531
  %vm1533 = vweird.f32 %v1527
  %vm1534 = vweird.f32 %v1528
  %vm1535 = vmor %vm1533, %vm1534
  %v1536 = vsel %vm1535, %v1528, %v1532
  %v1537 = vand.u32 2147483647, %v1527
  %vm1538 = vcmp.eq.f32.partialorder %v1537, 8.507059e+37
  %v1539 = vand.u32 %v1527, 2147483648
  %v1540 = vor.u32 1.1754944e-38, %v1539
  %v1541 = vsel %vm1538, %v1540, %v1536
  %v1542 = vmul.f32 1.0, %v1541
  %v1543 = vtanh.pop %v1523
  %v1545 = vrot.slane %v1422, 7
  %v1547 = vmul.f32 %v1542, %v1545
  %1549 = vrot.lane.b32.xlu0 %v1543, 32
  %v1550 = vpop.permute.xlu0 %1549
  %v1552 = vmul.f32 %v1542, %v1550
  %1554 = vrot.lane.b32.xlu0 %v1552, 32
  %v1555 = vpop.permute.xlu0 %1554
  %v1557 = vadd.f32 %v1547, %v1555
  %v1558 = vtanh.pop %v1557
  %1560 = vrot.lane.b32.xlu0 %v1558, 32
  %v1561 = vpop.permute.xlu0 %1560
  %v1563 = vmul.f32 %v1542, %v1561
  %v1564 = vpack.c.bf16 %v1563, %v1563
  %1566 = vrot.lane.b32.xlu0 %v1564, 64
  %v1567 = vpop.permute.xlu0 %1566
  %v1569 = vsel %vm176, %v1567, 0
  %1571 = vmatpush.bf16.msra.mxu0 0
  %1572 = vmatpush.bf16.msra.mxu0 0
  %1573 = vmatpush.bf16.msra.mxu0 0
  %1574 = vmatpush.bf16.msra.mxu0 0
  %1575 = vmatpush.bf16.msra.mxu0 0
  %1576 = vmatpush.bf16.msra.mxu0 0
  %1577 = vmatpush.bf16.msra.mxu0 %v465
  %1578 = vmatpush.bf16.msra.mxu0 %v464
  %1579 = vmatmul.bf16.gmra.mxu0 %v1569
  %v1580 = vpop.f32.mrf.mxu0
  %v1581 = vadd.f32 %v452, %v1580
  %v1582 = vpop.f32.mrf.mxu0
  %1583 = vdwg.mxu0
  %v1584 = vpack.c.bf16 %v1509, %v1509
  %1586 = vrot.lane.b32.xlu0 %v1584, 64
  %v1587 = vpop.permute.xlu0 %1586
  %v1589 = vsel %vm176, %v1587, 0
  %1591 = vmatpush.bf16.msra.mxu0 0
  %1592 = vmatpush.bf16.msra.mxu0 0
  %1593 = vmatpush.bf16.msra.mxu0 0
  %1594 = vmatpush.bf16.msra.mxu0 0
  %1595 = vmatpush.bf16.msra.mxu0 0
  %1596 = vmatpush.bf16.msra.mxu0 0
  %1597 = vmatpush.bf16.msra.mxu0 %v497
  %1598 = vmatpush.bf16.msra.mxu0 %v496
  %1599 = vmatmul.bf16.gmra.mxu0 %v1589
  %v1600 = vpop.f32.mrf.mxu0
  %v1601 = vadd.f32 0.0, %v1600
  %v1602 = vpop.f32.mrf.mxu0
  %1603 = vdwg.mxu0
  %v1604 = vadd.f32 %v1581, %v1601
  %v1605 = vxor.u32 %v1604, 2147483648
  %v1606 = vmul.f32 %v1605, 1.442695
  %v1607 = vpow.pop %v1606
  %v1608 = vadd.f32 %v1607, 1.0
  %v1609 = vrcp.pop %v1608
  %v1610 = vmul.f32 %v1608, %v1609
  %v1611 = vsub.f32 1.0, %v1610
  %v1612 = vmul.f32 %v1609, %v1611
  %v1613 = vadd.f32 %v1609, %v1612
  %vm1614 = vweird.f32 %v1608
  %vm1615 = vweird.f32 %v1609
  %vm1616 = vmor %vm1614, %vm1615
  %v1617 = vsel %vm1616, %v1609, %v1613
  %v1618 = vand.u32 2147483647, %v1608
  %vm1619 = vcmp.eq.f32.partialorder %v1618, 8.507059e+37
  %v1620 = vand.u32 %v1608, 2147483648
  %v1621 = vor.u32 1.1754944e-38, %v1620
  %v1622 = vsel %vm1619, %v1621, %v1617
  %v1623 = vmul.f32 1.0, %v1622
  %v1624 = vtanh.pop %v1604
  %v1625 = vmul.f32 %v1623, %v1503
  %1627 = vrot.lane.b32.xlu0 %v1624, 32
  %v1628 = vpop.permute.xlu0 %1627
  %v1630 = vmul.f32 %v1623, %v1628
  %1632 = vrot.lane.b32.xlu0 %v1630, 32
  %v1633 = vpop.permute.xlu0 %1632
  %v1635 = vadd.f32 %v1625, %v1633
  %v1636 = vtanh.pop %v1635
  %1638 = vrot.lane.b32.xlu0 %v1636, 32
  %v1639 = vpop.permute.xlu0 %1638
  %v1641 = vmul.f32 %v1623, %v1639
  %1642 = vmatpush.bf16.msra.mxu0 0
  %1643 = vmatpush.bf16.msra.mxu0 0
  %1644 = vmatpush.bf16.msra.mxu0 0
  %1645 = vmatpush.bf16.msra.mxu0 0
  %1646 = vmatpush.bf16.msra.mxu0 0
  %1647 = vmatpush.bf16.msra.mxu0 0
  %1648 = vmatpush.bf16.msra.mxu0 %v390
  %1649 = vmatpush.bf16.msra.mxu0 %v389
  %1650 = vmatmul.bf16.gmra.mxu0 %v1569
  %v1651 = vpop.f32.mrf.mxu0
  %v1652 = vadd.f32 0.0, %v1651
  %v1653 = vpop.f32.mrf.mxu0
  %1654 = vdwg.mxu0
  %v1656 = vrot.slane %v1652, 7
  %v1658 = vadd.f32 %v375, %v1656
  %v1659 = vxor.u32 %v1658, 2147483648
  %v1660 = vmul.f32 %v1659, 1.442695
  %v1661 = vpow.pop %v1660
  %v1662 = vadd.f32 %v1661, 1.0
  %v1663 = vrcp.pop %v1662
  %v1664 = vmul.f32 %v1662, %v1663
  %v1665 = vsub.f32 1.0, %v1664
  %v1666 = vmul.f32 %v1663, %v1665
  %v1667 = vadd.f32 %v1663, %v1666
  %vm1668 = vweird.f32 %v1662
  %vm1669 = vweird.f32 %v1663
  %vm1670 = vmor %vm1668, %vm1669
  %v1671 = vsel %vm1670, %v1663, %v1667
  %v1672 = vand.u32 2147483647, %v1662
  %vm1673 = vcmp.eq.f32.partialorder %v1672, 8.507059e+37
  %v1674 = vand.u32 %v1662, 2147483648
  %v1675 = vor.u32 1.1754944e-38, %v1674
  %v1676 = vsel %vm1673, %v1675, %v1671
  %v1677 = vmul.f32 1.0, %v1676
  %v1678 = vtanh.pop %v1658
  %v1680 = vrot.slane %v1557, 7
  %v1682 = vmul.f32 %v1677, %v1680
  %1684 = vrot.lane.b32.xlu0 %v1678, 32
  %v1685 = vpop.permute.xlu0 %1684
  %v1687 = vmul.f32 %v1677, %v1685
  %1689 = vrot.lane.b32.xlu0 %v1687, 32
  %v1690 = vpop.permute.xlu0 %1689
  %v1692 = vadd.f32 %v1682, %v1690
  %v1693 = vtanh.pop %v1692
  %1695 = vrot.lane.b32.xlu0 %v1693, 32
  %v1696 = vpop.permute.xlu0 %1695
  %v1698 = vmul.f32 %v1677, %v1696
  %v1699 = vpack.c.bf16 %v1698, %v1698
  %v1701 = vshrl.u32 %v1699, 16
  %1703 = vrot.lane.b32.xlu0 %v1701, 64
  %v1704 = vpop.permute.xlu0 %1703
  %v1706 = vsel %vm176, %v1704, 0
  %1708 = vmatpush.bf16.msra.mxu0 0
  %1709 = vmatpush.bf16.msra.mxu0 0
  %1710 = vmatpush.bf16.msra.mxu0 0
  %1711 = vmatpush.bf16.msra.mxu0 0
  %1712 = vmatpush.bf16.msra.mxu0 0
  %1713 = vmatpush.bf16.msra.mxu0 0
  %1714 = vmatpush.bf16.msra.mxu0 %v465
  %1715 = vmatpush.bf16.msra.mxu0 %v464
  %1716 = vmatmul.bf16.gmra.mxu0 %v1706
  %v1717 = vpop.f32.mrf.mxu0
  %v1718 = vadd.f32 %v452, %v1717
  %v1719 = vpop.f32.mrf.mxu0
  %1720 = vdwg.mxu0
  %v1721 = vpack.c.bf16 %v1641, %v1641
  %1723 = vrot.lane.b32.xlu0 %v1721, 64
  %v1724 = vpop.permute.xlu0 %1723
  %v1726 = vsel %vm176, %v1724, 0
  %1728 = vmatpush.bf16.msra.mxu0 0
  %1729 = vmatpush.bf16.msra.mxu0 0
  %1730 = vmatpush.bf16.msra.mxu0 0
  %1731 = vmatpush.bf16.msra.mxu0 0
  %1732 = vmatpush.bf16.msra.mxu0 0
  %1733 = vmatpush.bf16.msra.mxu0 0
  %1734 = vmatpush.bf16.msra.mxu0 %v497
  %1735 = vmatpush.bf16.msra.mxu0 %v496
  %1736 = vmatmul.bf16.gmra.mxu0 %v1726
  %v1737 = vpop.f32.mrf.mxu0
  %v1738 = vadd.f32 0.0, %v1737
  %v1739 = vpop.f32.mrf.mxu0
  %1740 = vdwg.mxu0
  %v1741 = vadd.f32 %v1718, %v1738
  %v1742 = vxor.u32 %v1741, 2147483648
  %v1743 = vmul.f32 %v1742, 1.442695
  %v1744 = vpow.pop %v1743
  %v1745 = vadd.f32 %v1744, 1.0
  %v1746 = vrcp.pop %v1745
  %v1747 = vmul.f32 %v1745, %v1746
  %v1748 = vsub.f32 1.0, %v1747
  %v1749 = vmul.f32 %v1746, %v1748
  %v1750 = vadd.f32 %v1746, %v1749
  %vm1751 = vweird.f32 %v1745
  %vm1752 = vweird.f32 %v1746
  %vm1753 = vmor %vm1751, %vm1752
  %v1754 = vsel %vm1753, %v1746, %v1750
  %v1755 = vand.u32 2147483647, %v1745
  %vm1756 = vcmp.eq.f32.partialorder %v1755, 8.507059e+37
  %v1757 = vand.u32 %v1745, 2147483648
  %v1758 = vor.u32 1.1754944e-38, %v1757
  %v1759 = vsel %vm1756, %v1758, %v1754
  %v1760 = vmul.f32 1.0, %v1759
  %v1761 = vtanh.pop %v1741
  %v1762 = vmul.f32 %v1760, %v1635
  %1764 = vrot.lane.b32.xlu0 %v1761, 32
  %v1765 = vpop.permute.xlu0 %1764
  %v1767 = vmul.f32 %v1760, %v1765
  %1769 = vrot.lane.b32.xlu0 %v1767, 32
  %v1770 = vpop.permute.xlu0 %1769
  %v1772 = vadd.f32 %v1762, %v1770
  %v1773 = vtanh.pop %v1772
  %1775 = vrot.lane.b32.xlu0 %v1773, 32
  %v1776 = vpop.permute.xlu0 %1775
  %v1778 = vmul.f32 %v1760, %v1776
  %1779 = vmatpush.bf16.msra.mxu0 0
  %1780 = vmatpush.bf16.msra.mxu0 0
  %1781 = vmatpush.bf16.msra.mxu0 0
  %1782 = vmatpush.bf16.msra.mxu0 0
  %1783 = vmatpush.bf16.msra.mxu0 0
  %1784 = vmatpush.bf16.msra.mxu0 0
  %1785 = vmatpush.bf16.msra.mxu0 %v390
  %1786 = vmatpush.bf16.msra.mxu0 %v389
  %1787 = vmatmul.bf16.gmra.mxu0 %v1706
  %v1788 = vpop.f32.mrf.mxu0
  %v1789 = vadd.f32 0.0, %v1788
  %v1790 = vpop.f32.mrf.mxu0
  %1791 = vdwg.mxu0
  %v1793 = vrot.slane %v1789, 6
  %v1795 = vadd.f32 %v375, %v1793
  %v1796 = vxor.u32 %v1795, 2147483648
  %v1797 = vmul.f32 %v1796, 1.442695
  %v1798 = vpow.pop %v1797
  %v1799 = vadd.f32 %v1798, 1.0
  %v1800 = vrcp.pop %v1799
  %v1801 = vmul.f32 %v1799, %v1800
  %v1802 = vsub.f32 1.0, %v1801
  %v1803 = vmul.f32 %v1800, %v1802
  %v1804 = vadd.f32 %v1800, %v1803
  %vm1805 = vweird.f32 %v1799
  %vm1806 = vweird.f32 %v1800
  %vm1807 = vmor %vm1805, %vm1806
  %v1808 = vsel %vm1807, %v1800, %v1804
  %v1809 = vand.u32 2147483647, %v1799
  %vm1810 = vcmp.eq.f32.partialorder %v1809, 8.507059e+37
  %v1811 = vand.u32 %v1799, 2147483648
  %v1812 = vor.u32 1.1754944e-38, %v1811
  %v1813 = vsel %vm1810, %v1812, %v1808
  %v1814 = vmul.f32 1.0, %v1813
  %v1815 = vtanh.pop %v1795
  %v1817 = vrot.slane %v1692, 7
  %v1819 = vmul.f32 %v1814, %v1817
  %1821 = vrot.lane.b32.xlu0 %v1815, 32
  %v1822 = vpop.permute.xlu0 %1821
  %v1824 = vmul.f32 %v1814, %v1822
  %1826 = vrot.lane.b32.xlu0 %v1824, 32
  %v1827 = vpop.permute.xlu0 %1826
  %v1829 = vadd.f32 %v1819, %v1827
  %v1830 = vtanh.pop %v1829
  %1832 = vrot.lane.b32.xlu0 %v1830, 32
  %v1833 = vpop.permute.xlu0 %1832
  %v1835 = vmul.f32 %v1814, %v1833
  %v1836 = vpack.c.bf16 %v1835, %v1835
  %v1838 = vrot.slane %v1836, 1
  %1839 = vrot.lane.b32.xlu0 %v1838, 64
  %v1840 = vpop.permute.xlu0 %1839
  %v1842 = vsel %vm176, %v1840, 0
  %1844 = vmatpush.bf16.msra.mxu0 0
  %1845 = vmatpush.bf16.msra.mxu0 0
  %1846 = vmatpush.bf16.msra.mxu0 0
  %1847 = vmatpush.bf16.msra.mxu0 0
  %1848 = vmatpush.bf16.msra.mxu0 0
  %1849 = vmatpush.bf16.msra.mxu0 0
  %1850 = vmatpush.bf16.msra.mxu0 %v465
  %1851 = vmatpush.bf16.msra.mxu0 %v464
  %1852 = vmatmul.bf16.gmra.mxu0 %v1842
  %v1853 = vpop.f32.mrf.mxu0
  %v1854 = vadd.f32 %v452, %v1853
  %v1855 = vpop.f32.mrf.mxu0
  %1856 = vdwg.mxu0
  %v1857 = vpack.c.bf16 %v1778, %v1778
  %1859 = vrot.lane.b32.xlu0 %v1857, 64
  %v1860 = vpop.permute.xlu0 %1859
  %v1862 = vsel %vm176, %v1860, 0
  %1864 = vmatpush.bf16.msra.mxu0 0
  %1865 = vmatpush.bf16.msra.mxu0 0
  %1866 = vmatpush.bf16.msra.mxu0 0
  %1867 = vmatpush.bf16.msra.mxu0 0
  %1868 = vmatpush.bf16.msra.mxu0 0
  %1869 = vmatpush.bf16.msra.mxu0 0
  %1870 = vmatpush.bf16.msra.mxu0 %v497
  %1871 = vmatpush.bf16.msra.mxu0 %v496
  %1872 = vmatmul.bf16.gmra.mxu0 %v1862
  %v1873 = vpop.f32.mrf.mxu0
  %v1874 = vadd.f32 0.0, %v1873
  %v1875 = vpop.f32.mrf.mxu0
  %1876 = vdwg.mxu0
  %v1877 = vadd.f32 %v1854, %v1874
  %v1878 = vxor.u32 %v1877, 2147483648
  %v1879 = vmul.f32 %v1878, 1.442695
  %v1880 = vpow.pop %v1879
  %v1881 = vadd.f32 %v1880, 1.0
  %v1882 = vrcp.pop %v1881
  %v1883 = vmul.f32 %v1881, %v1882
  %v1884 = vsub.f32 1.0, %v1883
  %v1885 = vmul.f32 %v1882, %v1884
  %v1886 = vadd.f32 %v1882, %v1885
  %vm1887 = vweird.f32 %v1881
  %vm1888 = vweird.f32 %v1882
  %vm1889 = vmor %vm1887, %vm1888
  %v1890 = vsel %vm1889, %v1882, %v1886
  %v1891 = vand.u32 2147483647, %v1881
  %vm1892 = vcmp.eq.f32.partialorder %v1891, 8.507059e+37
  %v1893 = vand.u32 %v1881, 2147483648
  %v1894 = vor.u32 1.1754944e-38, %v1893
  %v1895 = vsel %vm1892, %v1894, %v1890
  %v1896 = vmul.f32 1.0, %v1895
  %v1897 = vtanh.pop %v1877
  %v1898 = vmul.f32 %v1896, %v1772
  %1900 = vrot.lane.b32.xlu0 %v1897, 32
  %v1901 = vpop.permute.xlu0 %1900
  %v1903 = vmul.f32 %v1896, %v1901
  %1905 = vrot.lane.b32.xlu0 %v1903, 32
  %v1906 = vpop.permute.xlu0 %1905
  %v1908 = vadd.f32 %v1898, %v1906
  %v1909 = vtanh.pop %v1908
  %1911 = vrot.lane.b32.xlu0 %v1909, 32
  %v1912 = vpop.permute.xlu0 %1911
  %v1914 = vmul.f32 %v1896, %v1912
  %1915 = vmatpush.bf16.msra.mxu0 0
  %1916 = vmatpush.bf16.msra.mxu0 0
  %1917 = vmatpush.bf16.msra.mxu0 0
  %1918 = vmatpush.bf16.msra.mxu0 0
  %1919 = vmatpush.bf16.msra.mxu0 0
  %1920 = vmatpush.bf16.msra.mxu0 0
  %1921 = vmatpush.bf16.msra.mxu0 %v390
  %1922 = vmatpush.bf16.msra.mxu0 %v389
  %1923 = vmatmul.bf16.gmra.mxu0 %v1842
  %v1924 = vpop.f32.mrf.mxu0
  %v1925 = vadd.f32 0.0, %v1924
  %v1926 = vpop.f32.mrf.mxu0
  %1927 = vdwg.mxu0
  %v1929 = vrot.slane %v1925, 5
  %v1931 = vadd.f32 %v375, %v1929
  %v1932 = vxor.u32 %v1931, 2147483648
  %v1933 = vmul.f32 %v1932, 1.442695
  %v1934 = vpow.pop %v1933
  %v1935 = vadd.f32 %v1934, 1.0
  %v1936 = vrcp.pop %v1935
  %v1937 = vmul.f32 %v1935, %v1936
  %v1938 = vsub.f32 1.0, %v1937
  %v1939 = vmul.f32 %v1936, %v1938
  %v1940 = vadd.f32 %v1936, %v1939
  %vm1941 = vweird.f32 %v1935
  %vm1942 = vweird.f32 %v1936
  %vm1943 = vmor %vm1941, %vm1942
  %v1944 = vsel %vm1943, %v1936, %v1940
  %v1945 = vand.u32 2147483647, %v1935
  %vm1946 = vcmp.eq.f32.partialorder %v1945, 8.507059e+37
  %v1947 = vand.u32 %v1935, 2147483648
  %v1948 = vor.u32 1.1754944e-38, %v1947
  %v1949 = vsel %vm1946, %v1948, %v1944
  %v1950 = vmul.f32 1.0, %v1949
  %v1951 = vtanh.pop %v1931
  %v1953 = vrot.slane %v1829, 7
  %v1955 = vmul.f32 %v1950, %v1953
  %1957 = vrot.lane.b32.xlu0 %v1951, 32
  %v1958 = vpop.permute.xlu0 %1957
  %v1960 = vmul.f32 %v1950, %v1958
  %1962 = vrot.lane.b32.xlu0 %v1960, 32
  %v1963 = vpop.permute.xlu0 %1962
  %v1965 = vadd.f32 %v1955, %v1963
  %v1966 = vtanh.pop %v1965
  %1968 = vrot.lane.b32.xlu0 %v1966, 32
  %v1969 = vpop.permute.xlu0 %1968
  %v1971 = vmul.f32 %v1950, %v1969
  %v1972 = vpack.c.bf16 %v1971, %v1971
  %v1974 = vshrl.u32 %v1972, 16
  %v1976 = vrot.slane %v1974, 1
  %1977 = vrot.lane.b32.xlu0 %v1976, 64
  %v1978 = vpop.permute.xlu0 %1977
  %v1980 = vsel %vm176, %v1978, 0
  %1982 = vmatpush.bf16.msra.mxu0 0
  %1983 = vmatpush.bf16.msra.mxu0 0
  %1984 = vmatpush.bf16.msra.mxu0 0
  %1985 = vmatpush.bf16.msra.mxu0 0
  %1986 = vmatpush.bf16.msra.mxu0 0
  %1987 = vmatpush.bf16.msra.mxu0 0
  %1988 = vmatpush.bf16.msra.mxu0 %v465
  %1989 = vmatpush.bf16.msra.mxu0 %v464
  %1990 = vmatmul.bf16.gmra.mxu0 %v1980
  %v1991 = vpop.f32.mrf.mxu0
  %v1992 = vadd.f32 %v452, %v1991
  %v1993 = vpop.f32.mrf.mxu0
  %1994 = vdwg.mxu0
  %v1995 = vpack.c.bf16 %v1914, %v1914
  %1997 = vrot.lane.b32.xlu0 %v1995, 64
  %v1998 = vpop.permute.xlu0 %1997
  %v2000 = vsel %vm176, %v1998, 0
  %2002 = vmatpush.bf16.msra.mxu0 0
  %2003 = vmatpush.bf16.msra.mxu0 0
  %2004 = vmatpush.bf16.msra.mxu0 0
  %2005 = vmatpush.bf16.msra.mxu0 0
  %2006 = vmatpush.bf16.msra.mxu0 0
  %2007 = vmatpush.bf16.msra.mxu0 0
  %2008 = vmatpush.bf16.msra.mxu0 %v497
  %2009 = vmatpush.bf16.msra.mxu0 %v496
  %2010 = vmatmul.bf16.gmra.mxu0 %v2000
  %v2011 = vpop.f32.mrf.mxu0
  %v2012 = vadd.f32 0.0, %v2011
  %v2013 = vpop.f32.mrf.mxu0
  %2014 = vdwg.mxu0
  %v2015 = vadd.f32 %v1992, %v2012
  %v2016 = vxor.u32 %v2015, 2147483648
  %v2017 = vmul.f32 %v2016, 1.442695
  %v2018 = vpow.pop %v2017
  %v2019 = vadd.f32 %v2018, 1.0
  %v2020 = vrcp.pop %v2019
  %v2021 = vmul.f32 %v2019, %v2020
  %v2022 = vsub.f32 1.0, %v2021
  %v2023 = vmul.f32 %v2020, %v2022
  %v2024 = vadd.f32 %v2020, %v2023
  %vm2025 = vweird.f32 %v2019
  %vm2026 = vweird.f32 %v2020
  %vm2027 = vmor %vm2025, %vm2026
  %v2028 = vsel %vm2027, %v2020, %v2024
  %v2029 = vand.u32 2147483647, %v2019
  %vm2030 = vcmp.eq.f32.partialorder %v2029, 8.507059e+37
  %v2031 = vand.u32 %v2019, 2147483648
  %v2032 = vor.u32 1.1754944e-38, %v2031
  %v2033 = vsel %vm2030, %v2032, %v2028
  %v2034 = vmul.f32 1.0, %v2033
  %v2035 = vtanh.pop %v2015
  %v2036 = vmul.f32 %v2034, %v1908
  %2038 = vrot.lane.b32.xlu0 %v2035, 32
  %v2039 = vpop.permute.xlu0 %2038
  %v2041 = vmul.f32 %v2034, %v2039
  %2043 = vrot.lane.b32.xlu0 %v2041, 32
  %v2044 = vpop.permute.xlu0 %2043
  %v2046 = vadd.f32 %v2036, %v2044
  %v2047 = vtanh.pop %v2046
  %2049 = vrot.lane.b32.xlu0 %v2047, 32
  %v2050 = vpop.permute.xlu0 %2049
  %v2052 = vmul.f32 %v2034, %v2050
  %2053 = vmatpush.bf16.msra.mxu0 0
  %2054 = vmatpush.bf16.msra.mxu0 0
  %2055 = vmatpush.bf16.msra.mxu0 0
  %2056 = vmatpush.bf16.msra.mxu0 0
  %2057 = vmatpush.bf16.msra.mxu0 0
  %2058 = vmatpush.bf16.msra.mxu0 0
  %2059 = vmatpush.bf16.msra.mxu0 %v390
  %2060 = vmatpush.bf16.msra.mxu0 %v389
  %2061 = vmatmul.bf16.gmra.mxu0 %v1980
  %v2062 = vpop.f32.mrf.mxu0
  %v2063 = vadd.f32 0.0, %v2062
  %v2064 = vpop.f32.mrf.mxu0
  %2065 = vdwg.mxu0
  %v2067 = vrot.slane %v2063, 4
  %v2069 = vadd.f32 %v375, %v2067
  %v2070 = vxor.u32 %v2069, 2147483648
  %v2071 = vmul.f32 %v2070, 1.442695
  %v2072 = vpow.pop %v2071
  %v2073 = vadd.f32 %v2072, 1.0
  %v2074 = vrcp.pop %v2073
  %v2075 = vmul.f32 %v2073, %v2074
  %v2076 = vsub.f32 1.0, %v2075
  %v2077 = vmul.f32 %v2074, %v2076
  %v2078 = vadd.f32 %v2074, %v2077
  %vm2079 = vweird.f32 %v2073
  %vm2080 = vweird.f32 %v2074
  %vm2081 = vmor %vm2079, %vm2080
  %v2082 = vsel %vm2081, %v2074, %v2078
  %v2083 = vand.u32 2147483647, %v2073
  %vm2084 = vcmp.eq.f32.partialorder %v2083, 8.507059e+37
  %v2085 = vand.u32 %v2073, 2147483648
  %v2086 = vor.u32 1.1754944e-38, %v2085
  %v2087 = vsel %vm2084, %v2086, %v2082
  %v2088 = vmul.f32 1.0, %v2087
  %v2089 = vtanh.pop %v2069
  %v2091 = vrot.slane %v1965, 7
  %v2093 = vmul.f32 %v2088, %v2091
  %2095 = vrot.lane.b32.xlu0 %v2089, 32
  %v2096 = vpop.permute.xlu0 %2095
  %v2098 = vmul.f32 %v2088, %v2096
  %2100 = vrot.lane.b32.xlu0 %v2098, 32
  %v2101 = vpop.permute.xlu0 %2100
  %v2103 = vadd.f32 %v2093, %v2101
  %v2104 = vtanh.pop %v2103
  %2106 = vrot.lane.b32.xlu0 %v2104, 32
  %v2107 = vpop.permute.xlu0 %2106
  %v2109 = vmul.f32 %v2088, %v2107
  %v2110 = vpack.c.bf16 %v2109, %v2109
  %v2112 = vrot.slane %v2110, 2
  %2113 = vrot.lane.b32.xlu0 %v2112, 64
  %v2114 = vpop.permute.xlu0 %2113
  %v2116 = vsel %vm176, %v2114, 0
  %2118 = vmatpush.bf16.msra.mxu0 0
  %2119 = vmatpush.bf16.msra.mxu0 0
  %2120 = vmatpush.bf16.msra.mxu0 0
  %2121 = vmatpush.bf16.msra.mxu0 0
  %2122 = vmatpush.bf16.msra.mxu0 0
  %2123 = vmatpush.bf16.msra.mxu0 0
  %2124 = vmatpush.bf16.msra.mxu0 %v465
  %2125 = vmatpush.bf16.msra.mxu0 %v464
  %2126 = vmatmul.bf16.gmra.mxu0 %v2116
  %v2127 = vpop.f32.mrf.mxu0
  %v2128 = vadd.f32 %v452, %v2127
  %v2129 = vpop.f32.mrf.mxu0
  %2130 = vdwg.mxu0
  %v2131 = vpack.c.bf16 %v2052, %v2052
  %2133 = vrot.lane.b32.xlu0 %v2131, 64
  %v2134 = vpop.permute.xlu0 %2133
  %v2136 = vsel %vm176, %v2134, 0
  %2138 = vmatpush.bf16.msra.mxu0 0
  %2139 = vmatpush.bf16.msra.mxu0 0
  %2140 = vmatpush.bf16.msra.mxu0 0
  %2141 = vmatpush.bf16.msra.mxu0 0
  %2142 = vmatpush.bf16.msra.mxu0 0
  %2143 = vmatpush.bf16.msra.mxu0 0
  %2144 = vmatpush.bf16.msra.mxu0 %v497
  %2145 = vmatpush.bf16.msra.mxu0 %v496
  %2146 = vmatmul.bf16.gmra.mxu0 %v2136
  %v2147 = vpop.f32.mrf.mxu0
  %v2148 = vadd.f32 0.0, %v2147
  %v2149 = vpop.f32.mrf.mxu0
  %2150 = vdwg.mxu0
  %v2151 = vadd.f32 %v2128, %v2148
  %v2152 = vxor.u32 %v2151, 2147483648
  %v2153 = vmul.f32 %v2152, 1.442695
  %v2154 = vpow.pop %v2153
  %v2155 = vadd.f32 %v2154, 1.0
  %v2156 = vrcp.pop %v2155
  %v2157 = vmul.f32 %v2155, %v2156
  %v2158 = vsub.f32 1.0, %v2157
  %v2159 = vmul.f32 %v2156, %v2158
  %v2160 = vadd.f32 %v2156, %v2159
  %vm2161 = vweird.f32 %v2155
  %vm2162 = vweird.f32 %v2156
  %vm2163 = vmor %vm2161, %vm2162
  %v2164 = vsel %vm2163, %v2156, %v2160
  %v2165 = vand.u32 2147483647, %v2155
  %vm2166 = vcmp.eq.f32.partialorder %v2165, 8.507059e+37
  %v2167 = vand.u32 %v2155, 2147483648
  %v2168 = vor.u32 1.1754944e-38, %v2167
  %v2169 = vsel %vm2166, %v2168, %v2164
  %v2170 = vmul.f32 1.0, %v2169
  %v2171 = vtanh.pop %v2151
  %v2172 = vmul.f32 %v2170, %v2046
  %2174 = vrot.lane.b32.xlu0 %v2171, 32
  %v2175 = vpop.permute.xlu0 %2174
  %v2177 = vmul.f32 %v2170, %v2175
  %2179 = vrot.lane.b32.xlu0 %v2177, 32
  %v2180 = vpop.permute.xlu0 %2179
  %v2182 = vadd.f32 %v2172, %v2180
  %v2183 = vtanh.pop %v2182
  %2185 = vrot.lane.b32.xlu0 %v2183, 32
  %v2186 = vpop.permute.xlu0 %2185
  %v2188 = vmul.f32 %v2170, %v2186
  %2189 = vmatpush.bf16.msra.mxu0 0
  %2190 = vmatpush.bf16.msra.mxu0 0
  %2191 = vmatpush.bf16.msra.mxu0 0
  %2192 = vmatpush.bf16.msra.mxu0 0
  %2193 = vmatpush.bf16.msra.mxu0 0
  %2194 = vmatpush.bf16.msra.mxu0 0
  %2195 = vmatpush.bf16.msra.mxu0 %v390
  %2196 = vmatpush.bf16.msra.mxu0 %v389
  %2197 = vmatmul.bf16.gmra.mxu0 %v2116
  %v2198 = vpop.f32.mrf.mxu0
  %v2199 = vadd.f32 0.0, %v2198
  %v2200 = vpop.f32.mrf.mxu0
  %2201 = vdwg.mxu0
  %v2203 = vrot.slane %v2199, 3
  %v2205 = vadd.f32 %v375, %v2203
  %v2206 = vxor.u32 %v2205, 2147483648
  %v2207 = vmul.f32 %v2206, 1.442695
  %v2208 = vpow.pop %v2207
  %v2209 = vadd.f32 %v2208, 1.0
  %v2210 = vrcp.pop %v2209
  %v2211 = vmul.f32 %v2209, %v2210
  %v2212 = vsub.f32 1.0, %v2211
  %v2213 = vmul.f32 %v2210, %v2212
  %v2214 = vadd.f32 %v2210, %v2213
  %vm2215 = vweird.f32 %v2209
  %vm2216 = vweird.f32 %v2210
  %vm2217 = vmor %vm2215, %vm2216
  %v2218 = vsel %vm2217, %v2210, %v2214
  %v2219 = vand.u32 2147483647, %v2209
  %vm2220 = vcmp.eq.f32.partialorder %v2219, 8.507059e+37
  %v2221 = vand.u32 %v2209, 2147483648
  %v2222 = vor.u32 1.1754944e-38, %v2221
  %v2223 = vsel %vm2220, %v2222, %v2218
  %v2224 = vmul.f32 1.0, %v2223
  %v2225 = vtanh.pop %v2205
  %v2227 = vrot.slane %v2103, 7
  %v2229 = vmul.f32 %v2224, %v2227
  %2231 = vrot.lane.b32.xlu0 %v2225, 32
  %v2232 = vpop.permute.xlu0 %2231
  %v2234 = vmul.f32 %v2224, %v2232
  %2236 = vrot.lane.b32.xlu0 %v2234, 32
  %v2237 = vpop.permute.xlu0 %2236
  %v2239 = vadd.f32 %v2229, %v2237
  %v2240 = vtanh.pop %v2239
  %2242 = vrot.lane.b32.xlu0 %v2240, 32
  %v2243 = vpop.permute.xlu0 %2242
  %v2245 = vmul.f32 %v2224, %v2243
  %v2246 = vpack.c.bf16 %v2245, %v2245
  %v2248 = vshrl.u32 %v2246, 16
  %v2250 = vrot.slane %v2248, 2
  %2251 = vrot.lane.b32.xlu0 %v2250, 64
  %v2252 = vpop.permute.xlu0 %2251
  %v2254 = vsel %vm176, %v2252, 0
  %2256 = vmatpush.bf16.msra.mxu0 0
  %2257 = vmatpush.bf16.msra.mxu0 0
  %2258 = vmatpush.bf16.msra.mxu0 0
  %2259 = vmatpush.bf16.msra.mxu0 0
  %2260 = vmatpush.bf16.msra.mxu0 0
  %2261 = vmatpush.bf16.msra.mxu0 0
  %2262 = vmatpush.bf16.msra.mxu0 %v465
  %2263 = vmatpush.bf16.msra.mxu0 %v464
  %2264 = vmatmul.bf16.gmra.mxu0 %v2254
  %v2265 = vpop.f32.mrf.mxu0
  %v2266 = vadd.f32 %v452, %v2265
  %v2267 = vpop.f32.mrf.mxu0
  %2268 = vdwg.mxu0
  %v2269 = vpack.c.bf16 %v2188, %v2188
  %2271 = vrot.lane.b32.xlu0 %v2269, 64
  %v2272 = vpop.permute.xlu0 %2271
  %v2274 = vsel %vm176, %v2272, 0
  %2276 = vmatpush.bf16.msra.mxu0 0
  %2277 = vmatpush.bf16.msra.mxu0 0
  %2278 = vmatpush.bf16.msra.mxu0 0
  %2279 = vmatpush.bf16.msra.mxu0 0
  %2280 = vmatpush.bf16.msra.mxu0 0
  %2281 = vmatpush.bf16.msra.mxu0 0
  %2282 = vmatpush.bf16.msra.mxu0 %v497
  %2283 = vmatpush.bf16.msra.mxu0 %v496
  %2284 = vmatmul.bf16.gmra.mxu0 %v2274
  %v2285 = vpop.f32.mrf.mxu0
  %v2286 = vadd.f32 0.0, %v2285
  %v2287 = vpop.f32.mrf.mxu0
  %2288 = vdwg.mxu0
  %v2289 = vadd.f32 %v2266, %v2286
  %v2290 = vxor.u32 %v2289, 2147483648
  %v2291 = vmul.f32 %v2290, 1.442695
  %v2292 = vpow.pop %v2291
  %v2293 = vadd.f32 %v2292, 1.0
  %v2294 = vrcp.pop %v2293
  %v2295 = vmul.f32 %v2293, %v2294
  %v2296 = vsub.f32 1.0, %v2295
  %v2297 = vmul.f32 %v2294, %v2296
  %v2298 = vadd.f32 %v2294, %v2297
  %vm2299 = vweird.f32 %v2293
  %vm2300 = vweird.f32 %v2294
  %vm2301 = vmor %vm2299, %vm2300
  %v2302 = vsel %vm2301, %v2294, %v2298
  %v2303 = vand.u32 2147483647, %v2293
  %vm2304 = vcmp.eq.f32.partialorder %v2303, 8.507059e+37
  %v2305 = vand.u32 %v2293, 2147483648
  %v2306 = vor.u32 1.1754944e-38, %v2305
  %v2307 = vsel %vm2304, %v2306, %v2302
  %v2308 = vmul.f32 1.0, %v2307
  %v2309 = vtanh.pop %v2289
  %v2310 = vmul.f32 %v2308, %v2182
  %2312 = vrot.lane.b32.xlu0 %v2309, 32
  %v2313 = vpop.permute.xlu0 %2312
  %v2315 = vmul.f32 %v2308, %v2313
  %2317 = vrot.lane.b32.xlu0 %v2315, 32
  %v2318 = vpop.permute.xlu0 %2317
  %v2320 = vadd.f32 %v2310, %v2318
  %v2321 = vtanh.pop %v2320
  %2323 = vrot.lane.b32.xlu0 %v2321, 32
  %v2324 = vpop.permute.xlu0 %2323
  %v2326 = vmul.f32 %v2308, %v2324
  %2327 = vmatpush.bf16.msra.mxu0 0
  %2328 = vmatpush.bf16.msra.mxu0 0
  %2329 = vmatpush.bf16.msra.mxu0 0
  %2330 = vmatpush.bf16.msra.mxu0 0
  %2331 = vmatpush.bf16.msra.mxu0 0
  %2332 = vmatpush.bf16.msra.mxu0 0
  %2333 = vmatpush.bf16.msra.mxu0 %v390
  %2334 = vmatpush.bf16.msra.mxu0 %v389
  %2335 = vmatmul.bf16.gmra.mxu0 %v2254
  %v2336 = vpop.f32.mrf.mxu0
  %v2337 = vadd.f32 0.0, %v2336
  %v2338 = vpop.f32.mrf.mxu0
  %2339 = vdwg.mxu0
  %v2341 = vrot.slane %v2337, 2
  %v2343 = vadd.f32 %v375, %v2341
  %v2344 = vxor.u32 %v2343, 2147483648
  %v2345 = vmul.f32 %v2344, 1.442695
  %v2346 = vpow.pop %v2345
  %v2347 = vadd.f32 %v2346, 1.0
  %v2348 = vrcp.pop %v2347
  %v2349 = vmul.f32 %v2347, %v2348
  %v2350 = vsub.f32 1.0, %v2349
  %v2351 = vmul.f32 %v2348, %v2350
  %v2352 = vadd.f32 %v2348, %v2351
  %vm2353 = vweird.f32 %v2347
  %vm2354 = vweird.f32 %v2348
  %vm2355 = vmor %vm2353, %vm2354
  %v2356 = vsel %vm2355, %v2348, %v2352
  %v2357 = vand.u32 2147483647, %v2347
  %vm2358 = vcmp.eq.f32.partialorder %v2357, 8.507059e+37
  %v2359 = vand.u32 %v2347, 2147483648
  %v2360 = vor.u32 1.1754944e-38, %v2359
  %v2361 = vsel %vm2358, %v2360, %v2356
  %v2362 = vmul.f32 1.0, %v2361
  %v2363 = vtanh.pop %v2343
  %v2365 = vrot.slane %v2239, 7
  %v2367 = vmul.f32 %v2362, %v2365
  %2369 = vrot.lane.b32.xlu0 %v2363, 32
  %v2370 = vpop.permute.xlu0 %2369
  %v2372 = vmul.f32 %v2362, %v2370
  %2374 = vrot.lane.b32.xlu0 %v2372, 32
  %v2375 = vpop.permute.xlu0 %2374
  %v2377 = vadd.f32 %v2367, %v2375
  %v2378 = vtanh.pop %v2377
  %2380 = vrot.lane.b32.xlu0 %v2378, 32
  %v2381 = vpop.permute.xlu0 %2380
  %v2383 = vmul.f32 %v2362, %v2381
  %v2384 = vpack.c.bf16 %v2383, %v2383
  %v2386 = vrot.slane %v2384, 3
  %2387 = vrot.lane.b32.xlu0 %v2386, 64
  %v2388 = vpop.permute.xlu0 %2387
  %v2390 = vsel %vm176, %v2388, 0
  %2392 = vmatpush.bf16.msra.mxu0 0
  %2393 = vmatpush.bf16.msra.mxu0 0
  %2394 = vmatpush.bf16.msra.mxu0 0
  %2395 = vmatpush.bf16.msra.mxu0 0
  %2396 = vmatpush.bf16.msra.mxu0 0
  %2397 = vmatpush.bf16.msra.mxu0 0
  %2398 = vmatpush.bf16.msra.mxu0 %v465
  %2399 = vmatpush.bf16.msra.mxu0 %v464
  %2400 = vmatmul.bf16.gmra.mxu0 %v2390
  %v2401 = vpop.f32.mrf.mxu0
  %v2402 = vadd.f32 %v452, %v2401
  %v2403 = vpop.f32.mrf.mxu0
  %2404 = vdwg.mxu0
  %v2405 = vpack.c.bf16 %v2326, %v2326
  %2407 = vrot.lane.b32.xlu0 %v2405, 64
  %v2408 = vpop.permute.xlu0 %2407
  %v2410 = vsel %vm176, %v2408, 0
  %2412 = vmatpush.bf16.msra.mxu0 0
  %2413 = vmatpush.bf16.msra.mxu0 0
  %2414 = vmatpush.bf16.msra.mxu0 0
  %2415 = vmatpush.bf16.msra.mxu0 0
  %2416 = vmatpush.bf16.msra.mxu0 0
  %2417 = vmatpush.bf16.msra.mxu0 0
  %2418 = vmatpush.bf16.msra.mxu0 %v497
  %2419 = vmatpush.bf16.msra.mxu0 %v496
  %2420 = vmatmul.bf16.gmra.mxu0 %v2410
  %v2421 = vpop.f32.mrf.mxu0
  %v2422 = vadd.f32 0.0, %v2421
  %v2423 = vpop.f32.mrf.mxu0
  %2424 = vdwg.mxu0
  %v2425 = vadd.f32 %v2402, %v2422
  %v2426 = vxor.u32 %v2425, 2147483648
  %v2427 = vmul.f32 %v2426, 1.442695
  %v2428 = vpow.pop %v2427
  %v2429 = vadd.f32 %v2428, 1.0
  %v2430 = vrcp.pop %v2429
  %v2431 = vmul.f32 %v2429, %v2430
  %v2432 = vsub.f32 1.0, %v2431
  %v2433 = vmul.f32 %v2430, %v2432
  %v2434 = vadd.f32 %v2430, %v2433
  %vm2435 = vweird.f32 %v2429
  %vm2436 = vweird.f32 %v2430
  %vm2437 = vmor %vm2435, %vm2436
  %v2438 = vsel %vm2437, %v2430, %v2434
  %v2439 = vand.u32 2147483647, %v2429
  %vm2440 = vcmp.eq.f32.partialorder %v2439, 8.507059e+37
  %v2441 = vand.u32 %v2429, 2147483648
  %v2442 = vor.u32 1.1754944e-38, %v2441
  %v2443 = vsel %vm2440, %v2442, %v2438
  %v2444 = vmul.f32 1.0, %v2443
  %v2445 = vtanh.pop %v2425
  %v2446 = vmul.f32 %v2444, %v2320
  %2448 = vrot.lane.b32.xlu0 %v2445, 32
  %v2449 = vpop.permute.xlu0 %2448
  %v2451 = vmul.f32 %v2444, %v2449
  %2453 = vrot.lane.b32.xlu0 %v2451, 32
  %v2454 = vpop.permute.xlu0 %2453
  %v2456 = vadd.f32 %v2446, %v2454
  %v2457 = vtanh.pop %v2456
  %2459 = vrot.lane.b32.xlu0 %v2457, 32
  %v2460 = vpop.permute.xlu0 %2459
  %v2462 = vmul.f32 %v2444, %v2460
  %2463 = vmatpush.bf16.msra.mxu0 0
  %2464 = vmatpush.bf16.msra.mxu0 0
  %2465 = vmatpush.bf16.msra.mxu0 0
  %2466 = vmatpush.bf16.msra.mxu0 0
  %2467 = vmatpush.bf16.msra.mxu0 0
  %2468 = vmatpush.bf16.msra.mxu0 0
  %2469 = vmatpush.bf16.msra.mxu0 %v390
  %2470 = vmatpush.bf16.msra.mxu0 %v389
  %2471 = vmatmul.bf16.gmra.mxu0 %v2390
  %v2472 = vpop.f32.mrf.mxu0
  %v2473 = vadd.f32 0.0, %v2472
  %v2474 = vpop.f32.mrf.mxu0
  %2475 = vdwg.mxu0
  %v2477 = vrot.slane %v2473, 1
  %v2479 = vadd.f32 %v375, %v2477
  %v2480 = vxor.u32 %v2479, 2147483648
  %v2481 = vmul.f32 %v2480, 1.442695
  %v2482 = vpow.pop %v2481
  %v2483 = vadd.f32 %v2482, 1.0
  %v2484 = vrcp.pop %v2483
  %v2485 = vmul.f32 %v2483, %v2484
  %v2486 = vsub.f32 1.0, %v2485
  %v2487 = vmul.f32 %v2484, %v2486
  %v2488 = vadd.f32 %v2484, %v2487
  %vm2489 = vweird.f32 %v2483
  %vm2490 = vweird.f32 %v2484
  %vm2491 = vmor %vm2489, %vm2490
  %v2492 = vsel %vm2491, %v2484, %v2488
  %v2493 = vand.u32 2147483647, %v2483
  %vm2494 = vcmp.eq.f32.partialorder %v2493, 8.507059e+37
  %v2495 = vand.u32 %v2483, 2147483648
  %v2496 = vor.u32 1.1754944e-38, %v2495
  %v2497 = vsel %vm2494, %v2496, %v2492
  %v2498 = vmul.f32 1.0, %v2497
  %v2499 = vtanh.pop %v2479
  %v2501 = vrot.slane %v2377, 7
  %v2503 = vmul.f32 %v2498, %v2501
  %2505 = vrot.lane.b32.xlu0 %v2499, 32
  %v2506 = vpop.permute.xlu0 %2505
  %v2508 = vmul.f32 %v2498, %v2506
  %2510 = vrot.lane.b32.xlu0 %v2508, 32
  %v2511 = vpop.permute.xlu0 %2510
  %v2513 = vadd.f32 %v2503, %v2511
  %v2514 = vtanh.pop %v2513
  %2516 = vrot.lane.b32.xlu0 %v2514, 32
  %v2517 = vpop.permute.xlu0 %2516
  %v2519 = vmul.f32 %v2498, %v2517
  %v2520 = vpack.c.bf16 %v2519, %v2519
  %v2522 = vshrl.u32 %v2520, 16
  %v2524 = vrot.slane %v2522, 3
  %2525 = vrot.lane.b32.xlu0 %v2524, 64
  %v2526 = vpop.permute.xlu0 %2525
  %v2528 = vsel %vm176, %v2526, 0
  %2530 = vmatpush.bf16.msra.mxu0 0
  %2531 = vmatpush.bf16.msra.mxu0 0
  %2532 = vmatpush.bf16.msra.mxu0 0
  %2533 = vmatpush.bf16.msra.mxu0 0
  %2534 = vmatpush.bf16.msra.mxu0 0
  %2535 = vmatpush.bf16.msra.mxu0 0
  %2536 = vmatpush.bf16.msra.mxu0 %v465
  %2537 = vmatpush.bf16.msra.mxu0 %v464
  %2538 = vmatmul.bf16.gmra.mxu0 %v2528
  %v2539 = vpop.f32.mrf.mxu0
  %v2540 = vadd.f32 %v452, %v2539
  %v2541 = vpop.f32.mrf.mxu0
  %2542 = vdwg.mxu0
  %v2543 = vpack.c.bf16 %v2462, %v2462
  %2545 = vrot.lane.b32.xlu0 %v2543, 64
  %v2546 = vpop.permute.xlu0 %2545
  %v2548 = vsel %vm176, %v2546, 0
  %2550 = vmatpush.bf16.msra.mxu0 0
  %2551 = vmatpush.bf16.msra.mxu0 0
  %2552 = vmatpush.bf16.msra.mxu0 0
  %2553 = vmatpush.bf16.msra.mxu0 0
  %2554 = vmatpush.bf16.msra.mxu0 0
  %2555 = vmatpush.bf16.msra.mxu0 0
  %2556 = vmatpush.bf16.msra.mxu0 %v497
  %2557 = vmatpush.bf16.msra.mxu0 %v496
  %2558 = vmatmul.bf16.gmra.mxu0 %v2548
  %v2559 = vpop.f32.mrf.mxu0
  %v2560 = vadd.f32 0.0, %v2559
  %v2561 = vpop.f32.mrf.mxu0
  %2562 = vdwg.mxu0
  %v2563 = vadd.f32 %v2540, %v2560
  %v2564 = vxor.u32 %v2563, 2147483648
  %v2565 = vmul.f32 %v2564, 1.442695
  %v2566 = vpow.pop %v2565
  %v2567 = vadd.f32 %v2566, 1.0
  %v2568 = vrcp.pop %v2567
  %v2569 = vmul.f32 %v2567, %v2568
  %v2570 = vsub.f32 1.0, %v2569
  %v2571 = vmul.f32 %v2568, %v2570
  %v2572 = vadd.f32 %v2568, %v2571
  %vm2573 = vweird.f32 %v2567
  %vm2574 = vweird.f32 %v2568
  %vm2575 = vmor %vm2573, %vm2574
  %v2576 = vsel %vm2575, %v2568, %v2572
  %v2577 = vand.u32 2147483647, %v2567
  %vm2578 = vcmp.eq.f32.partialorder %v2577, 8.507059e+37
  %v2579 = vand.u32 %v2567, 2147483648
  %v2580 = vor.u32 1.1754944e-38, %v2579
  %v2581 = vsel %vm2578, %v2580, %v2576
  %v2582 = vmul.f32 1.0, %v2581
  %v2583 = vtanh.pop %v2563
  %v2584 = vmul.f32 %v2582, %v2456
  %2586 = vrot.lane.b32.xlu0 %v2583, 32
  %v2587 = vpop.permute.xlu0 %2586
  %v2589 = vmul.f32 %v2582, %v2587
  %2591 = vrot.lane.b32.xlu0 %v2589, 32
  %v2592 = vpop.permute.xlu0 %2591
  %v2594 = vadd.f32 %v2584, %v2592
  %v2595 = vtanh.pop %v2594
  %2597 = vrot.lane.b32.xlu0 %v2595, 32
  %v2598 = vpop.permute.xlu0 %2597
  %v2600 = vmul.f32 %v2582, %v2598
  %v2602 = vrot.slane %v687, 7
  %v2605 = vrot.slane %v823, 6
  %v2608 = vrot.slane %v961, 5
  %v2611 = vrot.slane %v1097, 4
  %v2614 = vrot.slane %v1235, 3
  %v2617 = vrot.slane %v1371, 2
  %v2620 = vrot.slane %v1509, 1
  %v2623 = vrot.slane %v1778, 7
  %v2626 = vrot.slane %v1914, 6
  %v2629 = vrot.slane %v2052, 5
  %v2632 = vrot.slane %v2188, 4
  %v2635 = vrot.slane %v2326, 3
  %v2638 = vrot.slane %v2462, 2
  %v2641 = vrot.slane %v2600, 1
  %vm2643 = vcmask 1040384
  %v2644 = vsel %vm2643, %v550, %v2602
  %vm2645 = vcmask 1041408
  %v2646 = vsel %vm2645, %v2644, %v2605
  %vm2647 = vcmask 1042432
  %v2648 = vsel %vm2647, %v2646, %v2608
  %vm2649 = vcmask 1043456
  %v2650 = vsel %vm2649, %v2648, %v2611
  %vm2651 = vcmask 1044480
  %v2652 = vsel %vm2651, %v2650, %v2614
  %vm2653 = vcmask 1045504
  %v2654 = vsel %vm2653, %v2652, %v2617
  %vm2655 = vcmask 1046528
  %v2656 = vsel %vm2655, %v2654, %v2620
  %v2657 = vsel %vm2643, %v1641, %v2623
  %v2658 = vsel %vm2645, %v2657, %v2626
  %v2659 = vsel %vm2647, %v2658, %v2629
  %v2660 = vsel %vm2649, %v2659, %v2632
  %v2661 = vsel %vm2651, %v2660, %v2635
  %v2662 = vsel %vm2653, %v2661, %v2638
  %v2663 = vsel %vm2655, %v2662, %v2641
  %v2664 = vpack.c.bf16 %v2663, %v2656
  %v2665 = vld [vmem:[%s16] sm:$0xf]
  %v2666 = vld [vmem:[%s16 + $0x4] sm:$0xf]
  %v2667 = vld [vmem:[%s16 + $0x8] sm:$0xf]
  %v2668 = vld [vmem:[%s16 + $0xc] sm:$0xf]
  %v2669 = vld [vmem:[%s17] sm:$0x1]
  %v2671 = vperm.slane %v2669, 0
  %2674 = vrot.lane.b32.xlu0 %v2664, 64
  %v2675 = vpop.permute.xlu0 %2674
  %v2680 = vunpack.c.l.b16 %v2665
  %v2681 = vunpack.c.l.b16 %v2666
  %v2682 = vunpack.c.l.b16 %v2667
  %v2683 = vunpack.c.l.b16 %v2668
  %v2684 = vpack.c.b16 %v2681, %v2680
  %v2685 = vpack.c.b16 %v2683, %v2682
  %v2689 = vsel %vm176, %v2675, 0
  %2691 = vmatpush.bf16.msra.mxu0 0
  %2692 = vmatpush.bf16.msra.mxu0 0
  %2693 = vmatpush.bf16.msra.mxu0 0
  %2694 = vmatpush.bf16.msra.mxu0 0
  %2695 = vmatpush.bf16.msra.mxu0 0
  %2696 = vmatpush.bf16.msra.mxu0 0
  %2697 = vmatpush.bf16.msra.mxu0 %v2685
  %2698 = vmatpush.bf16.msra.mxu0 %v2684
  %2699 = vmatmul.bf16.gmra.mxu0 %v2689
  %v2700 = vpop.f32.mrf.mxu0
  %v2701 = vadd.f32 %v2671, %v2700
  %v2702 = vpop.f32.mrf.mxu0
  %v2703 = vadd.f32 %v2671, %v2702
  %2704 = vdwg.mxu0
  %2705 = vst [vmem:[%s18] sm:$0xff] %v2701
  %2706 = vst [vmem:[%s18 + $0x8] sm:$0xff] %v2703
  // Predicated region
  $region74: #{gcn_lstm_forward.1} parent=0 // pred_check
    _
  $region75: #{gcn_lstm_forward.1} parent=0 // pred_check_branch
    %2708 = sbr.rel (0) target = $region77
  $region76: #{gcn_lstm_forward.1} parent=0 // pred_region
    _
  $region77: #{gcn_lstm_forward.1} parent=0 // pred_fallthru
    _
  // Predicated region
  $region78: #{gcn_lstm_forward.1} parent=0 // pred_check
    _
  $region79: #{gcn_lstm_forward.1} parent=0 // pred_check_branch
    %2710 = sbr.rel (0) target = $region81
  $region80: #{gcn_lstm_forward.1} parent=0 // pred_region
    _
  $region81: #{gcn_lstm_forward.1} parent=0 // pred_fallthru
    _

</llo_original>
